<compile_context>
chip_gen: v5e
topology: v5e:2x2
jax: 0.10.0
libtpu: 0.0.40
codegen_flags: <defaults>
</compile_context>

<pallas_src>
import math
from functools import partial

import jax
import jax.numpy as jnp
from jax.experimental import pallas as pl
from jax.experimental.pallas import tpu as pltpu


# ----------------------------- config ---------------------------------------
class ModelConfig:
    input_channels = 4
    residual_channels = 32
    residual_layers = 4
    dilation_cycle_length = 2


# ----------------------------- kernel ---------------------------------------
def _wave_kernel(dilations,
                 x_ref,
                 inw_ref, inb_ref,
                 dw_ref, db_ref,
                 rw_ref, rb_ref,
                 skw_ref, skb_ref,
                 outw_ref, outb_ref,
                 o_ref):
    f32 = jnp.float32
    Nb, Cin, L = x_ref.shape
    R = inw_ref.shape[1]
    num_layers = len(dilations)
    LT = Nb * L

    # NCL -> (Nb*L, Cin), batch-major rows.  Tiny 2-D transposes ride the XLU.
    x = jnp.concatenate([x_ref[b].T for b in range(Nb)], axis=0).astype(f32)

    # input projection (1x1 conv) + ReLU
    h = jnp.dot(x, inw_ref[...], preferred_element_type=f32) + inb_ref[...]
    h = jnp.maximum(h, 0.0)                                      # (Nb*L, R)

    # Hoisted row-index iota (local position within each sequence) and the
    # per-dilation shift masks -- computed once, reused by every layer.
    rows = jax.lax.broadcasted_iota(jnp.int32, (Nb, L, R), 1).reshape(LT, R)
    mask_dn = {d: rows >= d for d in set(dilations)}             # keep h[t-d]
    mask_up = {d: rows < (L - d) for d in set(dilations)}        # keep h[t+d]

    skip = jnp.zeros_like(h)
    inv_sqrt2 = 1.0 / math.sqrt(2.0)

    for l, d in enumerate(dilations):                            # static unroll
        # Per-sequence shifts: roll the flattened tensor, then zero the rows
        # that would have crossed a sequence boundary (== conv zero padding).
        h_m = jnp.where(mask_dn[d], pltpu.roll(h, d, axis=0), 0.0)        # h[t-d]
        h_p = jnp.where(mask_up[d], pltpu.roll(h, LT - d, axis=0), 0.0)   # h[t+d]

        # fused dilated conv: gate & filter in one (Nb*L,3R)@(3R,2R) matmul
        h3 = jnp.concatenate([h_m, h, h_p], axis=-1)                      # (Nb*L, 3R)
        gf = jnp.dot(h3, dw_ref[l], preferred_element_type=f32) + db_ref[l]
        z = jax.nn.sigmoid(gf[:, :R]) * jnp.tanh(gf[:, R:])               # (Nb*L, R)

        # fused residual/skip 1x1 convs: one (Nb*L,R)@(R,2R) matmul
        rs = jnp.dot(z, rw_ref[l], preferred_element_type=f32) + rb_ref[l]
        h = (h + rs[:, :R]) * inv_sqrt2
        skip = skip + rs[:, R:]

    y = skip * (1.0 / math.sqrt(num_layers))
    y = jnp.dot(y, skw_ref[...], preferred_element_type=f32) + skb_ref[...]
    y = jnp.maximum(y, 0.0)
    y = jnp.dot(y, outw_ref[...], preferred_element_type=f32) + outb_ref[...]  # (Nb*L, Cin)

    # (Nb*L, Cin) -> NCL store; last (lane) dim = L instead of Cin=4.
    for b in range(Nb):
        o_ref[b] = y[b * L:(b + 1) * L, :].T.astype(o_ref.dtype)


# ----------------------------- wrapper ---------------------------------------
def _pick_batch_block(N, L, max_rows=512):
    """Largest divisor of N that keeps the parallel grid axis >= 2 (so both
    v7x TensorCores get work) and the packed matmul M dim <= max_rows; on
    single-TC parts the larger per-step block also amortizes grid overhead."""
    if N < 2:
        return max(N, 1)
    best = 1
    for nb in range(1, N + 1):
        if N % nb == 0 and nb * L <= max_rows and N // nb >= 2:
            best = nb
    return best


def wave_forward(x_ncl, params, dilations, batch_block=None):
    """x_ncl: (N, C_in, L) float32, PyTorch NCL layout.  Returns (N, C_in, L)."""
    N, Cin, L = x_ncl.shape
    R = params["in_w"].shape[1]
    NL = params["dw"].shape[0]

    Nb = _pick_batch_block(N, L) if batch_block is None else batch_block
    assert N % Nb == 0, "batch_block must divide the batch size"

    weights = [
        params["in_w"], params["in_b"],
        params["dw"], params["db"],
        params["rw"], params["rb"],
        params["sk_w"], params["sk_b"],
        params["out_w"], params["out_b"],
    ]

    def full_spec(a):
        nd = a.ndim
        return pl.BlockSpec(a.shape, lambda n, _nd=nd: (0,) * _nd)

    in_specs = [pl.BlockSpec((Nb, Cin, L), lambda n: (n, 0, 0))] + [
        full_spec(w) for w in weights
    ]
    out_spec = pl.BlockSpec((Nb, Cin, L), lambda n: (n, 0, 0))

    # Advisory cost hint so XLA schedules the fused custom call sensibly.
    flops_per_tok = (2 * Cin * R
                     + NL * (2 * (3 * R) * (2 * R) + 2 * R * (2 * R))
                     + 2 * R * R + 2 * R * Cin)
    weight_bytes = sum(int(w.size) * w.dtype.itemsize for w in weights)
    cost = pl.CostEstimate(
        flops=int(N * L * flops_per_tok),
        transcendentals=int(N * L * R * NL * 2),
        bytes_accessed=int(2 * N * Cin * L * 4 + weight_bytes),
    )

    return pl.pallas_call(
        partial(_wave_kernel, tuple(dilations)),
        out_shape=jax.ShapeDtypeStruct((N, Cin, L), jnp.float32),
        grid=(N // Nb,),
        in_specs=in_specs,
        out_specs=out_spec,
        compiler_params=pltpu.CompilerParams(
            dimension_semantics=("parallel",)),
        cost_estimate=cost,
    )(x_ncl, *weights)
    # NOTE: matmul operands are kept f32 for bit-tight validation; casting
    # h3 / z / weights to bf16 (preferred_element_type=f32) is a drop-in
    # further win on v6e/v7x if looser tolerance is acceptable.


# ----------------------------- params ----------------------------------------
def init_params(key, cfg: ModelConfig):
    Cin, R, NL = cfg.input_channels, cfg.residual_channels, cfg.residual_layers
    keys = jax.random.split(key, 16)

    def kaiming(k, shape, fan_in):
        return jax.random.normal(k, shape, jnp.float32) * math.sqrt(2.0 / fan_in)

    def bias(k, shape, fan_in):
        bnd = 1.0 / math.sqrt(fan_in)
        return jax.random.uniform(k, shape, jnp.float32, -bnd, bnd)

    # input projection: Conv1d(Cin -> R, k=1)
    in_w = kaiming(keys[0], (R, Cin), Cin).T                     # (Cin, R)
    in_b = bias(keys[1], (1, R), Cin)

    # residual blocks:
    #   dilated Conv1d(R -> 2R, k=3):      weight (NL, 2R, R, 3), bias (NL, 2R)
    #   output_projection Conv1d(R -> 2R): weight (NL, 2R, R),    bias (NL, 2R)
    dil_w = kaiming(keys[2], (NL, 2 * R, R, 3), R * 3)
    dil_b = bias(keys[3], (NL, 2 * R), R * 3)
    res_w = kaiming(keys[4], (NL, 2 * R, R), R)
    res_b = bias(keys[5], (NL, 2 * R), R)

    # Fuse the three conv taps + gate/filter halves into one (3R, 2R) matmul
    # weight per layer.  Row blocks: [tap0 -> h[t-d], tap1 -> h[t], tap2 -> h[t+d]];
    # columns: [gate(:R), filter(R:)] (the conv's out-channel order).
    dw = jnp.transpose(dil_w, (0, 3, 2, 1)).reshape(NL, 3 * R, 2 * R)
    db = dil_b[:, None, :]                                       # (NL, 1, 2R)

    # Fuse residual/skip 1x1 convs: columns are [residual(:R), skip(R:)].
    rw = jnp.transpose(res_w, (0, 2, 1))                         # (NL, R, 2R)
    rb = res_b[:, None, :]                                       # (NL, 1, 2R)

    # skip projection: Conv1d(R -> R, k=1)
    sk_w = kaiming(keys[6], (R, R), R).T
    sk_b = bias(keys[7], (1, R), R)

    # output projection: Conv1d(R -> Cin, k=1), weight zero-initialised.
    out_w = jnp.zeros((R, Cin), jnp.float32)
    out_b = bias(keys[8], (1, Cin), R)

    return dict(in_w=in_w, in_b=in_b, dw=dw, db=db, rw=rw, rb=rb,
                sk_w=sk_w, sk_b=sk_b, out_w=out_w, out_b=out_b)


# ----------------------------- pure-JAX reference -----------------------------
def ref_forward(x_ncl, params, dilations):
    x = jnp.transpose(x_ncl, (0, 2, 1)).astype(jnp.float32)      # (N, L, Cin)
    N, L, _ = x.shape
    R = params["in_w"].shape[1]

    def shift_d(h, d):   # h[t-d], zero padded
        return jnp.concatenate(
            [jnp.zeros((N, d, h.shape[-1]), h.dtype), h[:, :L - d]], axis=1)

    def shift_u(h, d):   # h[t+d], zero padded
        return jnp.concatenate(
            [h[:, d:], jnp.zeros((N, d, h.shape[-1]), h.dtype)], axis=1)

    h = jax.nn.relu(x @ params["in_w"] + params["in_b"])
    skip = jnp.zeros_like(h)
    for l, d in enumerate(dilations):
        h3 = jnp.concatenate([shift_d(h, d), h, shift_u(h, d)], axis=-1)
        gf = h3 @ params["dw"][l] + params["db"][l]
        z = jax.nn.sigmoid(gf[..., :R]) * jnp.tanh(gf[..., R:])
        rs = z @ params["rw"][l] + params["rb"][l]
        h = (h + rs[..., :R]) / math.sqrt(2.0)
        skip = skip + rs[..., R:]
    y = skip / math.sqrt(len(dilations))
    y = jax.nn.relu(y @ params["sk_w"] + params["sk_b"])
    y = y @ params["out_w"] + params["out_b"]
    return jnp.transpose(y, (0, 2, 1))


# ----------------------------- main -------------------------------------------
if __name__ == "__main__":
    cfg = ModelConfig()
    N, L = 4, 64
    dilations = [2 ** (i % cfg.dilation_cycle_length)
                 for i in range(cfg.residual_layers)]

    key = jax.random.PRNGKey(0)
    k_x, k_p = jax.random.split(key)
    x = jax.random.normal(k_x, (N, cfg.input_channels, L), jnp.float32)
    params = init_params(k_p, cfg)

    # faithful run (output_projection weight is zero, as in the module)
    out = jax.block_until_ready(wave_forward(x, params, dilations))
    assert out.shape == (N, cfg.input_channels, L)
    assert bool(jnp.all(jnp.isfinite(out)))

    # validation: random output-projection weight so the residual stack is
    # exercised; check both packed (Nb=2) and unpacked (Nb=1) batch blocking
    # to verify the per-sequence shift masking never leaks across sequences.
    params_chk = dict(params)
    params_chk["out_w"] = jax.random.normal(
        jax.random.PRNGKey(7), params["out_w"].shape, jnp.float32) * 0.1
    want = ref_forward(x, params_chk, dilations)
    for nb in (2, 1):
        got = jax.block_until_ready(
            wave_forward(x, params_chk, dilations, batch_block=nb))
        err = float(jnp.max(jnp.abs(got - want)))
        assert err < 5e-2, f"batch_block={nb}: max abs error too large: {err}"

    print("KERNEL_OK")
</pallas_src>

<mosaic_0001>
module attributes {stable_mosaic.version = 11 : i64} {
  func.func @_wave_kernel(%arg0: i32, %arg1: memref<2x4x64xf32, #tpu.memory_space<vmem>>, %arg2: memref<4x32xf32, #tpu.memory_space<vmem>>, %arg3: memref<1x32xf32, #tpu.memory_space<vmem>>, %arg4: memref<4x96x64xf32, #tpu.memory_space<vmem>>, %arg5: memref<4x1x64xf32, #tpu.memory_space<vmem>>, %arg6: memref<4x32x64xf32, #tpu.memory_space<vmem>>, %arg7: memref<4x1x64xf32, #tpu.memory_space<vmem>>, %arg8: memref<32x32xf32, #tpu.memory_space<vmem>>, %arg9: memref<1x32xf32, #tpu.memory_space<vmem>>, %arg10: memref<32x4xf32, #tpu.memory_space<vmem>>, %arg11: memref<1x4xf32, #tpu.memory_space<vmem>>, %arg12: memref<2x4x64xf32, #tpu.memory_space<vmem>>) attributes {dimension_semantics = [#tpu.dimension_semantics<parallel>], iteration_bounds = array<i64: 2>, scalar_prefetch = 0 : i64, scratch_operands = 0 : i64, tpu.core_type = #tpu.core_type<tc>, window_params = [{transform_indices = @transform_0, window_bounds = array<i64: 2, 4, 64>}, {pipeline_mode = #tpu.pipeline_mode<synchronous>, transform_indices = @transform_1, window_bounds = array<i64: 4, 32>}, {pipeline_mode = #tpu.pipeline_mode<synchronous>, transform_indices = @transform_2, window_bounds = array<i64: 1, 32>}, {pipeline_mode = #tpu.pipeline_mode<synchronous>, transform_indices = @transform_3, window_bounds = array<i64: 4, 96, 64>}, {pipeline_mode = #tpu.pipeline_mode<synchronous>, transform_indices = @transform_4, window_bounds = array<i64: 4, 1, 64>}, {pipeline_mode = #tpu.pipeline_mode<synchronous>, transform_indices = @transform_5, window_bounds = array<i64: 4, 32, 64>}, {pipeline_mode = #tpu.pipeline_mode<synchronous>, transform_indices = @transform_6, window_bounds = array<i64: 4, 1, 64>}, {pipeline_mode = #tpu.pipeline_mode<synchronous>, transform_indices = @transform_7, window_bounds = array<i64: 32, 32>}, {pipeline_mode = #tpu.pipeline_mode<synchronous>, transform_indices = @transform_8, window_bounds = array<i64: 1, 32>}, {pipeline_mode = #tpu.pipeline_mode<synchronous>, transform_indices = @transform_9, window_bounds = array<i64: 32, 4>}, {pipeline_mode = #tpu.pipeline_mode<synchronous>, transform_indices = @transform_10, window_bounds = array<i64: 1, 4>}, {transform_indices = @transform_11, window_bounds = array<i64: 2, 4, 64>}]} {
    %c0 = arith.constant 0 : index
    %c0_0 = arith.constant 0 : index
    %c0_1 = arith.constant 0 : index
    %0 = vector.load %arg1[%c0, %c0_0, %c0_1] : memref<2x4x64xf32, #tpu.memory_space<vmem>>, vector<1x4x64xf32>
    %1 = vector.shape_cast %0 : vector<1x4x64xf32> to vector<4x64xf32>
    %2 = tpu.transpose %1, [1, 0] : vector<4x64xf32> -> vector<64x4xf32>
    %c1 = arith.constant 1 : index
    %c0_2 = arith.constant 0 : index
    %c0_3 = arith.constant 0 : index
    %3 = vector.load %arg1[%c1, %c0_2, %c0_3] : memref<2x4x64xf32, #tpu.memory_space<vmem>>, vector<1x4x64xf32>
    %4 = vector.shape_cast %3 : vector<1x4x64xf32> to vector<4x64xf32>
    %5 = tpu.transpose %4, [1, 0] : vector<4x64xf32> -> vector<64x4xf32>
    %6 = tpu.concatenate %2, %5 in 0 : vector<64x4xf32>, vector<64x4xf32> -> vector<128x4xf32>
    %c0_4 = arith.constant 0 : index
    %c0_5 = arith.constant 0 : index
    %7 = vector.load %arg2[%c0_4, %c0_5] : memref<4x32xf32, #tpu.memory_space<vmem>>, vector<4x32xf32>
    %cst = arith.constant dense<0.000000e+00> : vector<128x32xf32>
    %8 = tpu.matmul %6, %7, %cst {dimension_numbers = #tpu.dot_dimension_numbers<[1], [0], [0], [1], [0, 0, 1, 1], [], []>} : vector<128x4xf32>, vector<4x32xf32>, vector<128x32xf32> -> vector<128x32xf32>
    %c0_6 = arith.constant 0 : index
    %c0_7 = arith.constant 0 : index
    %9 = vector.load %arg3[%c0_6, %c0_7] : memref<1x32xf32, #tpu.memory_space<vmem>>, vector<1x32xf32>
    %10 = vector.broadcast %9 : vector<1x32xf32> to vector<128x32xf32>
    %11 = arith.addf %8, %10 : vector<128x32xf32>
    %cst_8 = arith.constant 0.000000e+00 : f32
    %12 = vector.broadcast %cst_8 : f32 to vector<128x32xf32>
    %13 = arith.maximumf %11, %12 : vector<128x32xf32>
    %14 = tpu.iota {dimensions = array<i32: 1>} : vector<2x64x32xi32>
    %15 = vector.shape_cast %14 : vector<2x64x32xi32> to vector<128x32xi32>
    %c1_i32 = arith.constant 1 : i32
    %16 = vector.broadcast %c1_i32 : i32 to vector<128x32xi32>
    %17 = arith.cmpi sge, %15, %16 : vector<128x32xi32>
    %c2_i32 = arith.constant 2 : i32
    %18 = vector.broadcast %c2_i32 : i32 to vector<128x32xi32>
    %19 = arith.cmpi sge, %15, %18 : vector<128x32xi32>
    %c63_i32 = arith.constant 63 : i32
    %20 = vector.broadcast %c63_i32 : i32 to vector<128x32xi32>
    %21 = arith.cmpi slt, %15, %20 : vector<128x32xi32>
    %c62_i32 = arith.constant 62 : i32
    %22 = vector.broadcast %c62_i32 : i32 to vector<128x32xi32>
    %23 = arith.cmpi slt, %15, %22 : vector<128x32xi32>
    %cst_9 = arith.constant 0.000000e+00 : f32
    %24 = vector.broadcast %cst_9 : f32 to vector<128x32xf32>
    %c1_i32_10 = arith.constant 1 : i32
    %25 = tpu.dynamic_rotate %13 by %c1_i32_10 dim 0 : vector<128x32xf32>, i32 -> vector<128x32xf32>
    %cst_11 = arith.constant 0.000000e+00 : f32
    %26 = vector.broadcast %cst_11 : f32 to vector<128x32xf32>
    %27 = arith.select %17, %25, %26 : vector<128x32xi1>, vector<128x32xf32>
    %c127_i32 = arith.constant 127 : i32
    %28 = tpu.dynamic_rotate %13 by %c127_i32 dim 0 : vector<128x32xf32>, i32 -> vector<128x32xf32>
    %cst_12 = arith.constant 0.000000e+00 : f32
    %29 = vector.broadcast %cst_12 : f32 to vector<128x32xf32>
    %30 = arith.select %21, %28, %29 : vector<128x32xi1>, vector<128x32xf32>
    %31 = tpu.concatenate %27, %13, %30 in 1 : vector<128x32xf32>, vector<128x32xf32>, vector<128x32xf32> -> vector<128x96xf32>
    %c0_13 = arith.constant 0 : index
    %c0_14 = arith.constant 0 : index
    %c0_15 = arith.constant 0 : index
    %32 = vector.load %arg4[%c0_13, %c0_14, %c0_15] : memref<4x96x64xf32, #tpu.memory_space<vmem>>, vector<1x96x64xf32>
    %33 = vector.shape_cast %32 : vector<1x96x64xf32> to vector<96x64xf32>
    %cst_16 = arith.constant dense<0.000000e+00> : vector<128x64xf32>
    %34 = tpu.matmul %31, %33, %cst_16 {dimension_numbers = #tpu.dot_dimension_numbers<[1], [0], [0], [1], [0, 0, 1, 1], [], []>} : vector<128x96xf32>, vector<96x64xf32>, vector<128x64xf32> -> vector<128x64xf32>
    %c0_17 = arith.constant 0 : index
    %c0_18 = arith.constant 0 : index
    %c0_19 = arith.constant 0 : index
    %35 = vector.load %arg5[%c0_17, %c0_18, %c0_19] : memref<4x1x64xf32, #tpu.memory_space<vmem>>, vector<1x1x64xf32>
    %36 = vector.shape_cast %35 : vector<1x1x64xf32> to vector<1x64xf32>
    %37 = vector.broadcast %36 : vector<1x64xf32> to vector<128x64xf32>
    %38 = arith.addf %34, %37 : vector<128x64xf32>
    %39 = vector.extract_strided_slice %38 {offsets = [0, 0], sizes = [128, 32], strides = [1, 1]} : vector<128x64xf32> to vector<128x32xf32>
    %40 = arith.negf %39 : vector<128x32xf32>
    %41 = math.exp %40 : vector<128x32xf32>
    %cst_20 = arith.constant 1.000000e+00 : f32
    %42 = vector.broadcast %cst_20 : f32 to vector<128x32xf32>
    %43 = arith.addf %42, %41 : vector<128x32xf32>
    %44 = arith.divf %42, %43 : vector<128x32xf32>
    %45 = vector.extract_strided_slice %38 {offsets = [0, 32], sizes = [128, 32], strides = [1, 1]} : vector<128x64xf32> to vector<128x32xf32>
    %46 = math.tanh %45 : vector<128x32xf32>
    %47 = arith.mulf %44, %46 : vector<128x32xf32>
    %c0_21 = arith.constant 0 : index
    %c0_22 = arith.constant 0 : index
    %c0_23 = arith.constant 0 : index
    %48 = vector.load %arg6[%c0_21, %c0_22, %c0_23] : memref<4x32x64xf32, #tpu.memory_space<vmem>>, vector<1x32x64xf32>
    %49 = vector.shape_cast %48 : vector<1x32x64xf32> to vector<32x64xf32>
    %cst_24 = arith.constant dense<0.000000e+00> : vector<128x64xf32>
    %50 = tpu.matmul %47, %49, %cst_24 {dimension_numbers = #tpu.dot_dimension_numbers<[1], [0], [0], [1], [0, 0, 1, 1], [], []>} : vector<128x32xf32>, vector<32x64xf32>, vector<128x64xf32> -> vector<128x64xf32>
    %c0_25 = arith.constant 0 : index
    %c0_26 = arith.constant 0 : index
    %c0_27 = arith.constant 0 : index
    %51 = vector.load %arg7[%c0_25, %c0_26, %c0_27] : memref<4x1x64xf32, #tpu.memory_space<vmem>>, vector<1x1x64xf32>
    %52 = vector.shape_cast %51 : vector<1x1x64xf32> to vector<1x64xf32>
    %53 = vector.broadcast %52 : vector<1x64xf32> to vector<128x64xf32>
    %54 = arith.addf %50, %53 : vector<128x64xf32>
    %55 = vector.extract_strided_slice %54 {offsets = [0, 0], sizes = [128, 32], strides = [1, 1]} : vector<128x64xf32> to vector<128x32xf32>
    %56 = arith.addf %13, %55 : vector<128x32xf32>
    %cst_28 = arith.constant 0.707106769 : f32
    %57 = vector.broadcast %cst_28 : f32 to vector<128x32xf32>
    %58 = arith.mulf %56, %57 : vector<128x32xf32>
    %59 = vector.extract_strided_slice %54 {offsets = [0, 32], sizes = [128, 32], strides = [1, 1]} : vector<128x64xf32> to vector<128x32xf32>
    %60 = arith.addf %24, %59 : vector<128x32xf32>
    %c2_i32_29 = arith.constant 2 : i32
    %61 = tpu.dynamic_rotate %58 by %c2_i32_29 dim 0 : vector<128x32xf32>, i32 -> vector<128x32xf32>
    %cst_30 = arith.constant 0.000000e+00 : f32
    %62 = vector.broadcast %cst_30 : f32 to vector<128x32xf32>
    %63 = arith.select %19, %61, %62 : vector<128x32xi1>, vector<128x32xf32>
    %c126_i32 = arith.constant 126 : i32
    %64 = tpu.dynamic_rotate %58 by %c126_i32 dim 0 : vector<128x32xf32>, i32 -> vector<128x32xf32>
    %cst_31 = arith.constant 0.000000e+00 : f32
    %65 = vector.broadcast %cst_31 : f32 to vector<128x32xf32>
    %66 = arith.select %23, %64, %65 : vector<128x32xi1>, vector<128x32xf32>
    %67 = tpu.concatenate %63, %58, %66 in 1 : vector<128x32xf32>, vector<128x32xf32>, vector<128x32xf32> -> vector<128x96xf32>
    %c1_32 = arith.constant 1 : index
    %c0_33 = arith.constant 0 : index
    %c0_34 = arith.constant 0 : index
    %68 = vector.load %arg4[%c1_32, %c0_33, %c0_34] : memref<4x96x64xf32, #tpu.memory_space<vmem>>, vector<1x96x64xf32>
    %69 = vector.shape_cast %68 : vector<1x96x64xf32> to vector<96x64xf32>
    %cst_35 = arith.constant dense<0.000000e+00> : vector<128x64xf32>
    %70 = tpu.matmul %67, %69, %cst_35 {dimension_numbers = #tpu.dot_dimension_numbers<[1], [0], [0], [1], [0, 0, 1, 1], [], []>} : vector<128x96xf32>, vector<96x64xf32>, vector<128x64xf32> -> vector<128x64xf32>
    %c1_36 = arith.constant 1 : index
    %c0_37 = arith.constant 0 : index
    %c0_38 = arith.constant 0 : index
    %71 = vector.load %arg5[%c1_36, %c0_37, %c0_38] : memref<4x1x64xf32, #tpu.memory_space<vmem>>, vector<1x1x64xf32>
    %72 = vector.shape_cast %71 : vector<1x1x64xf32> to vector<1x64xf32>
    %73 = vector.broadcast %72 : vector<1x64xf32> to vector<128x64xf32>
    %74 = arith.addf %70, %73 : vector<128x64xf32>
    %75 = vector.extract_strided_slice %74 {offsets = [0, 0], sizes = [128, 32], strides = [1, 1]} : vector<128x64xf32> to vector<128x32xf32>
    %76 = arith.negf %75 : vector<128x32xf32>
    %77 = math.exp %76 : vector<128x32xf32>
    %cst_39 = arith.constant 1.000000e+00 : f32
    %78 = vector.broadcast %cst_39 : f32 to vector<128x32xf32>
    %79 = arith.addf %78, %77 : vector<128x32xf32>
    %80 = arith.divf %78, %79 : vector<128x32xf32>
    %81 = vector.extract_strided_slice %74 {offsets = [0, 32], sizes = [128, 32], strides = [1, 1]} : vector<128x64xf32> to vector<128x32xf32>
    %82 = math.tanh %81 : vector<128x32xf32>
    %83 = arith.mulf %80, %82 : vector<128x32xf32>
    %c1_40 = arith.constant 1 : index
    %c0_41 = arith.constant 0 : index
    %c0_42 = arith.constant 0 : index
    %84 = vector.load %arg6[%c1_40, %c0_41, %c0_42] : memref<4x32x64xf32, #tpu.memory_space<vmem>>, vector<1x32x64xf32>
    %85 = vector.shape_cast %84 : vector<1x32x64xf32> to vector<32x64xf32>
    %cst_43 = arith.constant dense<0.000000e+00> : vector<128x64xf32>
    %86 = tpu.matmul %83, %85, %cst_43 {dimension_numbers = #tpu.dot_dimension_numbers<[1], [0], [0], [1], [0, 0, 1, 1], [], []>} : vector<128x32xf32>, vector<32x64xf32>, vector<128x64xf32> -> vector<128x64xf32>
    %c1_44 = arith.constant 1 : index
    %c0_45 = arith.constant 0 : index
    %c0_46 = arith.constant 0 : index
    %87 = vector.load %arg7[%c1_44, %c0_45, %c0_46] : memref<4x1x64xf32, #tpu.memory_space<vmem>>, vector<1x1x64xf32>
    %88 = vector.shape_cast %87 : vector<1x1x64xf32> to vector<1x64xf32>
    %89 = vector.broadcast %88 : vector<1x64xf32> to vector<128x64xf32>
    %90 = arith.addf %86, %89 : vector<128x64xf32>
    %91 = vector.extract_strided_slice %90 {offsets = [0, 0], sizes = [128, 32], strides = [1, 1]} : vector<128x64xf32> to vector<128x32xf32>
    %92 = arith.addf %58, %91 : vector<128x32xf32>
    %cst_47 = arith.constant 0.707106769 : f32
    %93 = vector.broadcast %cst_47 : f32 to vector<128x32xf32>
    %94 = arith.mulf %92, %93 : vector<128x32xf32>
    %95 = vector.extract_strided_slice %90 {offsets = [0, 32], sizes = [128, 32], strides = [1, 1]} : vector<128x64xf32> to vector<128x32xf32>
    %96 = arith.addf %60, %95 : vector<128x32xf32>
    %c1_i32_48 = arith.constant 1 : i32
    %97 = tpu.dynamic_rotate %94 by %c1_i32_48 dim 0 : vector<128x32xf32>, i32 -> vector<128x32xf32>
    %cst_49 = arith.constant 0.000000e+00 : f32
    %98 = vector.broadcast %cst_49 : f32 to vector<128x32xf32>
    %99 = arith.select %17, %97, %98 : vector<128x32xi1>, vector<128x32xf32>
    %c127_i32_50 = arith.constant 127 : i32
    %100 = tpu.dynamic_rotate %94 by %c127_i32_50 dim 0 : vector<128x32xf32>, i32 -> vector<128x32xf32>
    %cst_51 = arith.constant 0.000000e+00 : f32
    %101 = vector.broadcast %cst_51 : f32 to vector<128x32xf32>
    %102 = arith.select %21, %100, %101 : vector<128x32xi1>, vector<128x32xf32>
    %103 = tpu.concatenate %99, %94, %102 in 1 : vector<128x32xf32>, vector<128x32xf32>, vector<128x32xf32> -> vector<128x96xf32>
    %c2 = arith.constant 2 : index
    %c0_52 = arith.constant 0 : index
    %c0_53 = arith.constant 0 : index
    %104 = vector.load %arg4[%c2, %c0_52, %c0_53] : memref<4x96x64xf32, #tpu.memory_space<vmem>>, vector<1x96x64xf32>
    %105 = vector.shape_cast %104 : vector<1x96x64xf32> to vector<96x64xf32>
    %cst_54 = arith.constant dense<0.000000e+00> : vector<128x64xf32>
    %106 = tpu.matmul %103, %105, %cst_54 {dimension_numbers = #tpu.dot_dimension_numbers<[1], [0], [0], [1], [0, 0, 1, 1], [], []>} : vector<128x96xf32>, vector<96x64xf32>, vector<128x64xf32> -> vector<128x64xf32>
    %c2_55 = arith.constant 2 : index
    %c0_56 = arith.constant 0 : index
    %c0_57 = arith.constant 0 : index
    %107 = vector.load %arg5[%c2_55, %c0_56, %c0_57] : memref<4x1x64xf32, #tpu.memory_space<vmem>>, vector<1x1x64xf32>
    %108 = vector.shape_cast %107 : vector<1x1x64xf32> to vector<1x64xf32>
    %109 = vector.broadcast %108 : vector<1x64xf32> to vector<128x64xf32>
    %110 = arith.addf %106, %109 : vector<128x64xf32>
    %111 = vector.extract_strided_slice %110 {offsets = [0, 0], sizes = [128, 32], strides = [1, 1]} : vector<128x64xf32> to vector<128x32xf32>
    %112 = arith.negf %111 : vector<128x32xf32>
    %113 = math.exp %112 : vector<128x32xf32>
    %cst_58 = arith.constant 1.000000e+00 : f32
    %114 = vector.broadcast %cst_58 : f32 to vector<128x32xf32>
    %115 = arith.addf %114, %113 : vector<128x32xf32>
    %116 = arith.divf %114, %115 : vector<128x32xf32>
    %117 = vector.extract_strided_slice %110 {offsets = [0, 32], sizes = [128, 32], strides = [1, 1]} : vector<128x64xf32> to vector<128x32xf32>
    %118 = math.tanh %117 : vector<128x32xf32>
    %119 = arith.mulf %116, %118 : vector<128x32xf32>
    %c2_59 = arith.constant 2 : index
    %c0_60 = arith.constant 0 : index
    %c0_61 = arith.constant 0 : index
    %120 = vector.load %arg6[%c2_59, %c0_60, %c0_61] : memref<4x32x64xf32, #tpu.memory_space<vmem>>, vector<1x32x64xf32>
    %121 = vector.shape_cast %120 : vector<1x32x64xf32> to vector<32x64xf32>
    %cst_62 = arith.constant dense<0.000000e+00> : vector<128x64xf32>
    %122 = tpu.matmul %119, %121, %cst_62 {dimension_numbers = #tpu.dot_dimension_numbers<[1], [0], [0], [1], [0, 0, 1, 1], [], []>} : vector<128x32xf32>, vector<32x64xf32>, vector<128x64xf32> -> vector<128x64xf32>
    %c2_63 = arith.constant 2 : index
    %c0_64 = arith.constant 0 : index
    %c0_65 = arith.constant 0 : index
    %123 = vector.load %arg7[%c2_63, %c0_64, %c0_65] : memref<4x1x64xf32, #tpu.memory_space<vmem>>, vector<1x1x64xf32>
    %124 = vector.shape_cast %123 : vector<1x1x64xf32> to vector<1x64xf32>
    %125 = vector.broadcast %124 : vector<1x64xf32> to vector<128x64xf32>
    %126 = arith.addf %122, %125 : vector<128x64xf32>
    %127 = vector.extract_strided_slice %126 {offsets = [0, 0], sizes = [128, 32], strides = [1, 1]} : vector<128x64xf32> to vector<128x32xf32>
    %128 = arith.addf %94, %127 : vector<128x32xf32>
    %cst_66 = arith.constant 0.707106769 : f32
    %129 = vector.broadcast %cst_66 : f32 to vector<128x32xf32>
    %130 = arith.mulf %128, %129 : vector<128x32xf32>
    %131 = vector.extract_strided_slice %126 {offsets = [0, 32], sizes = [128, 32], strides = [1, 1]} : vector<128x64xf32> to vector<128x32xf32>
    %132 = arith.addf %96, %131 : vector<128x32xf32>
    %c2_i32_67 = arith.constant 2 : i32
    %133 = tpu.dynamic_rotate %130 by %c2_i32_67 dim 0 : vector<128x32xf32>, i32 -> vector<128x32xf32>
    %cst_68 = arith.constant 0.000000e+00 : f32
    %134 = vector.broadcast %cst_68 : f32 to vector<128x32xf32>
    %135 = arith.select %19, %133, %134 : vector<128x32xi1>, vector<128x32xf32>
    %c126_i32_69 = arith.constant 126 : i32
    %136 = tpu.dynamic_rotate %130 by %c126_i32_69 dim 0 : vector<128x32xf32>, i32 -> vector<128x32xf32>
    %cst_70 = arith.constant 0.000000e+00 : f32
    %137 = vector.broadcast %cst_70 : f32 to vector<128x32xf32>
    %138 = arith.select %23, %136, %137 : vector<128x32xi1>, vector<128x32xf32>
    %139 = tpu.concatenate %135, %130, %138 in 1 : vector<128x32xf32>, vector<128x32xf32>, vector<128x32xf32> -> vector<128x96xf32>
    %c3 = arith.constant 3 : index
    %c0_71 = arith.constant 0 : index
    %c0_72 = arith.constant 0 : index
    %140 = vector.load %arg4[%c3, %c0_71, %c0_72] : memref<4x96x64xf32, #tpu.memory_space<vmem>>, vector<1x96x64xf32>
    %141 = vector.shape_cast %140 : vector<1x96x64xf32> to vector<96x64xf32>
    %cst_73 = arith.constant dense<0.000000e+00> : vector<128x64xf32>
    %142 = tpu.matmul %139, %141, %cst_73 {dimension_numbers = #tpu.dot_dimension_numbers<[1], [0], [0], [1], [0, 0, 1, 1], [], []>} : vector<128x96xf32>, vector<96x64xf32>, vector<128x64xf32> -> vector<128x64xf32>
    %c3_74 = arith.constant 3 : index
    %c0_75 = arith.constant 0 : index
    %c0_76 = arith.constant 0 : index
    %143 = vector.load %arg5[%c3_74, %c0_75, %c0_76] : memref<4x1x64xf32, #tpu.memory_space<vmem>>, vector<1x1x64xf32>
    %144 = vector.shape_cast %143 : vector<1x1x64xf32> to vector<1x64xf32>
    %145 = vector.broadcast %144 : vector<1x64xf32> to vector<128x64xf32>
    %146 = arith.addf %142, %145 : vector<128x64xf32>
    %147 = vector.extract_strided_slice %146 {offsets = [0, 0], sizes = [128, 32], strides = [1, 1]} : vector<128x64xf32> to vector<128x32xf32>
    %148 = arith.negf %147 : vector<128x32xf32>
    %149 = math.exp %148 : vector<128x32xf32>
    %cst_77 = arith.constant 1.000000e+00 : f32
    %150 = vector.broadcast %cst_77 : f32 to vector<128x32xf32>
    %151 = arith.addf %150, %149 : vector<128x32xf32>
    %152 = arith.divf %150, %151 : vector<128x32xf32>
    %153 = vector.extract_strided_slice %146 {offsets = [0, 32], sizes = [128, 32], strides = [1, 1]} : vector<128x64xf32> to vector<128x32xf32>
    %154 = math.tanh %153 : vector<128x32xf32>
    %155 = arith.mulf %152, %154 : vector<128x32xf32>
    %c3_78 = arith.constant 3 : index
    %c0_79 = arith.constant 0 : index
    %c0_80 = arith.constant 0 : index
    %156 = vector.load %arg6[%c3_78, %c0_79, %c0_80] : memref<4x32x64xf32, #tpu.memory_space<vmem>>, vector<1x32x64xf32>
    %157 = vector.shape_cast %156 : vector<1x32x64xf32> to vector<32x64xf32>
    %cst_81 = arith.constant dense<0.000000e+00> : vector<128x64xf32>
    %158 = tpu.matmul %155, %157, %cst_81 {dimension_numbers = #tpu.dot_dimension_numbers<[1], [0], [0], [1], [0, 0, 1, 1], [], []>} : vector<128x32xf32>, vector<32x64xf32>, vector<128x64xf32> -> vector<128x64xf32>
    %c3_82 = arith.constant 3 : index
    %c0_83 = arith.constant 0 : index
    %c0_84 = arith.constant 0 : index
    %159 = vector.load %arg7[%c3_82, %c0_83, %c0_84] : memref<4x1x64xf32, #tpu.memory_space<vmem>>, vector<1x1x64xf32>
    %160 = vector.shape_cast %159 : vector<1x1x64xf32> to vector<1x64xf32>
    %161 = vector.broadcast %160 : vector<1x64xf32> to vector<128x64xf32>
    %162 = arith.addf %158, %161 : vector<128x64xf32>
    %163 = vector.extract_strided_slice %162 {offsets = [0, 32], sizes = [128, 32], strides = [1, 1]} : vector<128x64xf32> to vector<128x32xf32>
    %164 = arith.addf %132, %163 : vector<128x32xf32>
    %cst_85 = arith.constant 5.000000e-01 : f32
    %165 = vector.broadcast %cst_85 : f32 to vector<128x32xf32>
    %166 = arith.mulf %164, %165 : vector<128x32xf32>
    %c0_86 = arith.constant 0 : index
    %c0_87 = arith.constant 0 : index
    %167 = vector.load %arg8[%c0_86, %c0_87] : memref<32x32xf32, #tpu.memory_space<vmem>>, vector<32x32xf32>
    %cst_88 = arith.constant dense<0.000000e+00> : vector<128x32xf32>
    %168 = tpu.matmul %166, %167, %cst_88 {dimension_numbers = #tpu.dot_dimension_numbers<[1], [0], [0], [1], [0, 0, 1, 1], [], []>} : vector<128x32xf32>, vector<32x32xf32>, vector<128x32xf32> -> vector<128x32xf32>
    %c0_89 = arith.constant 0 : index
    %c0_90 = arith.constant 0 : index
    %169 = vector.load %arg9[%c0_89, %c0_90] : memref<1x32xf32, #tpu.memory_space<vmem>>, vector<1x32xf32>
    %170 = vector.broadcast %169 : vector<1x32xf32> to vector<128x32xf32>
    %171 = arith.addf %168, %170 : vector<128x32xf32>
    %cst_91 = arith.constant 0.000000e+00 : f32
    %172 = vector.broadcast %cst_91 : f32 to vector<128x32xf32>
    %173 = arith.maximumf %171, %172 : vector<128x32xf32>
    %c0_92 = arith.constant 0 : index
    %c0_93 = arith.constant 0 : index
    %174 = vector.load %arg10[%c0_92, %c0_93] : memref<32x4xf32, #tpu.memory_space<vmem>>, vector<32x4xf32>
    %cst_94 = arith.constant dense<0.000000e+00> : vector<128x4xf32>
    %175 = tpu.matmul %173, %174, %cst_94 {dimension_numbers = #tpu.dot_dimension_numbers<[1], [0], [0], [1], [0, 0, 1, 1], [], []>} : vector<128x32xf32>, vector<32x4xf32>, vector<128x4xf32> -> vector<128x4xf32>
    %c0_95 = arith.constant 0 : index
    %c0_96 = arith.constant 0 : index
    %176 = vector.load %arg11[%c0_95, %c0_96] : memref<1x4xf32, #tpu.memory_space<vmem>>, vector<1x4xf32>
    %177 = vector.broadcast %176 : vector<1x4xf32> to vector<128x4xf32>
    %178 = arith.addf %175, %177 : vector<128x4xf32>
    %179 = vector.extract_strided_slice %178 {offsets = [0, 0], sizes = [64, 4], strides = [1, 1]} : vector<128x4xf32> to vector<64x4xf32>
    %180 = tpu.transpose %179, [1, 0] : vector<64x4xf32> -> vector<4x64xf32>
    %c0_97 = arith.constant 0 : index
    %c0_98 = arith.constant 0 : index
    %c0_99 = arith.constant 0 : index
    %181 = vector.load %arg12[%c0_97, %c0_98, %c0_99] : memref<2x4x64xf32, #tpu.memory_space<vmem>>, vector<1x4x64xf32>
    %182 = vector.shape_cast %181 : vector<1x4x64xf32> to vector<4x64xf32>
    %183 = vector.shape_cast %180 : vector<4x64xf32> to vector<1x4x64xf32>
    tpu.vector_store %arg12[%c0_97, %c0_98, %c0_99], %183 {strides = array<i32>} : memref<2x4x64xf32, #tpu.memory_space<vmem>>, vector<1x4x64xf32>,
    %184 = vector.extract_strided_slice %178 {offsets = [64, 0], sizes = [64, 4], strides = [1, 1]} : vector<128x4xf32> to vector<64x4xf32>
    %185 = tpu.transpose %184, [1, 0] : vector<64x4xf32> -> vector<4x64xf32>
    %c1_100 = arith.constant 1 : index
    %c0_101 = arith.constant 0 : index
    %c0_102 = arith.constant 0 : index
    %186 = vector.load %arg12[%c1_100, %c0_101, %c0_102] : memref<2x4x64xf32, #tpu.memory_space<vmem>>, vector<1x4x64xf32>
    %187 = vector.shape_cast %186 : vector<1x4x64xf32> to vector<4x64xf32>
    %188 = vector.shape_cast %185 : vector<4x64xf32> to vector<1x4x64xf32>
    tpu.vector_store %arg12[%c1_100, %c0_101, %c0_102], %188 {strides = array<i32>} : memref<2x4x64xf32, #tpu.memory_space<vmem>>, vector<1x4x64xf32>,
    return
  }
  func.func @transform_0(%arg0: i32) -> (i32, i32, i32) {
    %c0_i32 = arith.constant 0 : i32
    %c0_i32_0 = arith.constant 0 : i32
    %c0_i32_1 = arith.constant 0 : i32
    return %arg0, %c0_i32, %c0_i32_0 : i32, i32, i32
  }
  func.func @transform_1(%arg0: i32) -> (i32, i32) {
    %c0_i32 = arith.constant 0 : i32
    %c0_i32_0 = arith.constant 0 : i32
    %c0_i32_1 = arith.constant 0 : i32
    return %c0_i32, %c0_i32_0 : i32, i32
  }
  func.func @transform_2(%arg0: i32) -> (i32, i32) {
    %c0_i32 = arith.constant 0 : i32
    %c0_i32_0 = arith.constant 0 : i32
    %c0_i32_1 = arith.constant 0 : i32
    return %c0_i32, %c0_i32_0 : i32, i32
  }
  func.func @transform_3(%arg0: i32) -> (i32, i32, i32) {
    %c0_i32 = arith.constant 0 : i32
    %c0_i32_0 = arith.constant 0 : i32
    %c0_i32_1 = arith.constant 0 : i32
    %c0_i32_2 = arith.constant 0 : i32
    return %c0_i32, %c0_i32_0, %c0_i32_1 : i32, i32, i32
  }
  func.func @transform_4(%arg0: i32) -> (i32, i32, i32) {
    %c0_i32 = arith.constant 0 : i32
    %c0_i32_0 = arith.constant 0 : i32
    %c0_i32_1 = arith.constant 0 : i32
    %c0_i32_2 = arith.constant 0 : i32
    return %c0_i32, %c0_i32_0, %c0_i32_1 : i32, i32, i32
  }
  func.func @transform_5(%arg0: i32) -> (i32, i32, i32) {
    %c0_i32 = arith.constant 0 : i32
    %c0_i32_0 = arith.constant 0 : i32
    %c0_i32_1 = arith.constant 0 : i32
    %c0_i32_2 = arith.constant 0 : i32
    return %c0_i32, %c0_i32_0, %c0_i32_1 : i32, i32, i32
  }
  func.func @transform_6(%arg0: i32) -> (i32, i32, i32) {
    %c0_i32 = arith.constant 0 : i32
    %c0_i32_0 = arith.constant 0 : i32
    %c0_i32_1 = arith.constant 0 : i32
    %c0_i32_2 = arith.constant 0 : i32
    return %c0_i32, %c0_i32_0, %c0_i32_1 : i32, i32, i32
  }
  func.func @transform_7(%arg0: i32) -> (i32, i32) {
    %c0_i32 = arith.constant 0 : i32
    %c0_i32_0 = arith.constant 0 : i32
    %c0_i32_1 = arith.constant 0 : i32
    return %c0_i32, %c0_i32_0 : i32, i32
  }
  func.func @transform_8(%arg0: i32) -> (i32, i32) {
    %c0_i32 = arith.constant 0 : i32
    %c0_i32_0 = arith.constant 0 : i32
    %c0_i32_1 = arith.constant 0 : i32
    return %c0_i32, %c0_i32_0 : i32, i32
  }
  func.func @transform_9(%arg0: i32) -> (i32, i32) {
    %c0_i32 = arith.constant 0 : i32
    %c0_i32_0 = arith.constant 0 : i32
    %c0_i32_1 = arith.constant 0 : i32
    return %c0_i32, %c0_i32_0 : i32, i32
  }
  func.func @transform_10(%arg0: i32) -> (i32, i32) {
    %c0_i32 = arith.constant 0 : i32
    %c0_i32_0 = arith.constant 0 : i32
    %c0_i32_1 = arith.constant 0 : i32
    return %c0_i32, %c0_i32_0 : i32, i32
  }
  func.func @transform_11(%arg0: i32) -> (i32, i32, i32) {
    %c0_i32 = arith.constant 0 : i32
    %c0_i32_0 = arith.constant 0 : i32
    %c0_i32_1 = arith.constant 0 : i32
    return %arg0, %c0_i32, %c0_i32_0 : i32, i32, i32
  }
}

</mosaic_0001>

<llo_original>
// kernel: tpu_custom_call.1
$region0: #{tpu_custom_call.1}
  #allocation0 [shape = 'u32[]', space=smem, size = 0x4, offset = 0x4, fixed_abs, tag = 'smem constant byte address 0x4 - core index']
  #allocation1 [shape = 'u32[72,128]{1,0:T(1,128)}', space=vmem, size = 0x9000, scoped, tag = 'internal scratch']
  %s0 = inlined_call_operand.vmem [shape: f32[4,4,64], index: 0, kind: input, shape index: {}]
  %s1 = inlined_call_operand.vmem [shape: f32[4,32], index: 1, kind: input, shape index: {}]
  %s2 = inlined_call_operand.vmem [shape: f32[1,32], index: 2, kind: input, shape index: {}]
  %s3 = inlined_call_operand.vmem [shape: f32[4,96,64], index: 3, kind: input, shape index: {}]
  %s4 = inlined_call_operand.vmem [shape: f32[4,1,64], index: 4, kind: input, shape index: {}]
  %s5 = inlined_call_operand.vmem [shape: f32[4,32,64], index: 5, kind: input, shape index: {}]
  %s6 = inlined_call_operand.vmem [shape: f32[4,1,64], index: 6, kind: input, shape index: {}]
  %s7 = inlined_call_operand.vmem [shape: f32[32,32], index: 7, kind: input, shape index: {}]
  %s8 = inlined_call_operand.vmem [shape: f32[1,32], index: 8, kind: input, shape index: {}]
  %s9 = inlined_call_operand.vmem [shape: f32[32,4], index: 9, kind: input, shape index: {}]
  %s10 = inlined_call_operand.vmem [shape: f32[1,4], index: 10, kind: input, shape index: {}]
  %s11 = inlined_call_operand.hbm [shape: f32[4,4,64], index: 11, kind: output, shape index: {}]
  %s12 = sld [smem:[#allocation0]]
  $region77: #{tpu_custom_call.1} parent=0
    _
  %s14 = ssub.s32 1, %s12
  %s15 = scalar_select 0, %s14, %s12
  $region1: #{tpu_custom_call.1} parent=0
    #allocation2 [shape = 'u8[8192]{0}', space=vmem, size = 0x2000, scoped, tag = 'output window, operand 0']
    #allocation3 [shape = 's32[2]{0}', space=sflag, size = 0x8, scoped, tag = 'scoped memory for tpu_custom_call.1']
    %16 = vsyncpa [#allocation3], 0
    %s17 = scalar_lea.sflag [#allocation3], 1
    %18 = vsyncpa %s17, 0
    loop: start=0, step=1, limit=4
    $region2: #{tpu_custom_call.1} parent=1 // loop_pre_header
      _
    $region3: #{tpu_custom_call.1} parent=1 // loop_header
      %s20 = sphi 0, %s24
      %p21 = scmp.ge.s32.totalorder %s20, 4
      %s30 = sphi 0, %s32
      %s33 = sphi 0, %s30
      %s34 = sphi 0, %s33
      %s50 = sphi 0, %s34
      %s54 = sphi 0, %s54
      %s56 = sphi 0, %s54
      %s57 = sphi 0, %s56
      %s71 = sphi 0, %s57
      %s75 = sphi 0, %s75
      %s77 = sphi 0, %s75
      %s78 = sphi 0, %s77
      %s92 = sphi 0, %s78
      %s96 = sphi 0, %s96
      %s98 = sphi 0, %s96
      %s99 = sphi 0, %s98
      %s113 = sphi 0, %s99
      %s117 = sphi 0, %s117
      %s119 = sphi 0, %s117
      %s120 = sphi 0, %s119
      %s134 = sphi 0, %s120
      %s138 = sphi 0, %s138
      %s140 = sphi 0, %s138
      %s141 = sphi 0, %s140
      %s155 = sphi 0, %s141
      %s159 = sphi 0, %s159
      %s161 = sphi 0, %s159
      %s162 = sphi 0, %s161
      %s176 = sphi 0, %s162
      %s180 = sphi 0, %s180
      %s182 = sphi 0, %s180
      %s183 = sphi 0, %s182
      %s197 = sphi 0, %s183
      %s201 = sphi 0, %s201
      %s203 = sphi 0, %s201
      %s204 = sphi 0, %s203
      %s218 = sphi 0, %s204
      %s222 = sphi 0, %s222
      %s224 = sphi 0, %s222
      %s225 = sphi 0, %s224
      %s239 = sphi 0, %s225
      %s243 = sphi 0, %s243
      %s245 = sphi 0, %s243
      %s246 = sphi 0, %s245
      %s260 = sphi 0, %s246
      %s266 = sphi 0, %s268
      %s269 = sphi 0, %s266
      %s270 = sphi 0, %s269
      %s286 = sphi 0, %s270
    $region4: #{tpu_custom_call.1} parent=1 // loop_header_branch
      %23 = sbr.rel (%p21) target = $region8
    $region5: #{tpu_custom_call.1} parent=1 // loop_body
      %s25 = ssub.s32 %s20, 1
      %s26 = ssub.s32 %s20, 2
      %s27 = sadd.s32 %s20, 1
      %s28 = ssub.s32 %s20, %s27
      %p29 = scmp.eq.s32.totalorder %s28, 0
      %s31 = sadd.s32 %s30, 1
      %s32 = scalar_select %p29, %s30, %s31
      %p35 = pneg %p29
      %p36 = scmp.eq.s32.totalorder %s20, 1
      %p37 = por %p35, %p36
      %p38 = scmp.ne.s32.totalorder %s30, %s33
      %p39 = scmp.eq.s32.totalorder %s20, 0
      %p40 = por %p38, %p39
      %p41 = scmp.ne.s32.totalorder %s30, %s33
      %p42 = scmp.eq.s32.totalorder %s25, 1
      %p43 = por %p41, %p42
      %p44 = scmp.ne.s32.totalorder %s33, %s34
      %p45 = scmp.eq.s32.totalorder %s25, 0
      %p46 = por %p44, %p45
      %p47 = scmp.ne.s32.totalorder %s33, %s34
      %p48 = scmp.eq.s32.totalorder %s26, 1
      %p49 = por %p47, %p48
      %p51 = scmp.ne.s32.totalorder %s34, %s50
      %p52 = scmp.eq.s32.totalorder %s26, 0
      %p53 = por %p51, %p52
      %s55 = sadd.s32 %s54, 1
      %p58 = scmp.eq.s32.totalorder %s20, 1
      %p59 = scmp.ne.s32.totalorder %s54, %s56
      %p60 = scmp.eq.s32.totalorder %s20, 0
      %p61 = por %p59, %p60
      %p62 = scmp.ne.s32.totalorder %s54, %s56
      %p63 = scmp.eq.s32.totalorder %s25, 1
      %p64 = por %p62, %p63
      %p65 = scmp.ne.s32.totalorder %s56, %s57
      %p66 = scmp.eq.s32.totalorder %s25, 0
      %p67 = por %p65, %p66
      %p68 = scmp.ne.s32.totalorder %s56, %s57
      %p69 = scmp.eq.s32.totalorder %s26, 1
      %p70 = por %p68, %p69
      %p72 = scmp.ne.s32.totalorder %s57, %s71
      %p73 = scmp.eq.s32.totalorder %s26, 0
      %p74 = por %p72, %p73
      %s76 = sadd.s32 %s75, 1
      %p79 = scmp.eq.s32.totalorder %s20, 1
      %p80 = scmp.ne.s32.totalorder %s75, %s77
      %p81 = scmp.eq.s32.totalorder %s20, 0
      %p82 = por %p80, %p81
      %p83 = scmp.ne.s32.totalorder %s75, %s77
      %p84 = scmp.eq.s32.totalorder %s25, 1
      %p85 = por %p83, %p84
      %p86 = scmp.ne.s32.totalorder %s77, %s78
      %p87 = scmp.eq.s32.totalorder %s25, 0
      %p88 = por %p86, %p87
      %p89 = scmp.ne.s32.totalorder %s77, %s78
      %p90 = scmp.eq.s32.totalorder %s26, 1
      %p91 = por %p89, %p90
      %p93 = scmp.ne.s32.totalorder %s78, %s92
      %p94 = scmp.eq.s32.totalorder %s26, 0
      %p95 = por %p93, %p94
      %s97 = sadd.s32 %s96, 1
      %p100 = scmp.eq.s32.totalorder %s20, 1
      %p101 = scmp.ne.s32.totalorder %s96, %s98
      %p102 = scmp.eq.s32.totalorder %s20, 0
      %p103 = por %p101, %p102
      %p104 = scmp.ne.s32.totalorder %s96, %s98
      %p105 = scmp.eq.s32.totalorder %s25, 1
      %p106 = por %p104, %p105
      %p107 = scmp.ne.s32.totalorder %s98, %s99
      %p108 = scmp.eq.s32.totalorder %s25, 0
      %p109 = por %p107, %p108
      %p110 = scmp.ne.s32.totalorder %s98, %s99
      %p111 = scmp.eq.s32.totalorder %s26, 1
      %p112 = por %p110, %p111
      %p114 = scmp.ne.s32.totalorder %s99, %s113
      %p115 = scmp.eq.s32.totalorder %s26, 0
      %p116 = por %p114, %p115
      %s118 = sadd.s32 %s117, 1
      %p121 = scmp.eq.s32.totalorder %s20, 1
      %p122 = scmp.ne.s32.totalorder %s117, %s119
      %p123 = scmp.eq.s32.totalorder %s20, 0
      %p124 = por %p122, %p123
      %p125 = scmp.ne.s32.totalorder %s117, %s119
      %p126 = scmp.eq.s32.totalorder %s25, 1
      %p127 = por %p125, %p126
      %p128 = scmp.ne.s32.totalorder %s119, %s120
      %p129 = scmp.eq.s32.totalorder %s25, 0
      %p130 = por %p128, %p129
      %p131 = scmp.ne.s32.totalorder %s119, %s120
      %p132 = scmp.eq.s32.totalorder %s26, 1
      %p133 = por %p131, %p132
      %p135 = scmp.ne.s32.totalorder %s120, %s134
      %p136 = scmp.eq.s32.totalorder %s26, 0
      %p137 = por %p135, %p136
      %s139 = sadd.s32 %s138, 1
      %p142 = scmp.eq.s32.totalorder %s20, 1
      %p143 = scmp.ne.s32.totalorder %s138, %s140
      %p144 = scmp.eq.s32.totalorder %s20, 0
      %p145 = por %p143, %p144
      %p146 = scmp.ne.s32.totalorder %s138, %s140
      %p147 = scmp.eq.s32.totalorder %s25, 1
      %p148 = por %p146, %p147
      %p149 = scmp.ne.s32.totalorder %s140, %s141
      %p150 = scmp.eq.s32.totalorder %s25, 0
      %p151 = por %p149, %p150
      %p152 = scmp.ne.s32.totalorder %s140, %s141
      %p153 = scmp.eq.s32.totalorder %s26, 1
      %p154 = por %p152, %p153
      %p156 = scmp.ne.s32.totalorder %s141, %s155
      %p157 = scmp.eq.s32.totalorder %s26, 0
      %p158 = por %p156, %p157
      %s160 = sadd.s32 %s159, 1
      %p163 = scmp.eq.s32.totalorder %s20, 1
      %p164 = scmp.ne.s32.totalorder %s159, %s161
      %p165 = scmp.eq.s32.totalorder %s20, 0
      %p166 = por %p164, %p165
      %p167 = scmp.ne.s32.totalorder %s159, %s161
      %p168 = scmp.eq.s32.totalorder %s25, 1
      %p169 = por %p167, %p168
      %p170 = scmp.ne.s32.totalorder %s161, %s162
      %p171 = scmp.eq.s32.totalorder %s25, 0
      %p172 = por %p170, %p171
      %p173 = scmp.ne.s32.totalorder %s161, %s162
      %p174 = scmp.eq.s32.totalorder %s26, 1
      %p175 = por %p173, %p174
      %p177 = scmp.ne.s32.totalorder %s162, %s176
      %p178 = scmp.eq.s32.totalorder %s26, 0
      %p179 = por %p177, %p178
      %s181 = sadd.s32 %s180, 1
      %p184 = scmp.eq.s32.totalorder %s20, 1
      %p185 = scmp.ne.s32.totalorder %s180, %s182
      %p186 = scmp.eq.s32.totalorder %s20, 0
      %p187 = por %p185, %p186
      %p188 = scmp.ne.s32.totalorder %s180, %s182
      %p189 = scmp.eq.s32.totalorder %s25, 1
      %p190 = por %p188, %p189
      %p191 = scmp.ne.s32.totalorder %s182, %s183
      %p192 = scmp.eq.s32.totalorder %s25, 0
      %p193 = por %p191, %p192
      %p194 = scmp.ne.s32.totalorder %s182, %s183
      %p195 = scmp.eq.s32.totalorder %s26, 1
      %p196 = por %p194, %p195
      %p198 = scmp.ne.s32.totalorder %s183, %s197
      %p199 = scmp.eq.s32.totalorder %s26, 0
      %p200 = por %p198, %p199
      %s202 = sadd.s32 %s201, 1
      %p205 = scmp.eq.s32.totalorder %s20, 1
      %p206 = scmp.ne.s32.totalorder %s201, %s203
      %p207 = scmp.eq.s32.totalorder %s20, 0
      %p208 = por %p206, %p207
      %p209 = scmp.ne.s32.totalorder %s201, %s203
      %p210 = scmp.eq.s32.totalorder %s25, 1
      %p211 = por %p209, %p210
      %p212 = scmp.ne.s32.totalorder %s203, %s204
      %p213 = scmp.eq.s32.totalorder %s25, 0
      %p214 = por %p212, %p213
      %p215 = scmp.ne.s32.totalorder %s203, %s204
      %p216 = scmp.eq.s32.totalorder %s26, 1
      %p217 = por %p215, %p216
      %p219 = scmp.ne.s32.totalorder %s204, %s218
      %p220 = scmp.eq.s32.totalorder %s26, 0
      %p221 = por %p219, %p220
      %s223 = sadd.s32 %s222, 1
      %p226 = scmp.eq.s32.totalorder %s20, 1
      %p227 = scmp.ne.s32.totalorder %s222, %s224
      %p228 = scmp.eq.s32.totalorder %s20, 0
      %p229 = por %p227, %p228
      %p230 = scmp.ne.s32.totalorder %s222, %s224
      %p231 = scmp.eq.s32.totalorder %s25, 1
      %p232 = por %p230, %p231
      %p233 = scmp.ne.s32.totalorder %s224, %s225
      %p234 = scmp.eq.s32.totalorder %s25, 0
      %p235 = por %p233, %p234
      %p236 = scmp.ne.s32.totalorder %s224, %s225
      %p237 = scmp.eq.s32.totalorder %s26, 1
      %p238 = por %p236, %p237
      %p240 = scmp.ne.s32.totalorder %s225, %s239
      %p241 = scmp.eq.s32.totalorder %s26, 0
      %p242 = por %p240, %p241
      %s244 = sadd.s32 %s243, 1
      %p247 = scmp.eq.s32.totalorder %s20, 1
      %p248 = scmp.ne.s32.totalorder %s243, %s245
      %p249 = scmp.eq.s32.totalorder %s20, 0
      %p250 = por %p248, %p249
      %p251 = scmp.ne.s32.totalorder %s243, %s245
      %p252 = scmp.eq.s32.totalorder %s25, 1
      %p253 = por %p251, %p252
      %p254 = scmp.ne.s32.totalorder %s245, %s246
      %p255 = scmp.eq.s32.totalorder %s25, 0
      %p256 = por %p254, %p255
      %p257 = scmp.ne.s32.totalorder %s245, %s246
      %p258 = scmp.eq.s32.totalorder %s26, 1
      %p259 = por %p257, %p258
      %p261 = scmp.ne.s32.totalorder %s246, %s260
      %p262 = scmp.eq.s32.totalorder %s26, 0
      %p263 = por %p261, %p262
      %s264 = ssub.s32 %s20, %s27
      %p265 = scmp.eq.s32.totalorder %s264, 0
      %s267 = sadd.s32 %s266, 1
      %s268 = scalar_select %p265, %s266, %s267
      %p271 = pneg %p265
      %p272 = scmp.eq.s32.totalorder %s20, 1
      %p273 = por %p271, %p272
      %p274 = scmp.ne.s32.totalorder %s266, %s269
      %p275 = scmp.eq.s32.totalorder %s20, 0
      %p276 = por %p274, %p275
      %p277 = scmp.ne.s32.totalorder %s266, %s269
      %p278 = scmp.eq.s32.totalorder %s25, 1
      %p279 = por %p277, %p278
      %p280 = scmp.ne.s32.totalorder %s269, %s270
      %p281 = scmp.eq.s32.totalorder %s25, 0
      %p282 = por %p280, %p281
      %p283 = scmp.ne.s32.totalorder %s269, %s270
      %p284 = scmp.eq.s32.totalorder %s26, 1
      %p285 = por %p283, %p284
      %p287 = scmp.ne.s32.totalorder %s270, %s286
      %p288 = scmp.eq.s32.totalorder %s26, 0
      %p289 = por %p287, %p288
      %p290 = scmp.le.s32.totalorder 1, %s20
      %p291 = scmp.lt.s32.totalorder %s20, 3
      %p292 = pnand %p290, %p291
      %p293 = pneg %p292
      // Predicated region
      $region9: #{tpu_custom_call.1} parent=5 // pred_check
        _
      $region10: #{tpu_custom_call.1} parent=5 // pred_check_branch
        %295 = sbr.rel (%p292) target = $region12
      $region11: #{tpu_custom_call.1} parent=5 // pred_region
        %s296 = ssub.s32 %s20, 1
        // Predicated region
        $region13: #{tpu_custom_call.1} parent=11 // pred_check
          %p297 = pneg %p67
        $region14: #{tpu_custom_call.1} parent=11 // pred_check_branch
          %299 = sbr.rel (%p297) target = $region16
        $region15: #{tpu_custom_call.1} parent=11 // pred_region
          _
        $region16: #{tpu_custom_call.1} parent=11 // pred_fallthru
          _
        // Predicated region
        $region17: #{tpu_custom_call.1} parent=11 // pred_check
          %p300 = pneg %p88
        $region18: #{tpu_custom_call.1} parent=11 // pred_check_branch
          %302 = sbr.rel (%p300) target = $region20
        $region19: #{tpu_custom_call.1} parent=11 // pred_region
          _
        $region20: #{tpu_custom_call.1} parent=11 // pred_fallthru
          _
        // Predicated region
        $region21: #{tpu_custom_call.1} parent=11 // pred_check
          %p303 = pneg %p109
        $region22: #{tpu_custom_call.1} parent=11 // pred_check_branch
          %305 = sbr.rel (%p303) target = $region24
        $region23: #{tpu_custom_call.1} parent=11 // pred_region
          _
        $region24: #{tpu_custom_call.1} parent=11 // pred_fallthru
          _
        // Predicated region
        $region25: #{tpu_custom_call.1} parent=11 // pred_check
          %p306 = pneg %p130
        $region26: #{tpu_custom_call.1} parent=11 // pred_check_branch
          %308 = sbr.rel (%p306) target = $region28
        $region27: #{tpu_custom_call.1} parent=11 // pred_region
          _
        $region28: #{tpu_custom_call.1} parent=11 // pred_fallthru
          _
        // Predicated region
        $region29: #{tpu_custom_call.1} parent=11 // pred_check
          %p309 = pneg %p151
        $region30: #{tpu_custom_call.1} parent=11 // pred_check_branch
          %311 = sbr.rel (%p309) target = $region32
        $region31: #{tpu_custom_call.1} parent=11 // pred_region
          _
        $region32: #{tpu_custom_call.1} parent=11 // pred_fallthru
          _
        // Predicated region
        $region33: #{tpu_custom_call.1} parent=11 // pred_check
          %p312 = pneg %p172
        $region34: #{tpu_custom_call.1} parent=11 // pred_check_branch
          %314 = sbr.rel (%p312) target = $region36
        $region35: #{tpu_custom_call.1} parent=11 // pred_region
          _
        $region36: #{tpu_custom_call.1} parent=11 // pred_fallthru
          _
        // Predicated region
        $region37: #{tpu_custom_call.1} parent=11 // pred_check
          %p315 = pneg %p193
        $region38: #{tpu_custom_call.1} parent=11 // pred_check_branch
          %317 = sbr.rel (%p315) target = $region40
        $region39: #{tpu_custom_call.1} parent=11 // pred_region
          _
        $region40: #{tpu_custom_call.1} parent=11 // pred_fallthru
          _
        // Predicated region
        $region41: #{tpu_custom_call.1} parent=11 // pred_check
          %p318 = pneg %p214
        $region42: #{tpu_custom_call.1} parent=11 // pred_check_branch
          %320 = sbr.rel (%p318) target = $region44
        $region43: #{tpu_custom_call.1} parent=11 // pred_region
          _
        $region44: #{tpu_custom_call.1} parent=11 // pred_fallthru
          _
        // Predicated region
        $region45: #{tpu_custom_call.1} parent=11 // pred_check
          %p321 = pneg %p235
        $region46: #{tpu_custom_call.1} parent=11 // pred_check_branch
          %323 = sbr.rel (%p321) target = $region48
        $region47: #{tpu_custom_call.1} parent=11 // pred_region
          _
        $region48: #{tpu_custom_call.1} parent=11 // pred_fallthru
          _
        // Predicated region
        $region49: #{tpu_custom_call.1} parent=11 // pred_check
          %p324 = pneg %p256
        $region50: #{tpu_custom_call.1} parent=11 // pred_check_branch
          %326 = sbr.rel (%p324) target = $region52
        $region51: #{tpu_custom_call.1} parent=11 // pred_region
          _
        $region52: #{tpu_custom_call.1} parent=11 // pred_fallthru
          _
      $region12: #{tpu_custom_call.1} parent=5 // pred_fallthru
        _
      %p327 = scmp.lt.s32.totalorder %s20, 2
      // Predicated region
      $region53: #{tpu_custom_call.1} parent=5 // pred_check
        %p328 = pneg %p327
      $region54: #{tpu_custom_call.1} parent=5 // pred_check_branch
        %330 = sbr.rel (%p328) target = $region56
      $region55: #{tpu_custom_call.1} parent=5 // pred_region
        // Predicated region
        $region57: #{tpu_custom_call.1} parent=55 // pred_check
          %p331 = pneg %p40
        $region58: #{tpu_custom_call.1} parent=55 // pred_check_branch
          %333 = sbr.rel (%p331) target = $region60
        $region59: #{tpu_custom_call.1} parent=55 // pred_region
          %s334 = smul.u32 2, %s20
          %p335 = scmp.lt.s32.totalorder %s334, 3
          %s336 = scalar_select %p335, %s334, 3
          %s337 = smul.addr %s336, 4
          %s338 = scalar_lea.vmem %s0, %s337
          %s339 = smul.u32 2, %s20
        $region60: #{tpu_custom_call.1} parent=55 // pred_fallthru
          _
      $region56: #{tpu_custom_call.1} parent=5 // pred_fallthru
        _
      %p340 = scmp.le.s32.totalorder 1, %s20
      %p341 = scmp.lt.s32.totalorder %s20, 3
      %p342 = pnand %p340, %p341
      %p343 = pneg %p342
      // Predicated region
      $region61: #{tpu_custom_call.1} parent=5 // pred_check
        _
      $region62: #{tpu_custom_call.1} parent=5 // pred_check_branch
        %345 = sbr.rel (%p342) target = $region64
      $region63: #{tpu_custom_call.1} parent=5 // pred_region
        %s346 = ssub.s32 %s20, 1
        %s347 = smul.u32 2, %s25
        %p348 = scmp.lt.s32.totalorder %s347, 3
        %s349 = scalar_select %p348, %s347, 3
        %s350 = smul.addr %s349, 4
        %s351 = scalar_lea.vmem %s0, %s350
        %p352 = pneg %p46
        %p353 = pneg %p43
        %p354 = pneg %p67
        %p355 = pneg %p64
        %p356 = pneg %p88
        %p357 = pneg %p85
        %p358 = pneg %p109
        %p359 = pneg %p106
        %p360 = pneg %p130
        %p361 = pneg %p127
        %p362 = pneg %p151
        %p363 = pneg %p148
        %p364 = pneg %p172
        %p365 = pneg %p169
        %p366 = pneg %p193
        %p367 = pneg %p190
        %p368 = pneg %p214
        %p369 = pneg %p211
        %p370 = pneg %p235
        %p371 = pneg %p232
        %p372 = pneg %p256
        %p373 = pneg %p253
        %p374 = pneg %p282
        %p375 = pneg %p279
        %s376 = sand.u32 %s269, 1
        %s377 = scalar_lea.sflag [#allocation3], %s376
        %s378 = sand.u32 %s269, 1
        %s379 = smul.addr %s378, 8
        %s380 = scalar_lea.vmem [#allocation2], %s379
        %s381 = smul.u32 2, %s25
        %p382 = scmp.lt.s32.totalorder %s381, 3
        %s383 = scalar_select %p382, %s381, 3
        %s384 = smul.addr %s383, 4
        %s385 = scalar_lea.vmem %s0, %s384
        %s386 = smul.u32 2, %s25
        %s387 = smul.u32 2, %s25
        %v388 = vld [vmem:[%s385] sm:$0xf]
        %389 = vxpose.xlu0.b32.start [1/16] %v388, 128
        %390 = vxpose.xlu0.b32.cont [2/16] 0.0, 128
        %391 = vxpose.xlu0.b32.cont [3/16] 0.0, 128
        %392 = vxpose.xlu0.b32.cont [4/16] 0.0, 128
        %393 = vxpose.xlu0.b32.cont [5/16] 0.0, 128
        %394 = vxpose.xlu0.b32.cont [6/16] 0.0, 128
        %395 = vxpose.xlu0.b32.cont [7/16] 0.0, 128
        %396 = vxpose.xlu0.b32.cont [8/16] 0.0, 128
        %397 = vxpose.xlu0.b32.cont [9/16] 0.0, 128
        %398 = vxpose.xlu0.b32.cont [10/16] 0.0, 128
        %399 = vxpose.xlu0.b32.cont [11/16] 0.0, 128
        %400 = vxpose.xlu0.b32.cont [12/16] 0.0, 128
        %401 = vxpose.xlu0.b32.cont [13/16] 0.0, 128
        %402 = vxpose.xlu0.b32.cont [14/16] 0.0, 128
        %403 = vxpose.xlu0.b32.cont [15/16] 0.0, 128
        %404 = vxpose.xlu0.b32.end [16/16] 0.0, 128
        %v405 = vpop.trf.xlu0
        %v406 = vpop.trf.xlu0
        %v407 = vpop.trf.xlu0
        %v408 = vpop.trf.xlu0
        %v409 = vpop.trf.xlu0
        %v410 = vpop.trf.xlu0
        %v411 = vpop.trf.xlu0
        %v412 = vpop.trf.xlu0
        %v413 = vpop.trf.xlu0
        %v414 = vpop.trf.xlu0
        %v415 = vpop.trf.xlu0
        %v416 = vpop.trf.xlu0
        %v417 = vpop.trf.xlu0
        %v418 = vpop.trf.xlu0
        %v419 = vpop.trf.xlu0
        %v420 = vpop.trf.xlu0
        %s421 = scalar_lea.vmem %s385, 4
        %v422 = vld [vmem:[%s421] sm:$0xf]
        %423 = vxpose.xlu0.b32.start [1/16] %v422, 128
        %424 = vxpose.xlu0.b32.cont [2/16] 0.0, 128
        %425 = vxpose.xlu0.b32.cont [3/16] 0.0, 128
        %426 = vxpose.xlu0.b32.cont [4/16] 0.0, 128
        %427 = vxpose.xlu0.b32.cont [5/16] 0.0, 128
        %428 = vxpose.xlu0.b32.cont [6/16] 0.0, 128
        %429 = vxpose.xlu0.b32.cont [7/16] 0.0, 128
        %430 = vxpose.xlu0.b32.cont [8/16] 0.0, 128
        %431 = vxpose.xlu0.b32.cont [9/16] 0.0, 128
        %432 = vxpose.xlu0.b32.cont [10/16] 0.0, 128
        %433 = vxpose.xlu0.b32.cont [11/16] 0.0, 128
        %434 = vxpose.xlu0.b32.cont [12/16] 0.0, 128
        %435 = vxpose.xlu0.b32.cont [13/16] 0.0, 128
        %436 = vxpose.xlu0.b32.cont [14/16] 0.0, 128
        %437 = vxpose.xlu0.b32.cont [15/16] 0.0, 128
        %438 = vxpose.xlu0.b32.end [16/16] 0.0, 128
        %v439 = vpop.trf.xlu0
        %v440 = vpop.trf.xlu0
        %v441 = vpop.trf.xlu0
        %v442 = vpop.trf.xlu0
        %v443 = vpop.trf.xlu0
        %v444 = vpop.trf.xlu0
        %v445 = vpop.trf.xlu0
        %v446 = vpop.trf.xlu0
        %v447 = vpop.trf.xlu0
        %v448 = vpop.trf.xlu0
        %v449 = vpop.trf.xlu0
        %v450 = vpop.trf.xlu0
        %v451 = vpop.trf.xlu0
        %v452 = vpop.trf.xlu0
        %v453 = vpop.trf.xlu0
        %v454 = vpop.trf.xlu0
        %v455 = vld [vmem:[%s1] sm:$0xf]
        %v456 = vld [vmem:[%s2] sm:$0x1]
        %v458 = vperm.slane %v456, 0
        %vm460 = vcmask 31744
        %v462 = vsel %vm460, %v405, 0
        %v465 = vsel %vm460, %v406, 0
        %v468 = vsel %vm460, %v407, 0
        %v471 = vsel %vm460, %v408, 0
        %v474 = vsel %vm460, %v409, 0
        %v477 = vsel %vm460, %v410, 0
        %v480 = vsel %vm460, %v411, 0
        %v483 = vsel %vm460, %v412, 0
        %v486 = vsel %vm460, %v439, 0
        %v489 = vsel %vm460, %v440, 0
        %v492 = vsel %vm460, %v441, 0
        %v495 = vsel %vm460, %v442, 0
        %v498 = vsel %vm460, %v443, 0
        %v501 = vsel %vm460, %v444, 0
        %v504 = vsel %vm460, %v445, 0
        %v507 = vsel %vm460, %v446, 0
        %vm509 = vcmask 1043456
        %v511 = vsel %vm509, %v455, 0
        %513 = vmatpush.msra.mxu0 0.0
        %514 = vmatpush.msra.mxu0 0.0
        %515 = vmatpush.msra.mxu0 0.0
        %516 = vmatpush.msra.mxu0 0.0
        %517 = vmatpush.msra.mxu0 0.0
        %518 = vmatpush.msra.mxu0 0.0
        %519 = vmatpush.msra.mxu0 0.0
        %520 = vmatpush.msra.mxu0 0.0
        %521 = vmatpush.msra.mxu0 0.0
        %522 = vmatpush.msra.mxu0 0.0
        %523 = vmatpush.msra.mxu0 0.0
        %524 = vmatpush.msra.mxu0 0.0
        %525 = vmatpush.msra.mxu0 0.0
        %526 = vmatpush.msra.mxu0 0.0
        %527 = vmatpush.msra.mxu0 0.0
        %528 = vmatpush.msra.mxu0 %v511
        %529 = vmatmul.f32.gmra.mxu0 %v462
        %v530 = vpop.f32.mrf.mxu0
        %v531 = vadd.f32 %v458, %v530
        %532 = vmatmul.f32.gmra.mxu0 %v465
        %v533 = vpop.f32.mrf.mxu0
        %v534 = vadd.f32 %v458, %v533
        %535 = vmatmul.f32.gmra.mxu0 %v468
        %v536 = vpop.f32.mrf.mxu0
        %v537 = vadd.f32 %v458, %v536
        %538 = vmatmul.f32.gmra.mxu0 %v471
        %v539 = vpop.f32.mrf.mxu0
        %v540 = vadd.f32 %v458, %v539
        %541 = vmatmul.f32.gmra.mxu0 %v474
        %v542 = vpop.f32.mrf.mxu0
        %v543 = vadd.f32 %v458, %v542
        %544 = vmatmul.f32.gmra.mxu0 %v477
        %v545 = vpop.f32.mrf.mxu0
        %v546 = vadd.f32 %v458, %v545
        %547 = vmatmul.f32.gmra.mxu0 %v480
        %v548 = vpop.f32.mrf.mxu0
        %v549 = vadd.f32 %v458, %v548
        %550 = vmatmul.f32.gmra.mxu0 %v483
        %v551 = vpop.f32.mrf.mxu0
        %v552 = vadd.f32 %v458, %v551
        %553 = vmatmul.f32.gmra.mxu0 %v486
        %v554 = vpop.f32.mrf.mxu0
        %v555 = vadd.f32 %v458, %v554
        %556 = vmatmul.f32.gmra.mxu0 %v489
        %v557 = vpop.f32.mrf.mxu0
        %v558 = vadd.f32 %v458, %v557
        %559 = vmatmul.f32.gmra.mxu0 %v492
        %v560 = vpop.f32.mrf.mxu0
        %v561 = vadd.f32 %v458, %v560
        %562 = vmatmul.f32.gmra.mxu0 %v495
        %v563 = vpop.f32.mrf.mxu0
        %v564 = vadd.f32 %v458, %v563
        %565 = vmatmul.f32.gmra.mxu0 %v498
        %v566 = vpop.f32.mrf.mxu0
        %v567 = vadd.f32 %v458, %v566
        %568 = vmatmul.f32.gmra.mxu0 %v501
        %v569 = vpop.f32.mrf.mxu0
        %v570 = vadd.f32 %v458, %v569
        %571 = vmatmul.f32.gmra.mxu0 %v504
        %v572 = vpop.f32.mrf.mxu0
        %v573 = vadd.f32 %v458, %v572
        %574 = vmatmul.f32.gmra.mxu0 %v507
        %v575 = vpop.f32.mrf.mxu0
        %v576 = vadd.f32 %v458, %v575
        %577 = vdwg.mxu0
        %v578 = vmax.f32 %v531, 0.0
        %v579 = vmax.f32 %v534, 0.0
        %v580 = vmax.f32 %v537, 0.0
        %v581 = vmax.f32 %v540, 0.0
        %v582 = vmax.f32 %v543, 0.0
        %v583 = vmax.f32 %v546, 0.0
        %v584 = vmax.f32 %v549, 0.0
        %v585 = vmax.f32 %v552, 0.0
        %v586 = vmax.f32 %v555, 0.0
        %v587 = vmax.f32 %v558, 0.0
        %v588 = vmax.f32 %v561, 0.0
        %v589 = vmax.f32 %v564, 0.0
        %v590 = vmax.f32 %v567, 0.0
        %v591 = vmax.f32 %v570, 0.0
        %v592 = vmax.f32 %v573, 0.0
        %v593 = vmax.f32 %v576, 0.0
        %v594 = vlaneseq
        %v595 = vshrl.u32 %v594, 7
        %v596 = vadd.s32 %v595, 8
        %v597 = vadd.s32 %v595, 16
        %v598 = vadd.s32 %v595, 24
        %v599 = vadd.s32 %v595, 32
        %v600 = vadd.s32 %v595, 40
        %v601 = vadd.s32 %v595, 48
        %v602 = vadd.s32 %v595, 56
        %vm603 = vcmp.ge.s32.totalorder %v595, 1
        %vm604 = vcmp.ge.s32.totalorder %v596, 1
        %vm605 = vcmp.ge.s32.totalorder %v597, 1
        %vm606 = vcmp.ge.s32.totalorder %v598, 1
        %vm607 = vcmp.ge.s32.totalorder %v599, 1
        %vm608 = vcmp.ge.s32.totalorder %v600, 1
        %vm609 = vcmp.ge.s32.totalorder %v601, 1
        %vm610 = vcmp.ge.s32.totalorder %v602, 1
        %vm611 = vcmp.ge.s32.totalorder %v595, 2
        %vm612 = vcmp.ge.s32.totalorder %v596, 2
        %vm613 = vcmp.ge.s32.totalorder %v597, 2
        %vm614 = vcmp.ge.s32.totalorder %v598, 2
        %vm615 = vcmp.ge.s32.totalorder %v599, 2
        %vm616 = vcmp.ge.s32.totalorder %v600, 2
        %vm617 = vcmp.ge.s32.totalorder %v601, 2
        %vm618 = vcmp.ge.s32.totalorder %v602, 2
        %vm619 = vcmp.lt.s32.totalorder %v595, 63
        %vm620 = vcmp.lt.s32.totalorder %v596, 63
        %vm621 = vcmp.lt.s32.totalorder %v597, 63
        %vm622 = vcmp.lt.s32.totalorder %v598, 63
        %vm623 = vcmp.lt.s32.totalorder %v599, 63
        %vm624 = vcmp.lt.s32.totalorder %v600, 63
        %vm625 = vcmp.lt.s32.totalorder %v601, 63
        %vm626 = vcmp.lt.s32.totalorder %v602, 63
        %vm627 = vcmp.lt.s32.totalorder %v595, 62
        %vm628 = vcmp.lt.s32.totalorder %v596, 62
        %vm629 = vcmp.lt.s32.totalorder %v597, 62
        %vm630 = vcmp.lt.s32.totalorder %v598, 62
        %vm631 = vcmp.lt.s32.totalorder %v599, 62
        %vm632 = vcmp.lt.s32.totalorder %v600, 62
        %vm633 = vcmp.lt.s32.totalorder %v601, 62
        %vm634 = vcmp.lt.s32.totalorder %v602, 62
        %v635 = vrot.slane %v578, 7
        %v636 = vrot.slane %v579, 7
        %v637 = vrot.slane %v580, 7
        %v638 = vrot.slane %v581, 7
        %v639 = vrot.slane %v582, 7
        %v640 = vrot.slane %v583, 7
        %v641 = vrot.slane %v584, 7
        %v642 = vrot.slane %v585, 7
        %v643 = vrot.slane %v586, 7
        %v644 = vrot.slane %v587, 7
        %v645 = vrot.slane %v588, 7
        %v646 = vrot.slane %v589, 7
        %v647 = vrot.slane %v590, 7
        %v648 = vrot.slane %v591, 7
        %v649 = vrot.slane %v592, 7
        %v650 = vrot.slane %v593, 7
        %vm651 = vcmp.lt.s32.totalorder %v595, 1
        %v652 = vsel %vm651, %v649, %v650
        %v653 = vsel %vm651, %v648, %v649
        %v654 = vsel %vm651, %v647, %v648
        %v655 = vsel %vm651, %v646, %v647
        %v656 = vsel %vm651, %v645, %v646
        %v657 = vsel %vm651, %v644, %v645
        %v658 = vsel %vm651, %v643, %v644
        %v659 = vsel %vm651, %v642, %v643
        %v660 = vsel %vm651, %v641, %v642
        %v661 = vsel %vm651, %v640, %v641
        %v662 = vsel %vm651, %v639, %v640
        %v663 = vsel %vm651, %v638, %v639
        %v664 = vsel %vm651, %v637, %v638
        %v665 = vsel %vm651, %v636, %v637
        %v666 = vsel %vm651, %v635, %v636
        %v667 = vsel %vm651, %v650, %v635
        %v668 = vsel %vm603, %v667, 0.0
        %v669 = vsel %vm604, %v666, 0.0
        %v670 = vsel %vm605, %v665, 0.0
        %v671 = vsel %vm606, %v664, 0.0
        %v672 = vsel %vm607, %v663, 0.0
        %v673 = vsel %vm608, %v662, 0.0
        %v674 = vsel %vm609, %v661, 0.0
        %v675 = vsel %vm610, %v660, 0.0
        %v676 = vsel %vm603, %v659, 0.0
        %v677 = vsel %vm604, %v658, 0.0
        %v678 = vsel %vm605, %v657, 0.0
        %v679 = vsel %vm606, %v656, 0.0
        %v680 = vsel %vm607, %v655, 0.0
        %v681 = vsel %vm608, %v654, 0.0
        %v682 = vsel %vm609, %v653, 0.0
        %v683 = vsel %vm610, %v652, 0.0
        %v684 = vrot.slane %v578, 1
        %v685 = vrot.slane %v579, 1
        %v686 = vrot.slane %v580, 1
        %v687 = vrot.slane %v581, 1
        %v688 = vrot.slane %v582, 1
        %v689 = vrot.slane %v583, 1
        %v690 = vrot.slane %v584, 1
        %v691 = vrot.slane %v585, 1
        %v692 = vrot.slane %v586, 1
        %v693 = vrot.slane %v587, 1
        %v694 = vrot.slane %v588, 1
        %v695 = vrot.slane %v589, 1
        %v696 = vrot.slane %v590, 1
        %v697 = vrot.slane %v591, 1
        %v698 = vrot.slane %v592, 1
        %v699 = vrot.slane %v593, 1
        %vm700 = vcmp.lt.s32.totalorder %v595, 7
        %v701 = vsel %vm700, %v698, %v699
        %v702 = vsel %vm700, %v697, %v698
        %v703 = vsel %vm700, %v696, %v697
        %v704 = vsel %vm700, %v695, %v696
        %v705 = vsel %vm700, %v694, %v695
        %v706 = vsel %vm700, %v693, %v694
        %v707 = vsel %vm700, %v692, %v693
        %v708 = vsel %vm700, %v691, %v692
        %v709 = vsel %vm700, %v690, %v691
        %v710 = vsel %vm700, %v689, %v690
        %v711 = vsel %vm700, %v688, %v689
        %v712 = vsel %vm700, %v687, %v688
        %v713 = vsel %vm700, %v686, %v687
        %v714 = vsel %vm700, %v685, %v686
        %v715 = vsel %vm700, %v684, %v685
        %v716 = vsel %vm700, %v699, %v684
        %v717 = vsel %vm619, %v715, 0.0
        %v718 = vsel %vm620, %v714, 0.0
        %v719 = vsel %vm621, %v713, 0.0
        %v720 = vsel %vm622, %v712, 0.0
        %v721 = vsel %vm623, %v711, 0.0
        %v722 = vsel %vm624, %v710, 0.0
        %v723 = vsel %vm625, %v709, 0.0
        %v724 = vsel %vm626, %v708, 0.0
        %v725 = vsel %vm619, %v707, 0.0
        %v726 = vsel %vm620, %v706, 0.0
        %v727 = vsel %vm621, %v705, 0.0
        %v728 = vsel %vm622, %v704, 0.0
        %v729 = vsel %vm623, %v703, 0.0
        %v730 = vsel %vm624, %v702, 0.0
        %v731 = vsel %vm625, %v701, 0.0
        %v732 = vsel %vm626, %v716, 0.0
        %749 = vrot.lane.b32.xlu0 %v578, 32
        %v750 = vpop.permute.xlu0 %749
        %751 = vrot.lane.b32.xlu0 %v579, 32
        %v752 = vpop.permute.xlu0 %751
        %753 = vrot.lane.b32.xlu0 %v580, 32
        %v754 = vpop.permute.xlu0 %753
        %755 = vrot.lane.b32.xlu0 %v581, 32
        %v756 = vpop.permute.xlu0 %755
        %757 = vrot.lane.b32.xlu0 %v582, 32
        %v758 = vpop.permute.xlu0 %757
        %759 = vrot.lane.b32.xlu0 %v583, 32
        %v760 = vpop.permute.xlu0 %759
        %761 = vrot.lane.b32.xlu0 %v584, 32
        %v762 = vpop.permute.xlu0 %761
        %763 = vrot.lane.b32.xlu0 %v585, 32
        %v764 = vpop.permute.xlu0 %763
        %765 = vrot.lane.b32.xlu0 %v586, 32
        %v766 = vpop.permute.xlu0 %765
        %767 = vrot.lane.b32.xlu0 %v587, 32
        %v768 = vpop.permute.xlu0 %767
        %769 = vrot.lane.b32.xlu0 %v588, 32
        %v770 = vpop.permute.xlu0 %769
        %771 = vrot.lane.b32.xlu0 %v589, 32
        %v772 = vpop.permute.xlu0 %771
        %773 = vrot.lane.b32.xlu0 %v590, 32
        %v774 = vpop.permute.xlu0 %773
        %775 = vrot.lane.b32.xlu0 %v591, 32
        %v776 = vpop.permute.xlu0 %775
        %777 = vrot.lane.b32.xlu0 %v592, 32
        %v778 = vpop.permute.xlu0 %777
        %779 = vrot.lane.b32.xlu0 %v593, 32
        %v780 = vpop.permute.xlu0 %779
        %813 = vrot.lane.b32.xlu0 %v717, 64
        %v814 = vpop.permute.xlu0 %813
        %815 = vrot.lane.b32.xlu0 %v718, 64
        %v816 = vpop.permute.xlu0 %815
        %817 = vrot.lane.b32.xlu0 %v719, 64
        %v818 = vpop.permute.xlu0 %817
        %819 = vrot.lane.b32.xlu0 %v720, 64
        %v820 = vpop.permute.xlu0 %819
        %821 = vrot.lane.b32.xlu0 %v721, 64
        %v822 = vpop.permute.xlu0 %821
        %823 = vrot.lane.b32.xlu0 %v722, 64
        %v824 = vpop.permute.xlu0 %823
        %825 = vrot.lane.b32.xlu0 %v723, 64
        %v826 = vpop.permute.xlu0 %825
        %827 = vrot.lane.b32.xlu0 %v724, 64
        %v828 = vpop.permute.xlu0 %827
        %829 = vrot.lane.b32.xlu0 %v725, 64
        %v830 = vpop.permute.xlu0 %829
        %831 = vrot.lane.b32.xlu0 %v726, 64
        %v832 = vpop.permute.xlu0 %831
        %833 = vrot.lane.b32.xlu0 %v727, 64
        %v834 = vpop.permute.xlu0 %833
        %835 = vrot.lane.b32.xlu0 %v728, 64
        %v836 = vpop.permute.xlu0 %835
        %837 = vrot.lane.b32.xlu0 %v729, 64
        %v838 = vpop.permute.xlu0 %837
        %839 = vrot.lane.b32.xlu0 %v730, 64
        %v840 = vpop.permute.xlu0 %839
        %841 = vrot.lane.b32.xlu0 %v731, 64
        %v842 = vpop.permute.xlu0 %841
        %843 = vrot.lane.b32.xlu0 %v732, 64
        %v844 = vpop.permute.xlu0 %843
        %vm861 = vcmask 261120
        %v862 = vsel %vm861, %v668, %v750
        %v863 = vsel %vm861, %v669, %v752
        %v864 = vsel %vm861, %v670, %v754
        %v865 = vsel %vm861, %v671, %v756
        %v866 = vsel %vm861, %v672, %v758
        %v867 = vsel %vm861, %v673, %v760
        %v868 = vsel %vm861, %v674, %v762
        %v869 = vsel %vm861, %v675, %v764
        %v870 = vsel %vm861, %v676, %v766
        %v871 = vsel %vm861, %v677, %v768
        %v872 = vsel %vm861, %v678, %v770
        %v873 = vsel %vm861, %v679, %v772
        %v874 = vsel %vm861, %v680, %v774
        %v875 = vsel %vm861, %v681, %v776
        %v876 = vsel %vm861, %v682, %v778
        %v877 = vsel %vm861, %v683, %v780
        %vm878 = vcmask 523264
        %v879 = vsel %vm878, %v862, %v814
        %v880 = vsel %vm878, %v863, %v816
        %v881 = vsel %vm878, %v864, %v818
        %v882 = vsel %vm878, %v865, %v820
        %v883 = vsel %vm878, %v866, %v822
        %v884 = vsel %vm878, %v867, %v824
        %v885 = vsel %vm878, %v868, %v826
        %v886 = vsel %vm878, %v869, %v828
        %v887 = vsel %vm878, %v870, %v830
        %v888 = vsel %vm878, %v871, %v832
        %v889 = vsel %vm878, %v872, %v834
        %v890 = vsel %vm878, %v873, %v836
        %v891 = vsel %vm878, %v874, %v838
        %v892 = vsel %vm878, %v875, %v840
        %v893 = vsel %vm878, %v876, %v842
        %v894 = vsel %vm878, %v877, %v844
        %v895 = vld [vmem:[%s3] sm:$0xff]
        %v896 = vld [vmem:[%s3 + $0x8] sm:$0xff]
        %v897 = vld [vmem:[%s3 + $0x10] sm:$0xff]
        %v898 = vld [vmem:[%s3 + $0x18] sm:$0xff]
        %v899 = vld [vmem:[%s3 + $0x20] sm:$0xff]
        %v900 = vld [vmem:[%s3 + $0x28] sm:$0xff]
        %v901 = vld [vmem:[%s3 + $0x30] sm:$0xff]
        %v902 = vld [vmem:[%s3 + $0x38] sm:$0xff]
        %v903 = vld [vmem:[%s3 + $0x40] sm:$0xff]
        %v904 = vld [vmem:[%s3 + $0x48] sm:$0xff]
        %v905 = vld [vmem:[%s3 + $0x50] sm:$0xff]
        %v906 = vld [vmem:[%s3 + $0x58] sm:$0xff]
        %v907 = vld [vmem:[%s4] sm:$0x1]
        %v909 = vperm.slane %v907, 0
        %vm911 = vcmask 785408
        %v913 = vsel %vm911, %v879, 0
        %v916 = vsel %vm911, %v880, 0
        %v919 = vsel %vm911, %v881, 0
        %v922 = vsel %vm911, %v882, 0
        %v925 = vsel %vm911, %v883, 0
        %v928 = vsel %vm911, %v884, 0
        %v931 = vsel %vm911, %v885, 0
        %v934 = vsel %vm911, %v886, 0
        %v937 = vsel %vm911, %v887, 0
        %v940 = vsel %vm911, %v888, 0
        %v943 = vsel %vm911, %v889, 0
        %v946 = vsel %vm911, %v890, 0
        %v949 = vsel %vm911, %v891, 0
        %v952 = vsel %vm911, %v892, 0
        %v955 = vsel %vm911, %v893, 0
        %v958 = vsel %vm911, %v894, 0
        %960 = vmatpush.msra.mxu0 0.0
        %961 = vmatpush.msra.mxu0 0.0
        %962 = vmatpush.msra.mxu0 0.0
        %963 = vmatpush.msra.mxu0 0.0
        %964 = vmatpush.msra.mxu0 %v906
        %965 = vmatpush.msra.mxu0 %v905
        %966 = vmatpush.msra.mxu0 %v904
        %967 = vmatpush.msra.mxu0 %v903
        %968 = vmatpush.msra.mxu0 %v902
        %969 = vmatpush.msra.mxu0 %v901
        %970 = vmatpush.msra.mxu0 %v900
        %971 = vmatpush.msra.mxu0 %v899
        %972 = vmatpush.msra.mxu0 %v898
        %973 = vmatpush.msra.mxu0 %v897
        %974 = vmatpush.msra.mxu0 %v896
        %975 = vmatpush.msra.mxu0 %v895
        %976 = vmatmul.f32.gmra.mxu0 %v913
        %v977 = vpop.f32.mrf.mxu0
        %v978 = vadd.f32 %v909, %v977
        %979 = vmatmul.f32.gmra.mxu0 %v916
        %v980 = vpop.f32.mrf.mxu0
        %v981 = vadd.f32 %v909, %v980
        %982 = vmatmul.f32.gmra.mxu0 %v919
        %v983 = vpop.f32.mrf.mxu0
        %v984 = vadd.f32 %v909, %v983
        %985 = vmatmul.f32.gmra.mxu0 %v922
        %v986 = vpop.f32.mrf.mxu0
        %v987 = vadd.f32 %v909, %v986
        %988 = vmatmul.f32.gmra.mxu0 %v925
        %v989 = vpop.f32.mrf.mxu0
        %v990 = vadd.f32 %v909, %v989
        %991 = vmatmul.f32.gmra.mxu0 %v928
        %v992 = vpop.f32.mrf.mxu0
        %v993 = vadd.f32 %v909, %v992
        %994 = vmatmul.f32.gmra.mxu0 %v931
        %v995 = vpop.f32.mrf.mxu0
        %v996 = vadd.f32 %v909, %v995
        %997 = vmatmul.f32.gmra.mxu0 %v934
        %v998 = vpop.f32.mrf.mxu0
        %v999 = vadd.f32 %v909, %v998
        %1000 = vmatmul.f32.gmra.mxu0 %v937
        %v1001 = vpop.f32.mrf.mxu0
        %v1002 = vadd.f32 %v909, %v1001
        %1003 = vmatmul.f32.gmra.mxu0 %v940
        %v1004 = vpop.f32.mrf.mxu0
        %v1005 = vadd.f32 %v909, %v1004
        %1006 = vmatmul.f32.gmra.mxu0 %v943
        %v1007 = vpop.f32.mrf.mxu0
        %v1008 = vadd.f32 %v909, %v1007
        %1009 = vmatmul.f32.gmra.mxu0 %v946
        %v1010 = vpop.f32.mrf.mxu0
        %v1011 = vadd.f32 %v909, %v1010
        %1012 = vmatmul.f32.gmra.mxu0 %v949
        %v1013 = vpop.f32.mrf.mxu0
        %v1014 = vadd.f32 %v909, %v1013
        %1015 = vmatmul.f32.gmra.mxu0 %v952
        %v1016 = vpop.f32.mrf.mxu0
        %v1017 = vadd.f32 %v909, %v1016
        %1018 = vmatmul.f32.gmra.mxu0 %v955
        %v1019 = vpop.f32.mrf.mxu0
        %v1020 = vadd.f32 %v909, %v1019
        %1021 = vmatmul.f32.gmra.mxu0 %v958
        %v1022 = vpop.f32.mrf.mxu0
        %v1023 = vadd.f32 %v909, %v1022
        %1024 = vdwg.mxu0
        %v1025 = vxor.u32 %v978, 2147483648
        %v1026 = vxor.u32 %v981, 2147483648
        %v1027 = vxor.u32 %v984, 2147483648
        %v1028 = vxor.u32 %v987, 2147483648
        %v1029 = vxor.u32 %v990, 2147483648
        %v1030 = vxor.u32 %v993, 2147483648
        %v1031 = vxor.u32 %v996, 2147483648
        %v1032 = vxor.u32 %v999, 2147483648
        %v1033 = vxor.u32 %v1002, 2147483648
        %v1034 = vxor.u32 %v1005, 2147483648
        %v1035 = vxor.u32 %v1008, 2147483648
        %v1036 = vxor.u32 %v1011, 2147483648
        %v1037 = vxor.u32 %v1014, 2147483648
        %v1038 = vxor.u32 %v1017, 2147483648
        %v1039 = vxor.u32 %v1020, 2147483648
        %v1040 = vxor.u32 %v1023, 2147483648
        %v1041 = vmul.f32 %v1025, 1.442695
        %v1042 = vpow.pop %v1041
        %v1043 = vmul.f32 %v1026, 1.442695
        %v1044 = vpow.pop %v1043
        %v1045 = vmul.f32 %v1027, 1.442695
        %v1046 = vpow.pop %v1045
        %v1047 = vmul.f32 %v1028, 1.442695
        %v1048 = vpow.pop %v1047
        %v1049 = vmul.f32 %v1029, 1.442695
        %v1050 = vpow.pop %v1049
        %v1051 = vmul.f32 %v1030, 1.442695
        %v1052 = vpow.pop %v1051
        %v1053 = vmul.f32 %v1031, 1.442695
        %v1054 = vpow.pop %v1053
        %v1055 = vmul.f32 %v1032, 1.442695
        %v1056 = vpow.pop %v1055
        %v1057 = vmul.f32 %v1033, 1.442695
        %v1058 = vpow.pop %v1057
        %v1059 = vmul.f32 %v1034, 1.442695
        %v1060 = vpow.pop %v1059
        %v1061 = vmul.f32 %v1035, 1.442695
        %v1062 = vpow.pop %v1061
        %v1063 = vmul.f32 %v1036, 1.442695
        %v1064 = vpow.pop %v1063
        %v1065 = vmul.f32 %v1037, 1.442695
        %v1066 = vpow.pop %v1065
        %v1067 = vmul.f32 %v1038, 1.442695
        %v1068 = vpow.pop %v1067
        %v1069 = vmul.f32 %v1039, 1.442695
        %v1070 = vpow.pop %v1069
        %v1071 = vmul.f32 %v1040, 1.442695
        %v1072 = vpow.pop %v1071
        %v1073 = vadd.f32 %v1042, 1.0
        %v1074 = vadd.f32 %v1044, 1.0
        %v1075 = vadd.f32 %v1046, 1.0
        %v1076 = vadd.f32 %v1048, 1.0
        %v1077 = vadd.f32 %v1050, 1.0
        %v1078 = vadd.f32 %v1052, 1.0
        %v1079 = vadd.f32 %v1054, 1.0
        %v1080 = vadd.f32 %v1056, 1.0
        %v1081 = vadd.f32 %v1058, 1.0
        %v1082 = vadd.f32 %v1060, 1.0
        %v1083 = vadd.f32 %v1062, 1.0
        %v1084 = vadd.f32 %v1064, 1.0
        %v1085 = vadd.f32 %v1066, 1.0
        %v1086 = vadd.f32 %v1068, 1.0
        %v1087 = vadd.f32 %v1070, 1.0
        %v1088 = vadd.f32 %v1072, 1.0
        %v1089 = vrcp.pop %v1073
        %v1090 = vmul.f32 %v1073, %v1089
        %v1091 = vsub.f32 1.0, %v1090
        %v1092 = vmul.f32 %v1089, %v1091
        %v1093 = vadd.f32 %v1089, %v1092
        %vm1094 = vweird.f32 %v1073
        %vm1095 = vweird.f32 %v1089
        %vm1096 = vmor %vm1094, %vm1095
        %v1097 = vsel %vm1096, %v1089, %v1093
        %v1098 = vand.u32 2147483647, %v1073
        %vm1099 = vcmp.eq.f32.partialorder %v1098, 8.507059e+37
        %v1100 = vand.u32 %v1073, 2147483648
        %v1101 = vor.u32 1.1754944e-38, %v1100
        %v1102 = vsel %vm1099, %v1101, %v1097
        %v1103 = vmul.f32 1.0, %v1102
        %v1104 = vrcp.pop %v1074
        %v1105 = vmul.f32 %v1074, %v1104
        %v1106 = vsub.f32 1.0, %v1105
        %v1107 = vmul.f32 %v1104, %v1106
        %v1108 = vadd.f32 %v1104, %v1107
        %vm1109 = vweird.f32 %v1074
        %vm1110 = vweird.f32 %v1104
        %vm1111 = vmor %vm1109, %vm1110
        %v1112 = vsel %vm1111, %v1104, %v1108
        %v1113 = vand.u32 2147483647, %v1074
        %vm1114 = vcmp.eq.f32.partialorder %v1113, 8.507059e+37
        %v1115 = vand.u32 %v1074, 2147483648
        %v1116 = vor.u32 1.1754944e-38, %v1115
        %v1117 = vsel %vm1114, %v1116, %v1112
        %v1118 = vmul.f32 1.0, %v1117
        %v1119 = vrcp.pop %v1075
        %v1120 = vmul.f32 %v1075, %v1119
        %v1121 = vsub.f32 1.0, %v1120
        %v1122 = vmul.f32 %v1119, %v1121
        %v1123 = vadd.f32 %v1119, %v1122
        %vm1124 = vweird.f32 %v1075
        %vm1125 = vweird.f32 %v1119
        %vm1126 = vmor %vm1124, %vm1125
        %v1127 = vsel %vm1126, %v1119, %v1123
        %v1128 = vand.u32 2147483647, %v1075
        %vm1129 = vcmp.eq.f32.partialorder %v1128, 8.507059e+37
        %v1130 = vand.u32 %v1075, 2147483648
        %v1131 = vor.u32 1.1754944e-38, %v1130
        %v1132 = vsel %vm1129, %v1131, %v1127
        %v1133 = vmul.f32 1.0, %v1132
        %v1134 = vrcp.pop %v1076
        %v1135 = vmul.f32 %v1076, %v1134
        %v1136 = vsub.f32 1.0, %v1135
        %v1137 = vmul.f32 %v1134, %v1136
        %v1138 = vadd.f32 %v1134, %v1137
        %vm1139 = vweird.f32 %v1076
        %vm1140 = vweird.f32 %v1134
        %vm1141 = vmor %vm1139, %vm1140
        %v1142 = vsel %vm1141, %v1134, %v1138
        %v1143 = vand.u32 2147483647, %v1076
        %vm1144 = vcmp.eq.f32.partialorder %v1143, 8.507059e+37
        %v1145 = vand.u32 %v1076, 2147483648
        %v1146 = vor.u32 1.1754944e-38, %v1145
        %v1147 = vsel %vm1144, %v1146, %v1142
        %v1148 = vmul.f32 1.0, %v1147
        %v1149 = vrcp.pop %v1077
        %v1150 = vmul.f32 %v1077, %v1149
        %v1151 = vsub.f32 1.0, %v1150
        %v1152 = vmul.f32 %v1149, %v1151
        %v1153 = vadd.f32 %v1149, %v1152
        %vm1154 = vweird.f32 %v1077
        %vm1155 = vweird.f32 %v1149
        %vm1156 = vmor %vm1154, %vm1155
        %v1157 = vsel %vm1156, %v1149, %v1153
        %v1158 = vand.u32 2147483647, %v1077
        %vm1159 = vcmp.eq.f32.partialorder %v1158, 8.507059e+37
        %v1160 = vand.u32 %v1077, 2147483648
        %v1161 = vor.u32 1.1754944e-38, %v1160
        %v1162 = vsel %vm1159, %v1161, %v1157
        %v1163 = vmul.f32 1.0, %v1162
        %v1164 = vrcp.pop %v1078
        %v1165 = vmul.f32 %v1078, %v1164
        %v1166 = vsub.f32 1.0, %v1165
        %v1167 = vmul.f32 %v1164, %v1166
        %v1168 = vadd.f32 %v1164, %v1167
        %vm1169 = vweird.f32 %v1078
        %vm1170 = vweird.f32 %v1164
        %vm1171 = vmor %vm1169, %vm1170
        %v1172 = vsel %vm1171, %v1164, %v1168
        %v1173 = vand.u32 2147483647, %v1078
        %vm1174 = vcmp.eq.f32.partialorder %v1173, 8.507059e+37
        %v1175 = vand.u32 %v1078, 2147483648
        %v1176 = vor.u32 1.1754944e-38, %v1175
        %v1177 = vsel %vm1174, %v1176, %v1172
        %v1178 = vmul.f32 1.0, %v1177
        %v1179 = vrcp.pop %v1079
        %v1180 = vmul.f32 %v1079, %v1179
        %v1181 = vsub.f32 1.0, %v1180
        %v1182 = vmul.f32 %v1179, %v1181
        %v1183 = vadd.f32 %v1179, %v1182
        %vm1184 = vweird.f32 %v1079
        %vm1185 = vweird.f32 %v1179
        %vm1186 = vmor %vm1184, %vm1185
        %v1187 = vsel %vm1186, %v1179, %v1183
        %v1188 = vand.u32 2147483647, %v1079
        %vm1189 = vcmp.eq.f32.partialorder %v1188, 8.507059e+37
        %v1190 = vand.u32 %v1079, 2147483648
        %v1191 = vor.u32 1.1754944e-38, %v1190
        %v1192 = vsel %vm1189, %v1191, %v1187
        %v1193 = vmul.f32 1.0, %v1192
        %v1194 = vrcp.pop %v1080
        %v1195 = vmul.f32 %v1080, %v1194
        %v1196 = vsub.f32 1.0, %v1195
        %v1197 = vmul.f32 %v1194, %v1196
        %v1198 = vadd.f32 %v1194, %v1197
        %vm1199 = vweird.f32 %v1080
        %vm1200 = vweird.f32 %v1194
        %vm1201 = vmor %vm1199, %vm1200
        %v1202 = vsel %vm1201, %v1194, %v1198
        %v1203 = vand.u32 2147483647, %v1080
        %vm1204 = vcmp.eq.f32.partialorder %v1203, 8.507059e+37
        %v1205 = vand.u32 %v1080, 2147483648
        %v1206 = vor.u32 1.1754944e-38, %v1205
        %v1207 = vsel %vm1204, %v1206, %v1202
        %v1208 = vmul.f32 1.0, %v1207
        %v1209 = vrcp.pop %v1081
        %v1210 = vmul.f32 %v1081, %v1209
        %v1211 = vsub.f32 1.0, %v1210
        %v1212 = vmul.f32 %v1209, %v1211
        %v1213 = vadd.f32 %v1209, %v1212
        %vm1214 = vweird.f32 %v1081
        %vm1215 = vweird.f32 %v1209
        %vm1216 = vmor %vm1214, %vm1215
        %v1217 = vsel %vm1216, %v1209, %v1213
        %v1218 = vand.u32 2147483647, %v1081
        %vm1219 = vcmp.eq.f32.partialorder %v1218, 8.507059e+37
        %v1220 = vand.u32 %v1081, 2147483648
        %v1221 = vor.u32 1.1754944e-38, %v1220
        %v1222 = vsel %vm1219, %v1221, %v1217
        %v1223 = vmul.f32 1.0, %v1222
        %v1224 = vrcp.pop %v1082
        %v1225 = vmul.f32 %v1082, %v1224
        %v1226 = vsub.f32 1.0, %v1225
        %v1227 = vmul.f32 %v1224, %v1226
        %v1228 = vadd.f32 %v1224, %v1227
        %vm1229 = vweird.f32 %v1082
        %vm1230 = vweird.f32 %v1224
        %vm1231 = vmor %vm1229, %vm1230
        %v1232 = vsel %vm1231, %v1224, %v1228
        %v1233 = vand.u32 2147483647, %v1082
        %vm1234 = vcmp.eq.f32.partialorder %v1233, 8.507059e+37
        %v1235 = vand.u32 %v1082, 2147483648
        %v1236 = vor.u32 1.1754944e-38, %v1235
        %v1237 = vsel %vm1234, %v1236, %v1232
        %v1238 = vmul.f32 1.0, %v1237
        %v1239 = vrcp.pop %v1083
        %v1240 = vmul.f32 %v1083, %v1239
        %v1241 = vsub.f32 1.0, %v1240
        %v1242 = vmul.f32 %v1239, %v1241
        %v1243 = vadd.f32 %v1239, %v1242
        %vm1244 = vweird.f32 %v1083
        %vm1245 = vweird.f32 %v1239
        %vm1246 = vmor %vm1244, %vm1245
        %v1247 = vsel %vm1246, %v1239, %v1243
        %v1248 = vand.u32 2147483647, %v1083
        %vm1249 = vcmp.eq.f32.partialorder %v1248, 8.507059e+37
        %v1250 = vand.u32 %v1083, 2147483648
        %v1251 = vor.u32 1.1754944e-38, %v1250
        %v1252 = vsel %vm1249, %v1251, %v1247
        %v1253 = vmul.f32 1.0, %v1252
        %v1254 = vrcp.pop %v1084
        %v1255 = vmul.f32 %v1084, %v1254
        %v1256 = vsub.f32 1.0, %v1255
        %v1257 = vmul.f32 %v1254, %v1256
        %v1258 = vadd.f32 %v1254, %v1257
        %vm1259 = vweird.f32 %v1084
        %vm1260 = vweird.f32 %v1254
        %vm1261 = vmor %vm1259, %vm1260
        %v1262 = vsel %vm1261, %v1254, %v1258
        %v1263 = vand.u32 2147483647, %v1084
        %vm1264 = vcmp.eq.f32.partialorder %v1263, 8.507059e+37
        %v1265 = vand.u32 %v1084, 2147483648
        %v1266 = vor.u32 1.1754944e-38, %v1265
        %v1267 = vsel %vm1264, %v1266, %v1262
        %v1268 = vmul.f32 1.0, %v1267
        %v1269 = vrcp.pop %v1085
        %v1270 = vmul.f32 %v1085, %v1269
        %v1271 = vsub.f32 1.0, %v1270
        %v1272 = vmul.f32 %v1269, %v1271
        %v1273 = vadd.f32 %v1269, %v1272
        %vm1274 = vweird.f32 %v1085
        %vm1275 = vweird.f32 %v1269
        %vm1276 = vmor %vm1274, %vm1275
        %v1277 = vsel %vm1276, %v1269, %v1273
        %v1278 = vand.u32 2147483647, %v1085
        %vm1279 = vcmp.eq.f32.partialorder %v1278, 8.507059e+37
        %v1280 = vand.u32 %v1085, 2147483648
        %v1281 = vor.u32 1.1754944e-38, %v1280
        %v1282 = vsel %vm1279, %v1281, %v1277
        %v1283 = vmul.f32 1.0, %v1282
        %v1284 = vrcp.pop %v1086
        %v1285 = vmul.f32 %v1086, %v1284
        %v1286 = vsub.f32 1.0, %v1285
        %v1287 = vmul.f32 %v1284, %v1286
        %v1288 = vadd.f32 %v1284, %v1287
        %vm1289 = vweird.f32 %v1086
        %vm1290 = vweird.f32 %v1284
        %vm1291 = vmor %vm1289, %vm1290
        %v1292 = vsel %vm1291, %v1284, %v1288
        %v1293 = vand.u32 2147483647, %v1086
        %vm1294 = vcmp.eq.f32.partialorder %v1293, 8.507059e+37
        %v1295 = vand.u32 %v1086, 2147483648
        %v1296 = vor.u32 1.1754944e-38, %v1295
        %v1297 = vsel %vm1294, %v1296, %v1292
        %v1298 = vmul.f32 1.0, %v1297
        %v1299 = vrcp.pop %v1087
        %v1300 = vmul.f32 %v1087, %v1299
        %v1301 = vsub.f32 1.0, %v1300
        %v1302 = vmul.f32 %v1299, %v1301
        %v1303 = vadd.f32 %v1299, %v1302
        %vm1304 = vweird.f32 %v1087
        %vm1305 = vweird.f32 %v1299
        %vm1306 = vmor %vm1304, %vm1305
        %v1307 = vsel %vm1306, %v1299, %v1303
        %v1308 = vand.u32 2147483647, %v1087
        %vm1309 = vcmp.eq.f32.partialorder %v1308, 8.507059e+37
        %v1310 = vand.u32 %v1087, 2147483648
        %v1311 = vor.u32 1.1754944e-38, %v1310
        %v1312 = vsel %vm1309, %v1311, %v1307
        %v1313 = vmul.f32 1.0, %v1312
        %v1314 = vrcp.pop %v1088
        %v1315 = vmul.f32 %v1088, %v1314
        %v1316 = vsub.f32 1.0, %v1315
        %v1317 = vmul.f32 %v1314, %v1316
        %v1318 = vadd.f32 %v1314, %v1317
        %vm1319 = vweird.f32 %v1088
        %vm1320 = vweird.f32 %v1314
        %vm1321 = vmor %vm1319, %vm1320
        %v1322 = vsel %vm1321, %v1314, %v1318
        %v1323 = vand.u32 2147483647, %v1088
        %vm1324 = vcmp.eq.f32.partialorder %v1323, 8.507059e+37
        %v1325 = vand.u32 %v1088, 2147483648
        %v1326 = vor.u32 1.1754944e-38, %v1325
        %v1327 = vsel %vm1324, %v1326, %v1322
        %v1328 = vmul.f32 1.0, %v1327
        %v1329 = vtanh.pop %v978
        %v1330 = vtanh.pop %v981
        %v1331 = vtanh.pop %v984
        %v1332 = vtanh.pop %v987
        %v1333 = vtanh.pop %v990
        %v1334 = vtanh.pop %v993
        %v1335 = vtanh.pop %v996
        %v1336 = vtanh.pop %v999
        %v1337 = vtanh.pop %v1002
        %v1338 = vtanh.pop %v1005
        %v1339 = vtanh.pop %v1008
        %v1340 = vtanh.pop %v1011
        %v1341 = vtanh.pop %v1014
        %v1342 = vtanh.pop %v1017
        %v1343 = vtanh.pop %v1020
        %v1344 = vtanh.pop %v1023
        %1361 = vrot.lane.b32.xlu0 %v1329, 96
        %v1362 = vpop.permute.xlu0 %1361
        %1363 = vrot.lane.b32.xlu0 %v1330, 96
        %v1364 = vpop.permute.xlu0 %1363
        %1365 = vrot.lane.b32.xlu0 %v1331, 96
        %v1366 = vpop.permute.xlu0 %1365
        %1367 = vrot.lane.b32.xlu0 %v1332, 96
        %v1368 = vpop.permute.xlu0 %1367
        %1369 = vrot.lane.b32.xlu0 %v1333, 96
        %v1370 = vpop.permute.xlu0 %1369
        %1371 = vrot.lane.b32.xlu0 %v1334, 96
        %v1372 = vpop.permute.xlu0 %1371
        %1373 = vrot.lane.b32.xlu0 %v1335, 96
        %v1374 = vpop.permute.xlu0 %1373
        %1375 = vrot.lane.b32.xlu0 %v1336, 96
        %v1376 = vpop.permute.xlu0 %1375
        %1377 = vrot.lane.b32.xlu0 %v1337, 96
        %v1378 = vpop.permute.xlu0 %1377
        %1379 = vrot.lane.b32.xlu0 %v1338, 96
        %v1380 = vpop.permute.xlu0 %1379
        %1381 = vrot.lane.b32.xlu0 %v1339, 96
        %v1382 = vpop.permute.xlu0 %1381
        %1383 = vrot.lane.b32.xlu0 %v1340, 96
        %v1384 = vpop.permute.xlu0 %1383
        %1385 = vrot.lane.b32.xlu0 %v1341, 96
        %v1386 = vpop.permute.xlu0 %1385
        %1387 = vrot.lane.b32.xlu0 %v1342, 96
        %v1388 = vpop.permute.xlu0 %1387
        %1389 = vrot.lane.b32.xlu0 %v1343, 96
        %v1390 = vpop.permute.xlu0 %1389
        %1391 = vrot.lane.b32.xlu0 %v1344, 96
        %v1392 = vpop.permute.xlu0 %1391
        %v1409 = vmul.f32 %v1103, %v1362
        %v1410 = vmul.f32 %v1118, %v1364
        %v1411 = vmul.f32 %v1133, %v1366
        %v1412 = vmul.f32 %v1148, %v1368
        %v1413 = vmul.f32 %v1163, %v1370
        %v1414 = vmul.f32 %v1178, %v1372
        %v1415 = vmul.f32 %v1193, %v1374
        %v1416 = vmul.f32 %v1208, %v1376
        %v1417 = vmul.f32 %v1223, %v1378
        %v1418 = vmul.f32 %v1238, %v1380
        %v1419 = vmul.f32 %v1253, %v1382
        %v1420 = vmul.f32 %v1268, %v1384
        %v1421 = vmul.f32 %v1283, %v1386
        %v1422 = vmul.f32 %v1298, %v1388
        %v1423 = vmul.f32 %v1313, %v1390
        %v1424 = vmul.f32 %v1328, %v1392
        %v1425 = vld [vmem:[%s5] sm:$0xff]
        %v1426 = vld [vmem:[%s5 + $0x8] sm:$0xff]
        %v1427 = vld [vmem:[%s5 + $0x10] sm:$0xff]
        %v1428 = vld [vmem:[%s5 + $0x18] sm:$0xff]
        %v1429 = vld [vmem:[%s6] sm:$0x1]
        %v1431 = vperm.slane %v1429, 0
        %v1434 = vsel %vm861, %v1409, 0
        %v1437 = vsel %vm861, %v1410, 0
        %v1440 = vsel %vm861, %v1411, 0
        %v1443 = vsel %vm861, %v1412, 0
        %v1446 = vsel %vm861, %v1413, 0
        %v1449 = vsel %vm861, %v1414, 0
        %v1452 = vsel %vm861, %v1415, 0
        %v1455 = vsel %vm861, %v1416, 0
        %v1458 = vsel %vm861, %v1417, 0
        %v1461 = vsel %vm861, %v1418, 0
        %v1464 = vsel %vm861, %v1419, 0
        %v1467 = vsel %vm861, %v1420, 0
        %v1470 = vsel %vm861, %v1421, 0
        %v1473 = vsel %vm861, %v1422, 0
        %v1476 = vsel %vm861, %v1423, 0
        %v1479 = vsel %vm861, %v1424, 0
        %1481 = vmatpush.msra.mxu0 0.0
        %1482 = vmatpush.msra.mxu0 0.0
        %1483 = vmatpush.msra.mxu0 0.0
        %1484 = vmatpush.msra.mxu0 0.0
        %1485 = vmatpush.msra.mxu0 0.0
        %1486 = vmatpush.msra.mxu0 0.0
        %1487 = vmatpush.msra.mxu0 0.0
        %1488 = vmatpush.msra.mxu0 0.0
        %1489 = vmatpush.msra.mxu0 0.0
        %1490 = vmatpush.msra.mxu0 0.0
        %1491 = vmatpush.msra.mxu0 0.0
        %1492 = vmatpush.msra.mxu0 0.0
        %1493 = vmatpush.msra.mxu0 %v1428
        %1494 = vmatpush.msra.mxu0 %v1427
        %1495 = vmatpush.msra.mxu0 %v1426
        %1496 = vmatpush.msra.mxu0 %v1425
        %1497 = vmatmul.f32.gmra.mxu0 %v1434
        %v1498 = vpop.f32.mrf.mxu0
        %v1499 = vadd.f32 %v1431, %v1498
        %1500 = vmatmul.f32.gmra.mxu0 %v1437
        %v1501 = vpop.f32.mrf.mxu0
        %v1502 = vadd.f32 %v1431, %v1501
        %1503 = vmatmul.f32.gmra.mxu0 %v1440
        %v1504 = vpop.f32.mrf.mxu0
        %v1505 = vadd.f32 %v1431, %v1504
        %1506 = vmatmul.f32.gmra.mxu0 %v1443
        %v1507 = vpop.f32.mrf.mxu0
        %v1508 = vadd.f32 %v1431, %v1507
        %1509 = vmatmul.f32.gmra.mxu0 %v1446
        %v1510 = vpop.f32.mrf.mxu0
        %v1511 = vadd.f32 %v1431, %v1510
        %1512 = vmatmul.f32.gmra.mxu0 %v1449
        %v1513 = vpop.f32.mrf.mxu0
        %v1514 = vadd.f32 %v1431, %v1513
        %1515 = vmatmul.f32.gmra.mxu0 %v1452
        %v1516 = vpop.f32.mrf.mxu0
        %v1517 = vadd.f32 %v1431, %v1516
        %1518 = vmatmul.f32.gmra.mxu0 %v1455
        %v1519 = vpop.f32.mrf.mxu0
        %v1520 = vadd.f32 %v1431, %v1519
        %1521 = vmatmul.f32.gmra.mxu0 %v1458
        %v1522 = vpop.f32.mrf.mxu0
        %v1523 = vadd.f32 %v1431, %v1522
        %1524 = vmatmul.f32.gmra.mxu0 %v1461
        %v1525 = vpop.f32.mrf.mxu0
        %v1526 = vadd.f32 %v1431, %v1525
        %1527 = vmatmul.f32.gmra.mxu0 %v1464
        %v1528 = vpop.f32.mrf.mxu0
        %v1529 = vadd.f32 %v1431, %v1528
        %1530 = vmatmul.f32.gmra.mxu0 %v1467
        %v1531 = vpop.f32.mrf.mxu0
        %v1532 = vadd.f32 %v1431, %v1531
        %1533 = vmatmul.f32.gmra.mxu0 %v1470
        %v1534 = vpop.f32.mrf.mxu0
        %v1535 = vadd.f32 %v1431, %v1534
        %1536 = vmatmul.f32.gmra.mxu0 %v1473
        %v1537 = vpop.f32.mrf.mxu0
        %v1538 = vadd.f32 %v1431, %v1537
        %1539 = vmatmul.f32.gmra.mxu0 %v1476
        %v1540 = vpop.f32.mrf.mxu0
        %v1541 = vadd.f32 %v1431, %v1540
        %1542 = vmatmul.f32.gmra.mxu0 %v1479
        %v1543 = vpop.f32.mrf.mxu0
        %v1544 = vadd.f32 %v1431, %v1543
        %1545 = vdwg.mxu0
        %v1546 = vadd.f32 %v578, %v1499
        %v1547 = vadd.f32 %v579, %v1502
        %v1548 = vadd.f32 %v580, %v1505
        %v1549 = vadd.f32 %v581, %v1508
        %v1550 = vadd.f32 %v582, %v1511
        %v1551 = vadd.f32 %v583, %v1514
        %v1552 = vadd.f32 %v584, %v1517
        %v1553 = vadd.f32 %v585, %v1520
        %v1554 = vadd.f32 %v586, %v1523
        %v1555 = vadd.f32 %v587, %v1526
        %v1556 = vadd.f32 %v588, %v1529
        %v1557 = vadd.f32 %v589, %v1532
        %v1558 = vadd.f32 %v590, %v1535
        %v1559 = vadd.f32 %v591, %v1538
        %v1560 = vadd.f32 %v592, %v1541
        %v1561 = vadd.f32 %v593, %v1544
        %v1562 = vmul.f32 %v1546, 0.70710677
        %v1563 = vmul.f32 %v1547, 0.70710677
        %v1564 = vmul.f32 %v1548, 0.70710677
        %v1565 = vmul.f32 %v1549, 0.70710677
        %v1566 = vmul.f32 %v1550, 0.70710677
        %v1567 = vmul.f32 %v1551, 0.70710677
        %v1568 = vmul.f32 %v1552, 0.70710677
        %v1569 = vmul.f32 %v1553, 0.70710677
        %v1570 = vmul.f32 %v1554, 0.70710677
        %v1571 = vmul.f32 %v1555, 0.70710677
        %v1572 = vmul.f32 %v1556, 0.70710677
        %v1573 = vmul.f32 %v1557, 0.70710677
        %v1574 = vmul.f32 %v1558, 0.70710677
        %v1575 = vmul.f32 %v1559, 0.70710677
        %v1576 = vmul.f32 %v1560, 0.70710677
        %v1577 = vmul.f32 %v1561, 0.70710677
        %v1578 = vadd.f32 %v1499, 0.0
        %v1579 = vadd.f32 %v1502, 0.0
        %v1580 = vadd.f32 %v1505, 0.0
        %v1581 = vadd.f32 %v1508, 0.0
        %v1582 = vadd.f32 %v1511, 0.0
        %v1583 = vadd.f32 %v1514, 0.0
        %v1584 = vadd.f32 %v1517, 0.0
        %v1585 = vadd.f32 %v1520, 0.0
        %v1586 = vadd.f32 %v1523, 0.0
        %v1587 = vadd.f32 %v1526, 0.0
        %v1588 = vadd.f32 %v1529, 0.0
        %v1589 = vadd.f32 %v1532, 0.0
        %v1590 = vadd.f32 %v1535, 0.0
        %v1591 = vadd.f32 %v1538, 0.0
        %v1592 = vadd.f32 %v1541, 0.0
        %v1593 = vadd.f32 %v1544, 0.0
        %v1594 = vrot.slane %v1562, 6
        %v1595 = vrot.slane %v1563, 6
        %v1596 = vrot.slane %v1564, 6
        %v1597 = vrot.slane %v1565, 6
        %v1598 = vrot.slane %v1566, 6
        %v1599 = vrot.slane %v1567, 6
        %v1600 = vrot.slane %v1568, 6
        %v1601 = vrot.slane %v1569, 6
        %v1602 = vrot.slane %v1570, 6
        %v1603 = vrot.slane %v1571, 6
        %v1604 = vrot.slane %v1572, 6
        %v1605 = vrot.slane %v1573, 6
        %v1606 = vrot.slane %v1574, 6
        %v1607 = vrot.slane %v1575, 6
        %v1608 = vrot.slane %v1576, 6
        %v1609 = vrot.slane %v1577, 6
        %vm1610 = vcmp.lt.s32.totalorder %v595, 2
        %v1611 = vsel %vm1610, %v1608, %v1609
        %v1612 = vsel %vm1610, %v1607, %v1608
        %v1613 = vsel %vm1610, %v1606, %v1607
        %v1614 = vsel %vm1610, %v1605, %v1606
        %v1615 = vsel %vm1610, %v1604, %v1605
        %v1616 = vsel %vm1610, %v1603, %v1604
        %v1617 = vsel %vm1610, %v1602, %v1603
        %v1618 = vsel %vm1610, %v1601, %v1602
        %v1619 = vsel %vm1610, %v1600, %v1601
        %v1620 = vsel %vm1610, %v1599, %v1600
        %v1621 = vsel %vm1610, %v1598, %v1599
        %v1622 = vsel %vm1610, %v1597, %v1598
        %v1623 = vsel %vm1610, %v1596, %v1597
        %v1624 = vsel %vm1610, %v1595, %v1596
        %v1625 = vsel %vm1610, %v1594, %v1595
        %v1626 = vsel %vm1610, %v1609, %v1594
        %v1627 = vsel %vm611, %v1626, 0.0
        %v1628 = vsel %vm612, %v1625, 0.0
        %v1629 = vsel %vm613, %v1624, 0.0
        %v1630 = vsel %vm614, %v1623, 0.0
        %v1631 = vsel %vm615, %v1622, 0.0
        %v1632 = vsel %vm616, %v1621, 0.0
        %v1633 = vsel %vm617, %v1620, 0.0
        %v1634 = vsel %vm618, %v1619, 0.0
        %v1635 = vsel %vm611, %v1618, 0.0
        %v1636 = vsel %vm612, %v1617, 0.0
        %v1637 = vsel %vm613, %v1616, 0.0
        %v1638 = vsel %vm614, %v1615, 0.0
        %v1639 = vsel %vm615, %v1614, 0.0
        %v1640 = vsel %vm616, %v1613, 0.0
        %v1641 = vsel %vm617, %v1612, 0.0
        %v1642 = vsel %vm618, %v1611, 0.0
        %v1643 = vrot.slane %v1562, 2
        %v1644 = vrot.slane %v1563, 2
        %v1645 = vrot.slane %v1564, 2
        %v1646 = vrot.slane %v1565, 2
        %v1647 = vrot.slane %v1566, 2
        %v1648 = vrot.slane %v1567, 2
        %v1649 = vrot.slane %v1568, 2
        %v1650 = vrot.slane %v1569, 2
        %v1651 = vrot.slane %v1570, 2
        %v1652 = vrot.slane %v1571, 2
        %v1653 = vrot.slane %v1572, 2
        %v1654 = vrot.slane %v1573, 2
        %v1655 = vrot.slane %v1574, 2
        %v1656 = vrot.slane %v1575, 2
        %v1657 = vrot.slane %v1576, 2
        %v1658 = vrot.slane %v1577, 2
        %vm1659 = vcmp.lt.s32.totalorder %v595, 6
        %v1660 = vsel %vm1659, %v1657, %v1658
        %v1661 = vsel %vm1659, %v1656, %v1657
        %v1662 = vsel %vm1659, %v1655, %v1656
        %v1663 = vsel %vm1659, %v1654, %v1655
        %v1664 = vsel %vm1659, %v1653, %v1654
        %v1665 = vsel %vm1659, %v1652, %v1653
        %v1666 = vsel %vm1659, %v1651, %v1652
        %v1667 = vsel %vm1659, %v1650, %v1651
        %v1668 = vsel %vm1659, %v1649, %v1650
        %v1669 = vsel %vm1659, %v1648, %v1649
        %v1670 = vsel %vm1659, %v1647, %v1648
        %v1671 = vsel %vm1659, %v1646, %v1647
        %v1672 = vsel %vm1659, %v1645, %v1646
        %v1673 = vsel %vm1659, %v1644, %v1645
        %v1674 = vsel %vm1659, %v1643, %v1644
        %v1675 = vsel %vm1659, %v1658, %v1643
        %v1676 = vsel %vm627, %v1674, 0.0
        %v1677 = vsel %vm628, %v1673, 0.0
        %v1678 = vsel %vm629, %v1672, 0.0
        %v1679 = vsel %vm630, %v1671, 0.0
        %v1680 = vsel %vm631, %v1670, 0.0
        %v1681 = vsel %vm632, %v1669, 0.0
        %v1682 = vsel %vm633, %v1668, 0.0
        %v1683 = vsel %vm634, %v1667, 0.0
        %v1684 = vsel %vm627, %v1666, 0.0
        %v1685 = vsel %vm628, %v1665, 0.0
        %v1686 = vsel %vm629, %v1664, 0.0
        %v1687 = vsel %vm630, %v1663, 0.0
        %v1688 = vsel %vm631, %v1662, 0.0
        %v1689 = vsel %vm632, %v1661, 0.0
        %v1690 = vsel %vm633, %v1660, 0.0
        %v1691 = vsel %vm634, %v1675, 0.0
        %1708 = vrot.lane.b32.xlu0 %v1562, 32
        %v1709 = vpop.permute.xlu0 %1708
        %1710 = vrot.lane.b32.xlu0 %v1563, 32
        %v1711 = vpop.permute.xlu0 %1710
        %1712 = vrot.lane.b32.xlu0 %v1564, 32
        %v1713 = vpop.permute.xlu0 %1712
        %1714 = vrot.lane.b32.xlu0 %v1565, 32
        %v1715 = vpop.permute.xlu0 %1714
        %1716 = vrot.lane.b32.xlu0 %v1566, 32
        %v1717 = vpop.permute.xlu0 %1716
        %1718 = vrot.lane.b32.xlu0 %v1567, 32
        %v1719 = vpop.permute.xlu0 %1718
        %1720 = vrot.lane.b32.xlu0 %v1568, 32
        %v1721 = vpop.permute.xlu0 %1720
        %1722 = vrot.lane.b32.xlu0 %v1569, 32
        %v1723 = vpop.permute.xlu0 %1722
        %1724 = vrot.lane.b32.xlu0 %v1570, 32
        %v1725 = vpop.permute.xlu0 %1724
        %1726 = vrot.lane.b32.xlu0 %v1571, 32
        %v1727 = vpop.permute.xlu0 %1726
        %1728 = vrot.lane.b32.xlu0 %v1572, 32
        %v1729 = vpop.permute.xlu0 %1728
        %1730 = vrot.lane.b32.xlu0 %v1573, 32
        %v1731 = vpop.permute.xlu0 %1730
        %1732 = vrot.lane.b32.xlu0 %v1574, 32
        %v1733 = vpop.permute.xlu0 %1732
        %1734 = vrot.lane.b32.xlu0 %v1575, 32
        %v1735 = vpop.permute.xlu0 %1734
        %1736 = vrot.lane.b32.xlu0 %v1576, 32
        %v1737 = vpop.permute.xlu0 %1736
        %1738 = vrot.lane.b32.xlu0 %v1577, 32
        %v1739 = vpop.permute.xlu0 %1738
        %1772 = vrot.lane.b32.xlu0 %v1676, 64
        %v1773 = vpop.permute.xlu0 %1772
        %1774 = vrot.lane.b32.xlu0 %v1677, 64
        %v1775 = vpop.permute.xlu0 %1774
        %1776 = vrot.lane.b32.xlu0 %v1678, 64
        %v1777 = vpop.permute.xlu0 %1776
        %1778 = vrot.lane.b32.xlu0 %v1679, 64
        %v1779 = vpop.permute.xlu0 %1778
        %1780 = vrot.lane.b32.xlu0 %v1680, 64
        %v1781 = vpop.permute.xlu0 %1780
        %1782 = vrot.lane.b32.xlu0 %v1681, 64
        %v1783 = vpop.permute.xlu0 %1782
        %1784 = vrot.lane.b32.xlu0 %v1682, 64
        %v1785 = vpop.permute.xlu0 %1784
        %1786 = vrot.lane.b32.xlu0 %v1683, 64
        %v1787 = vpop.permute.xlu0 %1786
        %1788 = vrot.lane.b32.xlu0 %v1684, 64
        %v1789 = vpop.permute.xlu0 %1788
        %1790 = vrot.lane.b32.xlu0 %v1685, 64
        %v1791 = vpop.permute.xlu0 %1790
        %1792 = vrot.lane.b32.xlu0 %v1686, 64
        %v1793 = vpop.permute.xlu0 %1792
        %1794 = vrot.lane.b32.xlu0 %v1687, 64
        %v1795 = vpop.permute.xlu0 %1794
        %1796 = vrot.lane.b32.xlu0 %v1688, 64
        %v1797 = vpop.permute.xlu0 %1796
        %1798 = vrot.lane.b32.xlu0 %v1689, 64
        %v1799 = vpop.permute.xlu0 %1798
        %1800 = vrot.lane.b32.xlu0 %v1690, 64
        %v1801 = vpop.permute.xlu0 %1800
        %1802 = vrot.lane.b32.xlu0 %v1691, 64
        %v1803 = vpop.permute.xlu0 %1802
        %v1820 = vsel %vm861, %v1627, %v1709
        %v1821 = vsel %vm861, %v1628, %v1711
        %v1822 = vsel %vm861, %v1629, %v1713
        %v1823 = vsel %vm861, %v1630, %v1715
        %v1824 = vsel %vm861, %v1631, %v1717
        %v1825 = vsel %vm861, %v1632, %v1719
        %v1826 = vsel %vm861, %v1633, %v1721
        %v1827 = vsel %vm861, %v1634, %v1723
        %v1828 = vsel %vm861, %v1635, %v1725
        %v1829 = vsel %vm861, %v1636, %v1727
        %v1830 = vsel %vm861, %v1637, %v1729
        %v1831 = vsel %vm861, %v1638, %v1731
        %v1832 = vsel %vm861, %v1639, %v1733
        %v1833 = vsel %vm861, %v1640, %v1735
        %v1834 = vsel %vm861, %v1641, %v1737
        %v1835 = vsel %vm861, %v1642, %v1739
        %v1836 = vsel %vm878, %v1820, %v1773
        %v1837 = vsel %vm878, %v1821, %v1775
        %v1838 = vsel %vm878, %v1822, %v1777
        %v1839 = vsel %vm878, %v1823, %v1779
        %v1840 = vsel %vm878, %v1824, %v1781
        %v1841 = vsel %vm878, %v1825, %v1783
        %v1842 = vsel %vm878, %v1826, %v1785
        %v1843 = vsel %vm878, %v1827, %v1787
        %v1844 = vsel %vm878, %v1828, %v1789
        %v1845 = vsel %vm878, %v1829, %v1791
        %v1846 = vsel %vm878, %v1830, %v1793
        %v1847 = vsel %vm878, %v1831, %v1795
        %v1848 = vsel %vm878, %v1832, %v1797
        %v1849 = vsel %vm878, %v1833, %v1799
        %v1850 = vsel %vm878, %v1834, %v1801
        %v1851 = vsel %vm878, %v1835, %v1803
        %s1852 = scalar_lea.vmem %s3, 96
        %v1853 = vld [vmem:[%s1852] sm:$0xff]
        %v1854 = vld [vmem:[%s1852 + $0x8] sm:$0xff]
        %v1855 = vld [vmem:[%s1852 + $0x10] sm:$0xff]
        %v1856 = vld [vmem:[%s1852 + $0x18] sm:$0xff]
        %v1857 = vld [vmem:[%s1852 + $0x20] sm:$0xff]
        %v1858 = vld [vmem:[%s1852 + $0x28] sm:$0xff]
        %v1859 = vld [vmem:[%s1852 + $0x30] sm:$0xff]
        %v1860 = vld [vmem:[%s1852 + $0x38] sm:$0xff]
        %v1861 = vld [vmem:[%s1852 + $0x40] sm:$0xff]
        %v1862 = vld [vmem:[%s1852 + $0x48] sm:$0xff]
        %v1863 = vld [vmem:[%s1852 + $0x50] sm:$0xff]
        %v1864 = vld [vmem:[%s1852 + $0x58] sm:$0xff]
        %s1865 = scalar_lea.vmem %s4, 1
        %v1866 = vld [vmem:[%s1865] sm:$0x1]
        %v1868 = vperm.slane %v1866, 0
        %v1871 = vsel %vm911, %v1836, 0
        %v1874 = vsel %vm911, %v1837, 0
        %v1877 = vsel %vm911, %v1838, 0
        %v1880 = vsel %vm911, %v1839, 0
        %v1883 = vsel %vm911, %v1840, 0
        %v1886 = vsel %vm911, %v1841, 0
        %v1889 = vsel %vm911, %v1842, 0
        %v1892 = vsel %vm911, %v1843, 0
        %v1895 = vsel %vm911, %v1844, 0
        %v1898 = vsel %vm911, %v1845, 0
        %v1901 = vsel %vm911, %v1846, 0
        %v1904 = vsel %vm911, %v1847, 0
        %v1907 = vsel %vm911, %v1848, 0
        %v1910 = vsel %vm911, %v1849, 0
        %v1913 = vsel %vm911, %v1850, 0
        %v1916 = vsel %vm911, %v1851, 0
        %1918 = vmatpush.msra.mxu0 0.0
        %1919 = vmatpush.msra.mxu0 0.0
        %1920 = vmatpush.msra.mxu0 0.0
        %1921 = vmatpush.msra.mxu0 0.0
        %1922 = vmatpush.msra.mxu0 %v1864
        %1923 = vmatpush.msra.mxu0 %v1863
        %1924 = vmatpush.msra.mxu0 %v1862
        %1925 = vmatpush.msra.mxu0 %v1861
        %1926 = vmatpush.msra.mxu0 %v1860
        %1927 = vmatpush.msra.mxu0 %v1859
        %1928 = vmatpush.msra.mxu0 %v1858
        %1929 = vmatpush.msra.mxu0 %v1857
        %1930 = vmatpush.msra.mxu0 %v1856
        %1931 = vmatpush.msra.mxu0 %v1855
        %1932 = vmatpush.msra.mxu0 %v1854
        %1933 = vmatpush.msra.mxu0 %v1853
        %1934 = vmatmul.f32.gmra.mxu0 %v1871
        %v1935 = vpop.f32.mrf.mxu0
        %v1936 = vadd.f32 %v1868, %v1935
        %1937 = vmatmul.f32.gmra.mxu0 %v1874
        %v1938 = vpop.f32.mrf.mxu0
        %v1939 = vadd.f32 %v1868, %v1938
        %1940 = vmatmul.f32.gmra.mxu0 %v1877
        %v1941 = vpop.f32.mrf.mxu0
        %v1942 = vadd.f32 %v1868, %v1941
        %1943 = vmatmul.f32.gmra.mxu0 %v1880
        %v1944 = vpop.f32.mrf.mxu0
        %v1945 = vadd.f32 %v1868, %v1944
        %1946 = vmatmul.f32.gmra.mxu0 %v1883
        %v1947 = vpop.f32.mrf.mxu0
        %v1948 = vadd.f32 %v1868, %v1947
        %1949 = vmatmul.f32.gmra.mxu0 %v1886
        %v1950 = vpop.f32.mrf.mxu0
        %v1951 = vadd.f32 %v1868, %v1950
        %1952 = vmatmul.f32.gmra.mxu0 %v1889
        %v1953 = vpop.f32.mrf.mxu0
        %v1954 = vadd.f32 %v1868, %v1953
        %1955 = vmatmul.f32.gmra.mxu0 %v1892
        %v1956 = vpop.f32.mrf.mxu0
        %v1957 = vadd.f32 %v1868, %v1956
        %1958 = vmatmul.f32.gmra.mxu0 %v1895
        %v1959 = vpop.f32.mrf.mxu0
        %v1960 = vadd.f32 %v1868, %v1959
        %1961 = vmatmul.f32.gmra.mxu0 %v1898
        %v1962 = vpop.f32.mrf.mxu0
        %v1963 = vadd.f32 %v1868, %v1962
        %1964 = vmatmul.f32.gmra.mxu0 %v1901
        %v1965 = vpop.f32.mrf.mxu0
        %v1966 = vadd.f32 %v1868, %v1965
        %1967 = vmatmul.f32.gmra.mxu0 %v1904
        %v1968 = vpop.f32.mrf.mxu0
        %v1969 = vadd.f32 %v1868, %v1968
        %1970 = vmatmul.f32.gmra.mxu0 %v1907
        %v1971 = vpop.f32.mrf.mxu0
        %v1972 = vadd.f32 %v1868, %v1971
        %1973 = vmatmul.f32.gmra.mxu0 %v1910
        %v1974 = vpop.f32.mrf.mxu0
        %v1975 = vadd.f32 %v1868, %v1974
        %1976 = vmatmul.f32.gmra.mxu0 %v1913
        %v1977 = vpop.f32.mrf.mxu0
        %v1978 = vadd.f32 %v1868, %v1977
        %1979 = vmatmul.f32.gmra.mxu0 %v1916
        %v1980 = vpop.f32.mrf.mxu0
        %v1981 = vadd.f32 %v1868, %v1980
        %1982 = vdwg.mxu0
        %v1983 = vxor.u32 %v1936, 2147483648
        %v1984 = vxor.u32 %v1939, 2147483648
        %v1985 = vxor.u32 %v1942, 2147483648
        %v1986 = vxor.u32 %v1945, 2147483648
        %v1987 = vxor.u32 %v1948, 2147483648
        %v1988 = vxor.u32 %v1951, 2147483648
        %v1989 = vxor.u32 %v1954, 2147483648
        %v1990 = vxor.u32 %v1957, 2147483648
        %v1991 = vxor.u32 %v1960, 2147483648
        %v1992 = vxor.u32 %v1963, 2147483648
        %v1993 = vxor.u32 %v1966, 2147483648
        %v1994 = vxor.u32 %v1969, 2147483648
        %v1995 = vxor.u32 %v1972, 2147483648
        %v1996 = vxor.u32 %v1975, 2147483648
        %v1997 = vxor.u32 %v1978, 2147483648
        %v1998 = vxor.u32 %v1981, 2147483648
        %v1999 = vmul.f32 %v1983, 1.442695
        %v2000 = vpow.pop %v1999
        %v2001 = vmul.f32 %v1984, 1.442695
        %v2002 = vpow.pop %v2001
        %v2003 = vmul.f32 %v1985, 1.442695
        %v2004 = vpow.pop %v2003
        %v2005 = vmul.f32 %v1986, 1.442695
        %v2006 = vpow.pop %v2005
        %v2007 = vmul.f32 %v1987, 1.442695
        %v2008 = vpow.pop %v2007
        %v2009 = vmul.f32 %v1988, 1.442695
        %v2010 = vpow.pop %v2009
        %v2011 = vmul.f32 %v1989, 1.442695
        %v2012 = vpow.pop %v2011
        %v2013 = vmul.f32 %v1990, 1.442695
        %v2014 = vpow.pop %v2013
        %v2015 = vmul.f32 %v1991, 1.442695
        %v2016 = vpow.pop %v2015
        %v2017 = vmul.f32 %v1992, 1.442695
        %v2018 = vpow.pop %v2017
        %v2019 = vmul.f32 %v1993, 1.442695
        %v2020 = vpow.pop %v2019
        %v2021 = vmul.f32 %v1994, 1.442695
        %v2022 = vpow.pop %v2021
        %v2023 = vmul.f32 %v1995, 1.442695
        %v2024 = vpow.pop %v2023
        %v2025 = vmul.f32 %v1996, 1.442695
        %v2026 = vpow.pop %v2025
        %v2027 = vmul.f32 %v1997, 1.442695
        %v2028 = vpow.pop %v2027
        %v2029 = vmul.f32 %v1998, 1.442695
        %v2030 = vpow.pop %v2029
        %v2031 = vadd.f32 %v2000, 1.0
        %v2032 = vadd.f32 %v2002, 1.0
        %v2033 = vadd.f32 %v2004, 1.0
        %v2034 = vadd.f32 %v2006, 1.0
        %v2035 = vadd.f32 %v2008, 1.0
        %v2036 = vadd.f32 %v2010, 1.0
        %v2037 = vadd.f32 %v2012, 1.0
        %v2038 = vadd.f32 %v2014, 1.0
        %v2039 = vadd.f32 %v2016, 1.0
        %v2040 = vadd.f32 %v2018, 1.0
        %v2041 = vadd.f32 %v2020, 1.0
        %v2042 = vadd.f32 %v2022, 1.0
        %v2043 = vadd.f32 %v2024, 1.0
        %v2044 = vadd.f32 %v2026, 1.0
        %v2045 = vadd.f32 %v2028, 1.0
        %v2046 = vadd.f32 %v2030, 1.0
        %v2047 = vrcp.pop %v2031
        %v2048 = vmul.f32 %v2031, %v2047
        %v2049 = vsub.f32 1.0, %v2048
        %v2050 = vmul.f32 %v2047, %v2049
        %v2051 = vadd.f32 %v2047, %v2050
        %vm2052 = vweird.f32 %v2031
        %vm2053 = vweird.f32 %v2047
        %vm2054 = vmor %vm2052, %vm2053
        %v2055 = vsel %vm2054, %v2047, %v2051
        %v2056 = vand.u32 2147483647, %v2031
        %vm2057 = vcmp.eq.f32.partialorder %v2056, 8.507059e+37
        %v2058 = vand.u32 %v2031, 2147483648
        %v2059 = vor.u32 1.1754944e-38, %v2058
        %v2060 = vsel %vm2057, %v2059, %v2055
        %v2061 = vmul.f32 1.0, %v2060
        %v2062 = vrcp.pop %v2032
        %v2063 = vmul.f32 %v2032, %v2062
        %v2064 = vsub.f32 1.0, %v2063
        %v2065 = vmul.f32 %v2062, %v2064
        %v2066 = vadd.f32 %v2062, %v2065
        %vm2067 = vweird.f32 %v2032
        %vm2068 = vweird.f32 %v2062
        %vm2069 = vmor %vm2067, %vm2068
        %v2070 = vsel %vm2069, %v2062, %v2066
        %v2071 = vand.u32 2147483647, %v2032
        %vm2072 = vcmp.eq.f32.partialorder %v2071, 8.507059e+37
        %v2073 = vand.u32 %v2032, 2147483648
        %v2074 = vor.u32 1.1754944e-38, %v2073
        %v2075 = vsel %vm2072, %v2074, %v2070
        %v2076 = vmul.f32 1.0, %v2075
        %v2077 = vrcp.pop %v2033
        %v2078 = vmul.f32 %v2033, %v2077
        %v2079 = vsub.f32 1.0, %v2078
        %v2080 = vmul.f32 %v2077, %v2079
        %v2081 = vadd.f32 %v2077, %v2080
        %vm2082 = vweird.f32 %v2033
        %vm2083 = vweird.f32 %v2077
        %vm2084 = vmor %vm2082, %vm2083
        %v2085 = vsel %vm2084, %v2077, %v2081
        %v2086 = vand.u32 2147483647, %v2033
        %vm2087 = vcmp.eq.f32.partialorder %v2086, 8.507059e+37
        %v2088 = vand.u32 %v2033, 2147483648
        %v2089 = vor.u32 1.1754944e-38, %v2088
        %v2090 = vsel %vm2087, %v2089, %v2085
        %v2091 = vmul.f32 1.0, %v2090
        %v2092 = vrcp.pop %v2034
        %v2093 = vmul.f32 %v2034, %v2092
        %v2094 = vsub.f32 1.0, %v2093
        %v2095 = vmul.f32 %v2092, %v2094
        %v2096 = vadd.f32 %v2092, %v2095
        %vm2097 = vweird.f32 %v2034
        %vm2098 = vweird.f32 %v2092
        %vm2099 = vmor %vm2097, %vm2098
        %v2100 = vsel %vm2099, %v2092, %v2096
        %v2101 = vand.u32 2147483647, %v2034
        %vm2102 = vcmp.eq.f32.partialorder %v2101, 8.507059e+37
        %v2103 = vand.u32 %v2034, 2147483648
        %v2104 = vor.u32 1.1754944e-38, %v2103
        %v2105 = vsel %vm2102, %v2104, %v2100
        %v2106 = vmul.f32 1.0, %v2105
        %v2107 = vrcp.pop %v2035
        %v2108 = vmul.f32 %v2035, %v2107
        %v2109 = vsub.f32 1.0, %v2108
        %v2110 = vmul.f32 %v2107, %v2109
        %v2111 = vadd.f32 %v2107, %v2110
        %vm2112 = vweird.f32 %v2035
        %vm2113 = vweird.f32 %v2107
        %vm2114 = vmor %vm2112, %vm2113
        %v2115 = vsel %vm2114, %v2107, %v2111
        %v2116 = vand.u32 2147483647, %v2035
        %vm2117 = vcmp.eq.f32.partialorder %v2116, 8.507059e+37
        %v2118 = vand.u32 %v2035, 2147483648
        %v2119 = vor.u32 1.1754944e-38, %v2118
        %v2120 = vsel %vm2117, %v2119, %v2115
        %v2121 = vmul.f32 1.0, %v2120
        %v2122 = vrcp.pop %v2036
        %v2123 = vmul.f32 %v2036, %v2122
        %v2124 = vsub.f32 1.0, %v2123
        %v2125 = vmul.f32 %v2122, %v2124
        %v2126 = vadd.f32 %v2122, %v2125
        %vm2127 = vweird.f32 %v2036
        %vm2128 = vweird.f32 %v2122
        %vm2129 = vmor %vm2127, %vm2128
        %v2130 = vsel %vm2129, %v2122, %v2126
        %v2131 = vand.u32 2147483647, %v2036
        %vm2132 = vcmp.eq.f32.partialorder %v2131, 8.507059e+37
        %v2133 = vand.u32 %v2036, 2147483648
        %v2134 = vor.u32 1.1754944e-38, %v2133
        %v2135 = vsel %vm2132, %v2134, %v2130
        %v2136 = vmul.f32 1.0, %v2135
        %v2137 = vrcp.pop %v2037
        %v2138 = vmul.f32 %v2037, %v2137
        %v2139 = vsub.f32 1.0, %v2138
        %v2140 = vmul.f32 %v2137, %v2139
        %v2141 = vadd.f32 %v2137, %v2140
        %vm2142 = vweird.f32 %v2037
        %vm2143 = vweird.f32 %v2137
        %vm2144 = vmor %vm2142, %vm2143
        %v2145 = vsel %vm2144, %v2137, %v2141
        %v2146 = vand.u32 2147483647, %v2037
        %vm2147 = vcmp.eq.f32.partialorder %v2146, 8.507059e+37
        %v2148 = vand.u32 %v2037, 2147483648
        %v2149 = vor.u32 1.1754944e-38, %v2148
        %v2150 = vsel %vm2147, %v2149, %v2145
        %v2151 = vmul.f32 1.0, %v2150
        %v2152 = vrcp.pop %v2038
        %v2153 = vmul.f32 %v2038, %v2152
        %v2154 = vsub.f32 1.0, %v2153
        %v2155 = vmul.f32 %v2152, %v2154
        %v2156 = vadd.f32 %v2152, %v2155
        %vm2157 = vweird.f32 %v2038
        %vm2158 = vweird.f32 %v2152
        %vm2159 = vmor %vm2157, %vm2158
        %v2160 = vsel %vm2159, %v2152, %v2156
        %v2161 = vand.u32 2147483647, %v2038
        %vm2162 = vcmp.eq.f32.partialorder %v2161, 8.507059e+37
        %v2163 = vand.u32 %v2038, 2147483648
        %v2164 = vor.u32 1.1754944e-38, %v2163
        %v2165 = vsel %vm2162, %v2164, %v2160
        %v2166 = vmul.f32 1.0, %v2165
        %v2167 = vrcp.pop %v2039
        %v2168 = vmul.f32 %v2039, %v2167
        %v2169 = vsub.f32 1.0, %v2168
        %v2170 = vmul.f32 %v2167, %v2169
        %v2171 = vadd.f32 %v2167, %v2170
        %vm2172 = vweird.f32 %v2039
        %vm2173 = vweird.f32 %v2167
        %vm2174 = vmor %vm2172, %vm2173
        %v2175 = vsel %vm2174, %v2167, %v2171
        %v2176 = vand.u32 2147483647, %v2039
        %vm2177 = vcmp.eq.f32.partialorder %v2176, 8.507059e+37
        %v2178 = vand.u32 %v2039, 2147483648
        %v2179 = vor.u32 1.1754944e-38, %v2178
        %v2180 = vsel %vm2177, %v2179, %v2175
        %v2181 = vmul.f32 1.0, %v2180
        %v2182 = vrcp.pop %v2040
        %v2183 = vmul.f32 %v2040, %v2182
        %v2184 = vsub.f32 1.0, %v2183
        %v2185 = vmul.f32 %v2182, %v2184
        %v2186 = vadd.f32 %v2182, %v2185
        %vm2187 = vweird.f32 %v2040
        %vm2188 = vweird.f32 %v2182
        %vm2189 = vmor %vm2187, %vm2188
        %v2190 = vsel %vm2189, %v2182, %v2186
        %v2191 = vand.u32 2147483647, %v2040
        %vm2192 = vcmp.eq.f32.partialorder %v2191, 8.507059e+37
        %v2193 = vand.u32 %v2040, 2147483648
        %v2194 = vor.u32 1.1754944e-38, %v2193
        %v2195 = vsel %vm2192, %v2194, %v2190
        %v2196 = vmul.f32 1.0, %v2195
        %v2197 = vrcp.pop %v2041
        %v2198 = vmul.f32 %v2041, %v2197
        %v2199 = vsub.f32 1.0, %v2198
        %v2200 = vmul.f32 %v2197, %v2199
        %v2201 = vadd.f32 %v2197, %v2200
        %vm2202 = vweird.f32 %v2041
        %vm2203 = vweird.f32 %v2197
        %vm2204 = vmor %vm2202, %vm2203
        %v2205 = vsel %vm2204, %v2197, %v2201
        %v2206 = vand.u32 2147483647, %v2041
        %vm2207 = vcmp.eq.f32.partialorder %v2206, 8.507059e+37
        %v2208 = vand.u32 %v2041, 2147483648
        %v2209 = vor.u32 1.1754944e-38, %v2208
        %v2210 = vsel %vm2207, %v2209, %v2205
        %v2211 = vmul.f32 1.0, %v2210
        %v2212 = vrcp.pop %v2042
        %v2213 = vmul.f32 %v2042, %v2212
        %v2214 = vsub.f32 1.0, %v2213
        %v2215 = vmul.f32 %v2212, %v2214
        %v2216 = vadd.f32 %v2212, %v2215
        %vm2217 = vweird.f32 %v2042
        %vm2218 = vweird.f32 %v2212
        %vm2219 = vmor %vm2217, %vm2218
        %v2220 = vsel %vm2219, %v2212, %v2216
        %v2221 = vand.u32 2147483647, %v2042
        %vm2222 = vcmp.eq.f32.partialorder %v2221, 8.507059e+37
        %v2223 = vand.u32 %v2042, 2147483648
        %v2224 = vor.u32 1.1754944e-38, %v2223
        %v2225 = vsel %vm2222, %v2224, %v2220
        %v2226 = vmul.f32 1.0, %v2225
        %v2227 = vrcp.pop %v2043
        %v2228 = vmul.f32 %v2043, %v2227
        %v2229 = vsub.f32 1.0, %v2228
        %v2230 = vmul.f32 %v2227, %v2229
        %v2231 = vadd.f32 %v2227, %v2230
        %vm2232 = vweird.f32 %v2043
        %vm2233 = vweird.f32 %v2227
        %vm2234 = vmor %vm2232, %vm2233
        %v2235 = vsel %vm2234, %v2227, %v2231
        %v2236 = vand.u32 2147483647, %v2043
        %vm2237 = vcmp.eq.f32.partialorder %v2236, 8.507059e+37
        %v2238 = vand.u32 %v2043, 2147483648
        %v2239 = vor.u32 1.1754944e-38, %v2238
        %v2240 = vsel %vm2237, %v2239, %v2235
        %v2241 = vmul.f32 1.0, %v2240
        %v2242 = vrcp.pop %v2044
        %v2243 = vmul.f32 %v2044, %v2242
        %v2244 = vsub.f32 1.0, %v2243
        %v2245 = vmul.f32 %v2242, %v2244
        %v2246 = vadd.f32 %v2242, %v2245
        %vm2247 = vweird.f32 %v2044
        %vm2248 = vweird.f32 %v2242
        %vm2249 = vmor %vm2247, %vm2248
        %v2250 = vsel %vm2249, %v2242, %v2246
        %v2251 = vand.u32 2147483647, %v2044
        %vm2252 = vcmp.eq.f32.partialorder %v2251, 8.507059e+37
        %v2253 = vand.u32 %v2044, 2147483648
        %v2254 = vor.u32 1.1754944e-38, %v2253
        %v2255 = vsel %vm2252, %v2254, %v2250
        %v2256 = vmul.f32 1.0, %v2255
        %v2257 = vrcp.pop %v2045
        %v2258 = vmul.f32 %v2045, %v2257
        %v2259 = vsub.f32 1.0, %v2258
        %v2260 = vmul.f32 %v2257, %v2259
        %v2261 = vadd.f32 %v2257, %v2260
        %vm2262 = vweird.f32 %v2045
        %vm2263 = vweird.f32 %v2257
        %vm2264 = vmor %vm2262, %vm2263
        %v2265 = vsel %vm2264, %v2257, %v2261
        %v2266 = vand.u32 2147483647, %v2045
        %vm2267 = vcmp.eq.f32.partialorder %v2266, 8.507059e+37
        %v2268 = vand.u32 %v2045, 2147483648
        %v2269 = vor.u32 1.1754944e-38, %v2268
        %v2270 = vsel %vm2267, %v2269, %v2265
        %v2271 = vmul.f32 1.0, %v2270
        %v2272 = vrcp.pop %v2046
        %v2273 = vmul.f32 %v2046, %v2272
        %v2274 = vsub.f32 1.0, %v2273
        %v2275 = vmul.f32 %v2272, %v2274
        %v2276 = vadd.f32 %v2272, %v2275
        %vm2277 = vweird.f32 %v2046
        %vm2278 = vweird.f32 %v2272
        %vm2279 = vmor %vm2277, %vm2278
        %v2280 = vsel %vm2279, %v2272, %v2276
        %v2281 = vand.u32 2147483647, %v2046
        %vm2282 = vcmp.eq.f32.partialorder %v2281, 8.507059e+37
        %v2283 = vand.u32 %v2046, 2147483648
        %v2284 = vor.u32 1.1754944e-38, %v2283
        %v2285 = vsel %vm2282, %v2284, %v2280
        %v2286 = vmul.f32 1.0, %v2285
        %v2287 = vtanh.pop %v1936
        %v2288 = vtanh.pop %v1939
        %v2289 = vtanh.pop %v1942
        %v2290 = vtanh.pop %v1945
        %v2291 = vtanh.pop %v1948
        %v2292 = vtanh.pop %v1951
        %v2293 = vtanh.pop %v1954
        %v2294 = vtanh.pop %v1957
        %v2295 = vtanh.pop %v1960
        %v2296 = vtanh.pop %v1963
        %v2297 = vtanh.pop %v1966
        %v2298 = vtanh.pop %v1969
        %v2299 = vtanh.pop %v1972
        %v2300 = vtanh.pop %v1975
        %v2301 = vtanh.pop %v1978
        %v2302 = vtanh.pop %v1981
        %2319 = vrot.lane.b32.xlu0 %v2287, 96
        %v2320 = vpop.permute.xlu0 %2319
        %2321 = vrot.lane.b32.xlu0 %v2288, 96
        %v2322 = vpop.permute.xlu0 %2321
        %2323 = vrot.lane.b32.xlu0 %v2289, 96
        %v2324 = vpop.permute.xlu0 %2323
        %2325 = vrot.lane.b32.xlu0 %v2290, 96
        %v2326 = vpop.permute.xlu0 %2325
        %2327 = vrot.lane.b32.xlu0 %v2291, 96
        %v2328 = vpop.permute.xlu0 %2327
        %2329 = vrot.lane.b32.xlu0 %v2292, 96
        %v2330 = vpop.permute.xlu0 %2329
        %2331 = vrot.lane.b32.xlu0 %v2293, 96
        %v2332 = vpop.permute.xlu0 %2331
        %2333 = vrot.lane.b32.xlu0 %v2294, 96
        %v2334 = vpop.permute.xlu0 %2333
        %2335 = vrot.lane.b32.xlu0 %v2295, 96
        %v2336 = vpop.permute.xlu0 %2335
        %2337 = vrot.lane.b32.xlu0 %v2296, 96
        %v2338 = vpop.permute.xlu0 %2337
        %2339 = vrot.lane.b32.xlu0 %v2297, 96
        %v2340 = vpop.permute.xlu0 %2339
        %2341 = vrot.lane.b32.xlu0 %v2298, 96
        %v2342 = vpop.permute.xlu0 %2341
        %2343 = vrot.lane.b32.xlu0 %v2299, 96
        %v2344 = vpop.permute.xlu0 %2343
        %2345 = vrot.lane.b32.xlu0 %v2300, 96
        %v2346 = vpop.permute.xlu0 %2345
        %2347 = vrot.lane.b32.xlu0 %v2301, 96
        %v2348 = vpop.permute.xlu0 %2347
        %2349 = vrot.lane.b32.xlu0 %v2302, 96
        %v2350 = vpop.permute.xlu0 %2349
        %v2367 = vmul.f32 %v2061, %v2320
        %v2368 = vmul.f32 %v2076, %v2322
        %v2369 = vmul.f32 %v2091, %v2324
        %v2370 = vmul.f32 %v2106, %v2326
        %v2371 = vmul.f32 %v2121, %v2328
        %v2372 = vmul.f32 %v2136, %v2330
        %v2373 = vmul.f32 %v2151, %v2332
        %v2374 = vmul.f32 %v2166, %v2334
        %v2375 = vmul.f32 %v2181, %v2336
        %v2376 = vmul.f32 %v2196, %v2338
        %v2377 = vmul.f32 %v2211, %v2340
        %v2378 = vmul.f32 %v2226, %v2342
        %v2379 = vmul.f32 %v2241, %v2344
        %v2380 = vmul.f32 %v2256, %v2346
        %v2381 = vmul.f32 %v2271, %v2348
        %v2382 = vmul.f32 %v2286, %v2350
        %s2383 = scalar_lea.vmem %s5, 32
        %v2384 = vld [vmem:[%s2383] sm:$0xff]
        %v2385 = vld [vmem:[%s2383 + $0x8] sm:$0xff]
        %v2386 = vld [vmem:[%s2383 + $0x10] sm:$0xff]
        %v2387 = vld [vmem:[%s2383 + $0x18] sm:$0xff]
        %s2388 = scalar_lea.vmem %s6, 1
        %v2389 = vld [vmem:[%s2388] sm:$0x1]
        %v2391 = vperm.slane %v2389, 0
        %v2394 = vsel %vm861, %v2367, 0
        %v2397 = vsel %vm861, %v2368, 0
        %v2400 = vsel %vm861, %v2369, 0
        %v2403 = vsel %vm861, %v2370, 0
        %v2406 = vsel %vm861, %v2371, 0
        %v2409 = vsel %vm861, %v2372, 0
        %v2412 = vsel %vm861, %v2373, 0
        %v2415 = vsel %vm861, %v2374, 0
        %v2418 = vsel %vm861, %v2375, 0
        %v2421 = vsel %vm861, %v2376, 0
        %v2424 = vsel %vm861, %v2377, 0
        %v2427 = vsel %vm861, %v2378, 0
        %v2430 = vsel %vm861, %v2379, 0
        %v2433 = vsel %vm861, %v2380, 0
        %v2436 = vsel %vm861, %v2381, 0
        %v2439 = vsel %vm861, %v2382, 0
        %2441 = vmatpush.msra.mxu0 0.0
        %2442 = vmatpush.msra.mxu0 0.0
        %2443 = vmatpush.msra.mxu0 0.0
        %2444 = vmatpush.msra.mxu0 0.0
        %2445 = vmatpush.msra.mxu0 0.0
        %2446 = vmatpush.msra.mxu0 0.0
        %2447 = vmatpush.msra.mxu0 0.0
        %2448 = vmatpush.msra.mxu0 0.0
        %2449 = vmatpush.msra.mxu0 0.0
        %2450 = vmatpush.msra.mxu0 0.0
        %2451 = vmatpush.msra.mxu0 0.0
        %2452 = vmatpush.msra.mxu0 0.0
        %2453 = vmatpush.msra.mxu0 %v2387
        %2454 = vmatpush.msra.mxu0 %v2386
        %2455 = vmatpush.msra.mxu0 %v2385
        %2456 = vmatpush.msra.mxu0 %v2384
        %2457 = vmatmul.f32.gmra.mxu0 %v2394
        %v2458 = vpop.f32.mrf.mxu0
        %v2459 = vadd.f32 %v2391, %v2458
        %2460 = vmatmul.f32.gmra.mxu0 %v2397
        %v2461 = vpop.f32.mrf.mxu0
        %v2462 = vadd.f32 %v2391, %v2461
        %2463 = vmatmul.f32.gmra.mxu0 %v2400
        %v2464 = vpop.f32.mrf.mxu0
        %v2465 = vadd.f32 %v2391, %v2464
        %2466 = vmatmul.f32.gmra.mxu0 %v2403
        %v2467 = vpop.f32.mrf.mxu0
        %v2468 = vadd.f32 %v2391, %v2467
        %2469 = vmatmul.f32.gmra.mxu0 %v2406
        %v2470 = vpop.f32.mrf.mxu0
        %v2471 = vadd.f32 %v2391, %v2470
        %2472 = vmatmul.f32.gmra.mxu0 %v2409
        %v2473 = vpop.f32.mrf.mxu0
        %v2474 = vadd.f32 %v2391, %v2473
        %2475 = vmatmul.f32.gmra.mxu0 %v2412
        %v2476 = vpop.f32.mrf.mxu0
        %v2477 = vadd.f32 %v2391, %v2476
        %2478 = vmatmul.f32.gmra.mxu0 %v2415
        %v2479 = vpop.f32.mrf.mxu0
        %v2480 = vadd.f32 %v2391, %v2479
        %2481 = vmatmul.f32.gmra.mxu0 %v2418
        %v2482 = vpop.f32.mrf.mxu0
        %v2483 = vadd.f32 %v2391, %v2482
        %2484 = vmatmul.f32.gmra.mxu0 %v2421
        %v2485 = vpop.f32.mrf.mxu0
        %v2486 = vadd.f32 %v2391, %v2485
        %2487 = vmatmul.f32.gmra.mxu0 %v2424
        %v2488 = vpop.f32.mrf.mxu0
        %v2489 = vadd.f32 %v2391, %v2488
        %2490 = vmatmul.f32.gmra.mxu0 %v2427
        %v2491 = vpop.f32.mrf.mxu0
        %v2492 = vadd.f32 %v2391, %v2491
        %2493 = vmatmul.f32.gmra.mxu0 %v2430
        %v2494 = vpop.f32.mrf.mxu0
        %v2495 = vadd.f32 %v2391, %v2494
        %2496 = vmatmul.f32.gmra.mxu0 %v2433
        %v2497 = vpop.f32.mrf.mxu0
        %v2498 = vadd.f32 %v2391, %v2497
        %2499 = vmatmul.f32.gmra.mxu0 %v2436
        %v2500 = vpop.f32.mrf.mxu0
        %v2501 = vadd.f32 %v2391, %v2500
        %2502 = vmatmul.f32.gmra.mxu0 %v2439
        %v2503 = vpop.f32.mrf.mxu0
        %v2504 = vadd.f32 %v2391, %v2503
        %2505 = vdwg.mxu0
        %v2506 = vadd.f32 %v1562, %v2459
        %v2507 = vadd.f32 %v1563, %v2462
        %v2508 = vadd.f32 %v1564, %v2465
        %v2509 = vadd.f32 %v1565, %v2468
        %v2510 = vadd.f32 %v1566, %v2471
        %v2511 = vadd.f32 %v1567, %v2474
        %v2512 = vadd.f32 %v1568, %v2477
        %v2513 = vadd.f32 %v1569, %v2480
        %v2514 = vadd.f32 %v1570, %v2483
        %v2515 = vadd.f32 %v1571, %v2486
        %v2516 = vadd.f32 %v1572, %v2489
        %v2517 = vadd.f32 %v1573, %v2492
        %v2518 = vadd.f32 %v1574, %v2495
        %v2519 = vadd.f32 %v1575, %v2498
        %v2520 = vadd.f32 %v1576, %v2501
        %v2521 = vadd.f32 %v1577, %v2504
        %v2522 = vmul.f32 %v2506, 0.70710677
        %v2523 = vmul.f32 %v2507, 0.70710677
        %v2524 = vmul.f32 %v2508, 0.70710677
        %v2525 = vmul.f32 %v2509, 0.70710677
        %v2526 = vmul.f32 %v2510, 0.70710677
        %v2527 = vmul.f32 %v2511, 0.70710677
        %v2528 = vmul.f32 %v2512, 0.70710677
        %v2529 = vmul.f32 %v2513, 0.70710677
        %v2530 = vmul.f32 %v2514, 0.70710677
        %v2531 = vmul.f32 %v2515, 0.70710677
        %v2532 = vmul.f32 %v2516, 0.70710677
        %v2533 = vmul.f32 %v2517, 0.70710677
        %v2534 = vmul.f32 %v2518, 0.70710677
        %v2535 = vmul.f32 %v2519, 0.70710677
        %v2536 = vmul.f32 %v2520, 0.70710677
        %v2537 = vmul.f32 %v2521, 0.70710677
        %v2538 = vadd.f32 %v1578, %v2459
        %v2539 = vadd.f32 %v1579, %v2462
        %v2540 = vadd.f32 %v1580, %v2465
        %v2541 = vadd.f32 %v1581, %v2468
        %v2542 = vadd.f32 %v1582, %v2471
        %v2543 = vadd.f32 %v1583, %v2474
        %v2544 = vadd.f32 %v1584, %v2477
        %v2545 = vadd.f32 %v1585, %v2480
        %v2546 = vadd.f32 %v1586, %v2483
        %v2547 = vadd.f32 %v1587, %v2486
        %v2548 = vadd.f32 %v1588, %v2489
        %v2549 = vadd.f32 %v1589, %v2492
        %v2550 = vadd.f32 %v1590, %v2495
        %v2551 = vadd.f32 %v1591, %v2498
        %v2552 = vadd.f32 %v1592, %v2501
        %v2553 = vadd.f32 %v1593, %v2504
        %v2554 = vrot.slane %v2522, 7
        %v2555 = vrot.slane %v2523, 7
        %v2556 = vrot.slane %v2524, 7
        %v2557 = vrot.slane %v2525, 7
        %v2558 = vrot.slane %v2526, 7
        %v2559 = vrot.slane %v2527, 7
        %v2560 = vrot.slane %v2528, 7
        %v2561 = vrot.slane %v2529, 7
        %v2562 = vrot.slane %v2530, 7
        %v2563 = vrot.slane %v2531, 7
        %v2564 = vrot.slane %v2532, 7
        %v2565 = vrot.slane %v2533, 7
        %v2566 = vrot.slane %v2534, 7
        %v2567 = vrot.slane %v2535, 7
        %v2568 = vrot.slane %v2536, 7
        %v2569 = vrot.slane %v2537, 7
        %v2570 = vsel %vm651, %v2568, %v2569
        %v2571 = vsel %vm651, %v2567, %v2568
        %v2572 = vsel %vm651, %v2566, %v2567
        %v2573 = vsel %vm651, %v2565, %v2566
        %v2574 = vsel %vm651, %v2564, %v2565
        %v2575 = vsel %vm651, %v2563, %v2564
        %v2576 = vsel %vm651, %v2562, %v2563
        %v2577 = vsel %vm651, %v2561, %v2562
        %v2578 = vsel %vm651, %v2560, %v2561
        %v2579 = vsel %vm651, %v2559, %v2560
        %v2580 = vsel %vm651, %v2558, %v2559
        %v2581 = vsel %vm651, %v2557, %v2558
        %v2582 = vsel %vm651, %v2556, %v2557
        %v2583 = vsel %vm651, %v2555, %v2556
        %v2584 = vsel %vm651, %v2554, %v2555
        %v2585 = vsel %vm651, %v2569, %v2554
        %v2586 = vsel %vm603, %v2585, 0.0
        %v2587 = vsel %vm604, %v2584, 0.0
        %v2588 = vsel %vm605, %v2583, 0.0
        %v2589 = vsel %vm606, %v2582, 0.0
        %v2590 = vsel %vm607, %v2581, 0.0
        %v2591 = vsel %vm608, %v2580, 0.0
        %v2592 = vsel %vm609, %v2579, 0.0
        %v2593 = vsel %vm610, %v2578, 0.0
        %v2594 = vsel %vm603, %v2577, 0.0
        %v2595 = vsel %vm604, %v2576, 0.0
        %v2596 = vsel %vm605, %v2575, 0.0
        %v2597 = vsel %vm606, %v2574, 0.0
        %v2598 = vsel %vm607, %v2573, 0.0
        %v2599 = vsel %vm608, %v2572, 0.0
        %v2600 = vsel %vm609, %v2571, 0.0
        %v2601 = vsel %vm610, %v2570, 0.0
        %v2602 = vrot.slane %v2522, 1
        %v2603 = vrot.slane %v2523, 1
        %v2604 = vrot.slane %v2524, 1
        %v2605 = vrot.slane %v2525, 1
        %v2606 = vrot.slane %v2526, 1
        %v2607 = vrot.slane %v2527, 1
        %v2608 = vrot.slane %v2528, 1
        %v2609 = vrot.slane %v2529, 1
        %v2610 = vrot.slane %v2530, 1
        %v2611 = vrot.slane %v2531, 1
        %v2612 = vrot.slane %v2532, 1
        %v2613 = vrot.slane %v2533, 1
        %v2614 = vrot.slane %v2534, 1
        %v2615 = vrot.slane %v2535, 1
        %v2616 = vrot.slane %v2536, 1
        %v2617 = vrot.slane %v2537, 1
        %v2618 = vsel %vm700, %v2616, %v2617
        %v2619 = vsel %vm700, %v2615, %v2616
        %v2620 = vsel %vm700, %v2614, %v2615
        %v2621 = vsel %vm700, %v2613, %v2614
        %v2622 = vsel %vm700, %v2612, %v2613
        %v2623 = vsel %vm700, %v2611, %v2612
        %v2624 = vsel %vm700, %v2610, %v2611
        %v2625 = vsel %vm700, %v2609, %v2610
        %v2626 = vsel %vm700, %v2608, %v2609
        %v2627 = vsel %vm700, %v2607, %v2608
        %v2628 = vsel %vm700, %v2606, %v2607
        %v2629 = vsel %vm700, %v2605, %v2606
        %v2630 = vsel %vm700, %v2604, %v2605
        %v2631 = vsel %vm700, %v2603, %v2604
        %v2632 = vsel %vm700, %v2602, %v2603
        %v2633 = vsel %vm700, %v2617, %v2602
        %v2634 = vsel %vm619, %v2632, 0.0
        %v2635 = vsel %vm620, %v2631, 0.0
        %v2636 = vsel %vm621, %v2630, 0.0
        %v2637 = vsel %vm622, %v2629, 0.0
        %v2638 = vsel %vm623, %v2628, 0.0
        %v2639 = vsel %vm624, %v2627, 0.0
        %v2640 = vsel %vm625, %v2626, 0.0
        %v2641 = vsel %vm626, %v2625, 0.0
        %v2642 = vsel %vm619, %v2624, 0.0
        %v2643 = vsel %vm620, %v2623, 0.0
        %v2644 = vsel %vm621, %v2622, 0.0
        %v2645 = vsel %vm622, %v2621, 0.0
        %v2646 = vsel %vm623, %v2620, 0.0
        %v2647 = vsel %vm624, %v2619, 0.0
        %v2648 = vsel %vm625, %v2618, 0.0
        %v2649 = vsel %vm626, %v2633, 0.0
        %2666 = vrot.lane.b32.xlu0 %v2522, 32
        %v2667 = vpop.permute.xlu0 %2666
        %2668 = vrot.lane.b32.xlu0 %v2523, 32
        %v2669 = vpop.permute.xlu0 %2668
        %2670 = vrot.lane.b32.xlu0 %v2524, 32
        %v2671 = vpop.permute.xlu0 %2670
        %2672 = vrot.lane.b32.xlu0 %v2525, 32
        %v2673 = vpop.permute.xlu0 %2672
        %2674 = vrot.lane.b32.xlu0 %v2526, 32
        %v2675 = vpop.permute.xlu0 %2674
        %2676 = vrot.lane.b32.xlu0 %v2527, 32
        %v2677 = vpop.permute.xlu0 %2676
        %2678 = vrot.lane.b32.xlu0 %v2528, 32
        %v2679 = vpop.permute.xlu0 %2678
        %2680 = vrot.lane.b32.xlu0 %v2529, 32
        %v2681 = vpop.permute.xlu0 %2680
        %2682 = vrot.lane.b32.xlu0 %v2530, 32
        %v2683 = vpop.permute.xlu0 %2682
        %2684 = vrot.lane.b32.xlu0 %v2531, 32
        %v2685 = vpop.permute.xlu0 %2684
        %2686 = vrot.lane.b32.xlu0 %v2532, 32
        %v2687 = vpop.permute.xlu0 %2686
        %2688 = vrot.lane.b32.xlu0 %v2533, 32
        %v2689 = vpop.permute.xlu0 %2688
        %2690 = vrot.lane.b32.xlu0 %v2534, 32
        %v2691 = vpop.permute.xlu0 %2690
        %2692 = vrot.lane.b32.xlu0 %v2535, 32
        %v2693 = vpop.permute.xlu0 %2692
        %2694 = vrot.lane.b32.xlu0 %v2536, 32
        %v2695 = vpop.permute.xlu0 %2694
        %2696 = vrot.lane.b32.xlu0 %v2537, 32
        %v2697 = vpop.permute.xlu0 %2696
        %2730 = vrot.lane.b32.xlu0 %v2634, 64
        %v2731 = vpop.permute.xlu0 %2730
        %2732 = vrot.lane.b32.xlu0 %v2635, 64
        %v2733 = vpop.permute.xlu0 %2732
        %2734 = vrot.lane.b32.xlu0 %v2636, 64
        %v2735 = vpop.permute.xlu0 %2734
        %2736 = vrot.lane.b32.xlu0 %v2637, 64
        %v2737 = vpop.permute.xlu0 %2736
        %2738 = vrot.lane.b32.xlu0 %v2638, 64
        %v2739 = vpop.permute.xlu0 %2738
        %2740 = vrot.lane.b32.xlu0 %v2639, 64
        %v2741 = vpop.permute.xlu0 %2740
        %2742 = vrot.lane.b32.xlu0 %v2640, 64
        %v2743 = vpop.permute.xlu0 %2742
        %2744 = vrot.lane.b32.xlu0 %v2641, 64
        %v2745 = vpop.permute.xlu0 %2744
        %2746 = vrot.lane.b32.xlu0 %v2642, 64
        %v2747 = vpop.permute.xlu0 %2746
        %2748 = vrot.lane.b32.xlu0 %v2643, 64
        %v2749 = vpop.permute.xlu0 %2748
        %2750 = vrot.lane.b32.xlu0 %v2644, 64
        %v2751 = vpop.permute.xlu0 %2750
        %2752 = vrot.lane.b32.xlu0 %v2645, 64
        %v2753 = vpop.permute.xlu0 %2752
        %2754 = vrot.lane.b32.xlu0 %v2646, 64
        %v2755 = vpop.permute.xlu0 %2754
        %2756 = vrot.lane.b32.xlu0 %v2647, 64
        %v2757 = vpop.permute.xlu0 %2756
        %2758 = vrot.lane.b32.xlu0 %v2648, 64
        %v2759 = vpop.permute.xlu0 %2758
        %2760 = vrot.lane.b32.xlu0 %v2649, 64
        %v2761 = vpop.permute.xlu0 %2760
        %v2778 = vsel %vm861, %v2586, %v2667
        %v2779 = vsel %vm861, %v2587, %v2669
        %v2780 = vsel %vm861, %v2588, %v2671
        %v2781 = vsel %vm861, %v2589, %v2673
        %v2782 = vsel %vm861, %v2590, %v2675
        %v2783 = vsel %vm861, %v2591, %v2677
        %v2784 = vsel %vm861, %v2592, %v2679
        %v2785 = vsel %vm861, %v2593, %v2681
        %v2786 = vsel %vm861, %v2594, %v2683
        %v2787 = vsel %vm861, %v2595, %v2685
        %v2788 = vsel %vm861, %v2596, %v2687
        %v2789 = vsel %vm861, %v2597, %v2689
        %v2790 = vsel %vm861, %v2598, %v2691
        %v2791 = vsel %vm861, %v2599, %v2693
        %v2792 = vsel %vm861, %v2600, %v2695
        %v2793 = vsel %vm861, %v2601, %v2697
        %v2794 = vsel %vm878, %v2778, %v2731
        %v2795 = vsel %vm878, %v2779, %v2733
        %v2796 = vsel %vm878, %v2780, %v2735
        %v2797 = vsel %vm878, %v2781, %v2737
        %v2798 = vsel %vm878, %v2782, %v2739
        %v2799 = vsel %vm878, %v2783, %v2741
        %v2800 = vsel %vm878, %v2784, %v2743
        %v2801 = vsel %vm878, %v2785, %v2745
        %v2802 = vsel %vm878, %v2786, %v2747
        %v2803 = vsel %vm878, %v2787, %v2749
        %v2804 = vsel %vm878, %v2788, %v2751
        %v2805 = vsel %vm878, %v2789, %v2753
        %v2806 = vsel %vm878, %v2790, %v2755
        %v2807 = vsel %vm878, %v2791, %v2757
        %v2808 = vsel %vm878, %v2792, %v2759
        %v2809 = vsel %vm878, %v2793, %v2761
        %s2810 = scalar_lea.vmem %s3, 192
        %v2811 = vld [vmem:[%s2810] sm:$0xff]
        %v2812 = vld [vmem:[%s2810 + $0x8] sm:$0xff]
        %v2813 = vld [vmem:[%s2810 + $0x10] sm:$0xff]
        %v2814 = vld [vmem:[%s2810 + $0x18] sm:$0xff]
        %v2815 = vld [vmem:[%s2810 + $0x20] sm:$0xff]
        %v2816 = vld [vmem:[%s2810 + $0x28] sm:$0xff]
        %v2817 = vld [vmem:[%s2810 + $0x30] sm:$0xff]
        %v2818 = vld [vmem:[%s2810 + $0x38] sm:$0xff]
        %v2819 = vld [vmem:[%s2810 + $0x40] sm:$0xff]
        %v2820 = vld [vmem:[%s2810 + $0x48] sm:$0xff]
        %v2821 = vld [vmem:[%s2810 + $0x50] sm:$0xff]
        %v2822 = vld [vmem:[%s2810 + $0x58] sm:$0xff]
        %s2823 = scalar_lea.vmem %s4, 2
        %v2824 = vld [vmem:[%s2823] sm:$0x1]
        %v2826 = vperm.slane %v2824, 0
        %v2829 = vsel %vm911, %v2794, 0
        %v2832 = vsel %vm911, %v2795, 0
        %v2835 = vsel %vm911, %v2796, 0
        %v2838 = vsel %vm911, %v2797, 0
        %v2841 = vsel %vm911, %v2798, 0
        %v2844 = vsel %vm911, %v2799, 0
        %v2847 = vsel %vm911, %v2800, 0
        %v2850 = vsel %vm911, %v2801, 0
        %v2853 = vsel %vm911, %v2802, 0
        %v2856 = vsel %vm911, %v2803, 0
        %v2859 = vsel %vm911, %v2804, 0
        %v2862 = vsel %vm911, %v2805, 0
        %v2865 = vsel %vm911, %v2806, 0
        %v2868 = vsel %vm911, %v2807, 0
        %v2871 = vsel %vm911, %v2808, 0
        %v2874 = vsel %vm911, %v2809, 0
        %2876 = vmatpush.msra.mxu0 0.0
        %2877 = vmatpush.msra.mxu0 0.0
        %2878 = vmatpush.msra.mxu0 0.0
        %2879 = vmatpush.msra.mxu0 0.0
        %2880 = vmatpush.msra.mxu0 %v2822
        %2881 = vmatpush.msra.mxu0 %v2821
        %2882 = vmatpush.msra.mxu0 %v2820
        %2883 = vmatpush.msra.mxu0 %v2819
        %2884 = vmatpush.msra.mxu0 %v2818
        %2885 = vmatpush.msra.mxu0 %v2817
        %2886 = vmatpush.msra.mxu0 %v2816
        %2887 = vmatpush.msra.mxu0 %v2815
        %2888 = vmatpush.msra.mxu0 %v2814
        %2889 = vmatpush.msra.mxu0 %v2813
        %2890 = vmatpush.msra.mxu0 %v2812
        %2891 = vmatpush.msra.mxu0 %v2811
        %2892 = vmatmul.f32.gmra.mxu0 %v2829
        %v2893 = vpop.f32.mrf.mxu0
        %v2894 = vadd.f32 %v2826, %v2893
        %2895 = vmatmul.f32.gmra.mxu0 %v2832
        %v2896 = vpop.f32.mrf.mxu0
        %v2897 = vadd.f32 %v2826, %v2896
        %2898 = vmatmul.f32.gmra.mxu0 %v2835
        %v2899 = vpop.f32.mrf.mxu0
        %v2900 = vadd.f32 %v2826, %v2899
        %2901 = vmatmul.f32.gmra.mxu0 %v2838
        %v2902 = vpop.f32.mrf.mxu0
        %v2903 = vadd.f32 %v2826, %v2902
        %2904 = vmatmul.f32.gmra.mxu0 %v2841
        %v2905 = vpop.f32.mrf.mxu0
        %v2906 = vadd.f32 %v2826, %v2905
        %2907 = vmatmul.f32.gmra.mxu0 %v2844
        %v2908 = vpop.f32.mrf.mxu0
        %v2909 = vadd.f32 %v2826, %v2908
        %2910 = vmatmul.f32.gmra.mxu0 %v2847
        %v2911 = vpop.f32.mrf.mxu0
        %v2912 = vadd.f32 %v2826, %v2911
        %2913 = vmatmul.f32.gmra.mxu0 %v2850
        %v2914 = vpop.f32.mrf.mxu0
        %v2915 = vadd.f32 %v2826, %v2914
        %2916 = vmatmul.f32.gmra.mxu0 %v2853
        %v2917 = vpop.f32.mrf.mxu0
        %v2918 = vadd.f32 %v2826, %v2917
        %2919 = vmatmul.f32.gmra.mxu0 %v2856
        %v2920 = vpop.f32.mrf.mxu0
        %v2921 = vadd.f32 %v2826, %v2920
        %2922 = vmatmul.f32.gmra.mxu0 %v2859
        %v2923 = vpop.f32.mrf.mxu0
        %v2924 = vadd.f32 %v2826, %v2923
        %2925 = vmatmul.f32.gmra.mxu0 %v2862
        %v2926 = vpop.f32.mrf.mxu0
        %v2927 = vadd.f32 %v2826, %v2926
        %2928 = vmatmul.f32.gmra.mxu0 %v2865
        %v2929 = vpop.f32.mrf.mxu0
        %v2930 = vadd.f32 %v2826, %v2929
        %2931 = vmatmul.f32.gmra.mxu0 %v2868
        %v2932 = vpop.f32.mrf.mxu0
        %v2933 = vadd.f32 %v2826, %v2932
        %2934 = vmatmul.f32.gmra.mxu0 %v2871
        %v2935 = vpop.f32.mrf.mxu0
        %v2936 = vadd.f32 %v2826, %v2935
        %2937 = vmatmul.f32.gmra.mxu0 %v2874
        %v2938 = vpop.f32.mrf.mxu0
        %v2939 = vadd.f32 %v2826, %v2938
        %2940 = vdwg.mxu0
        %v2941 = vxor.u32 %v2894, 2147483648
        %v2942 = vxor.u32 %v2897, 2147483648
        %v2943 = vxor.u32 %v2900, 2147483648
        %v2944 = vxor.u32 %v2903, 2147483648
        %v2945 = vxor.u32 %v2906, 2147483648
        %v2946 = vxor.u32 %v2909, 2147483648
        %v2947 = vxor.u32 %v2912, 2147483648
        %v2948 = vxor.u32 %v2915, 2147483648
        %v2949 = vxor.u32 %v2918, 2147483648
        %v2950 = vxor.u32 %v2921, 2147483648
        %v2951 = vxor.u32 %v2924, 2147483648
        %v2952 = vxor.u32 %v2927, 2147483648
        %v2953 = vxor.u32 %v2930, 2147483648
        %v2954 = vxor.u32 %v2933, 2147483648
        %v2955 = vxor.u32 %v2936, 2147483648
        %v2956 = vxor.u32 %v2939, 2147483648
        %v2957 = vmul.f32 %v2941, 1.442695
        %v2958 = vpow.pop %v2957
        %v2959 = vmul.f32 %v2942, 1.442695
        %v2960 = vpow.pop %v2959
        %v2961 = vmul.f32 %v2943, 1.442695
        %v2962 = vpow.pop %v2961
        %v2963 = vmul.f32 %v2944, 1.442695
        %v2964 = vpow.pop %v2963
        %v2965 = vmul.f32 %v2945, 1.442695
        %v2966 = vpow.pop %v2965
        %v2967 = vmul.f32 %v2946, 1.442695
        %v2968 = vpow.pop %v2967
        %v2969 = vmul.f32 %v2947, 1.442695
        %v2970 = vpow.pop %v2969
        %v2971 = vmul.f32 %v2948, 1.442695
        %v2972 = vpow.pop %v2971
        %v2973 = vmul.f32 %v2949, 1.442695
        %v2974 = vpow.pop %v2973
        %v2975 = vmul.f32 %v2950, 1.442695
        %v2976 = vpow.pop %v2975
        %v2977 = vmul.f32 %v2951, 1.442695
        %v2978 = vpow.pop %v2977
        %v2979 = vmul.f32 %v2952, 1.442695
        %v2980 = vpow.pop %v2979
        %v2981 = vmul.f32 %v2953, 1.442695
        %v2982 = vpow.pop %v2981
        %v2983 = vmul.f32 %v2954, 1.442695
        %v2984 = vpow.pop %v2983
        %v2985 = vmul.f32 %v2955, 1.442695
        %v2986 = vpow.pop %v2985
        %v2987 = vmul.f32 %v2956, 1.442695
        %v2988 = vpow.pop %v2987
        %v2989 = vadd.f32 %v2958, 1.0
        %v2990 = vadd.f32 %v2960, 1.0
        %v2991 = vadd.f32 %v2962, 1.0
        %v2992 = vadd.f32 %v2964, 1.0
        %v2993 = vadd.f32 %v2966, 1.0
        %v2994 = vadd.f32 %v2968, 1.0
        %v2995 = vadd.f32 %v2970, 1.0
        %v2996 = vadd.f32 %v2972, 1.0
        %v2997 = vadd.f32 %v2974, 1.0
        %v2998 = vadd.f32 %v2976, 1.0
        %v2999 = vadd.f32 %v2978, 1.0
        %v3000 = vadd.f32 %v2980, 1.0
        %v3001 = vadd.f32 %v2982, 1.0
        %v3002 = vadd.f32 %v2984, 1.0
        %v3003 = vadd.f32 %v2986, 1.0
        %v3004 = vadd.f32 %v2988, 1.0
        %v3005 = vrcp.pop %v2989
        %v3006 = vmul.f32 %v2989, %v3005
        %v3007 = vsub.f32 1.0, %v3006
        %v3008 = vmul.f32 %v3005, %v3007
        %v3009 = vadd.f32 %v3005, %v3008
        %vm3010 = vweird.f32 %v2989
        %vm3011 = vweird.f32 %v3005
        %vm3012 = vmor %vm3010, %vm3011
        %v3013 = vsel %vm3012, %v3005, %v3009
        %v3014 = vand.u32 2147483647, %v2989
        %vm3015 = vcmp.eq.f32.partialorder %v3014, 8.507059e+37
        %v3016 = vand.u32 %v2989, 2147483648
        %v3017 = vor.u32 1.1754944e-38, %v3016
        %v3018 = vsel %vm3015, %v3017, %v3013
        %v3019 = vmul.f32 1.0, %v3018
        %v3020 = vrcp.pop %v2990
        %v3021 = vmul.f32 %v2990, %v3020
        %v3022 = vsub.f32 1.0, %v3021
        %v3023 = vmul.f32 %v3020, %v3022
        %v3024 = vadd.f32 %v3020, %v3023
        %vm3025 = vweird.f32 %v2990
        %vm3026 = vweird.f32 %v3020
        %vm3027 = vmor %vm3025, %vm3026
        %v3028 = vsel %vm3027, %v3020, %v3024
        %v3029 = vand.u32 2147483647, %v2990
        %vm3030 = vcmp.eq.f32.partialorder %v3029, 8.507059e+37
        %v3031 = vand.u32 %v2990, 2147483648
        %v3032 = vor.u32 1.1754944e-38, %v3031
        %v3033 = vsel %vm3030, %v3032, %v3028
        %v3034 = vmul.f32 1.0, %v3033
        %v3035 = vrcp.pop %v2991
        %v3036 = vmul.f32 %v2991, %v3035
        %v3037 = vsub.f32 1.0, %v3036
        %v3038 = vmul.f32 %v3035, %v3037
        %v3039 = vadd.f32 %v3035, %v3038
        %vm3040 = vweird.f32 %v2991
        %vm3041 = vweird.f32 %v3035
        %vm3042 = vmor %vm3040, %vm3041
        %v3043 = vsel %vm3042, %v3035, %v3039
        %v3044 = vand.u32 2147483647, %v2991
        %vm3045 = vcmp.eq.f32.partialorder %v3044, 8.507059e+37
        %v3046 = vand.u32 %v2991, 2147483648
        %v3047 = vor.u32 1.1754944e-38, %v3046
        %v3048 = vsel %vm3045, %v3047, %v3043
        %v3049 = vmul.f32 1.0, %v3048
        %v3050 = vrcp.pop %v2992
        %v3051 = vmul.f32 %v2992, %v3050
        %v3052 = vsub.f32 1.0, %v3051
        %v3053 = vmul.f32 %v3050, %v3052
        %v3054 = vadd.f32 %v3050, %v3053
        %vm3055 = vweird.f32 %v2992
        %vm3056 = vweird.f32 %v3050
        %vm3057 = vmor %vm3055, %vm3056
        %v3058 = vsel %vm3057, %v3050, %v3054
        %v3059 = vand.u32 2147483647, %v2992
        %vm3060 = vcmp.eq.f32.partialorder %v3059, 8.507059e+37
        %v3061 = vand.u32 %v2992, 2147483648
        %v3062 = vor.u32 1.1754944e-38, %v3061
        %v3063 = vsel %vm3060, %v3062, %v3058
        %v3064 = vmul.f32 1.0, %v3063
        %v3065 = vrcp.pop %v2993
        %v3066 = vmul.f32 %v2993, %v3065
        %v3067 = vsub.f32 1.0, %v3066
        %v3068 = vmul.f32 %v3065, %v3067
        %v3069 = vadd.f32 %v3065, %v3068
        %vm3070 = vweird.f32 %v2993
        %vm3071 = vweird.f32 %v3065
        %vm3072 = vmor %vm3070, %vm3071
        %v3073 = vsel %vm3072, %v3065, %v3069
        %v3074 = vand.u32 2147483647, %v2993
        %vm3075 = vcmp.eq.f32.partialorder %v3074, 8.507059e+37
        %v3076 = vand.u32 %v2993, 2147483648
        %v3077 = vor.u32 1.1754944e-38, %v3076
        %v3078 = vsel %vm3075, %v3077, %v3073
        %v3079 = vmul.f32 1.0, %v3078
        %v3080 = vrcp.pop %v2994
        %v3081 = vmul.f32 %v2994, %v3080
        %v3082 = vsub.f32 1.0, %v3081
        %v3083 = vmul.f32 %v3080, %v3082
        %v3084 = vadd.f32 %v3080, %v3083
        %vm3085 = vweird.f32 %v2994
        %vm3086 = vweird.f32 %v3080
        %vm3087 = vmor %vm3085, %vm3086
        %v3088 = vsel %vm3087, %v3080, %v3084
        %v3089 = vand.u32 2147483647, %v2994
        %vm3090 = vcmp.eq.f32.partialorder %v3089, 8.507059e+37
        %v3091 = vand.u32 %v2994, 2147483648
        %v3092 = vor.u32 1.1754944e-38, %v3091
        %v3093 = vsel %vm3090, %v3092, %v3088
        %v3094 = vmul.f32 1.0, %v3093
        %v3095 = vrcp.pop %v2995
        %v3096 = vmul.f32 %v2995, %v3095
        %v3097 = vsub.f32 1.0, %v3096
        %v3098 = vmul.f32 %v3095, %v3097
        %v3099 = vadd.f32 %v3095, %v3098
        %vm3100 = vweird.f32 %v2995
        %vm3101 = vweird.f32 %v3095
        %vm3102 = vmor %vm3100, %vm3101
        %v3103 = vsel %vm3102, %v3095, %v3099
        %v3104 = vand.u32 2147483647, %v2995
        %vm3105 = vcmp.eq.f32.partialorder %v3104, 8.507059e+37
        %v3106 = vand.u32 %v2995, 2147483648
        %v3107 = vor.u32 1.1754944e-38, %v3106
        %v3108 = vsel %vm3105, %v3107, %v3103
        %v3109 = vmul.f32 1.0, %v3108
        %v3110 = vrcp.pop %v2996
        %v3111 = vmul.f32 %v2996, %v3110
        %v3112 = vsub.f32 1.0, %v3111
        %v3113 = vmul.f32 %v3110, %v3112
        %v3114 = vadd.f32 %v3110, %v3113
        %vm3115 = vweird.f32 %v2996
        %vm3116 = vweird.f32 %v3110
        %vm3117 = vmor %vm3115, %vm3116
        %v3118 = vsel %vm3117, %v3110, %v3114
        %v3119 = vand.u32 2147483647, %v2996
        %vm3120 = vcmp.eq.f32.partialorder %v3119, 8.507059e+37
        %v3121 = vand.u32 %v2996, 2147483648
        %v3122 = vor.u32 1.1754944e-38, %v3121
        %v3123 = vsel %vm3120, %v3122, %v3118
        %v3124 = vmul.f32 1.0, %v3123
        %v3125 = vrcp.pop %v2997
        %v3126 = vmul.f32 %v2997, %v3125
        %v3127 = vsub.f32 1.0, %v3126
        %v3128 = vmul.f32 %v3125, %v3127
        %v3129 = vadd.f32 %v3125, %v3128
        %vm3130 = vweird.f32 %v2997
        %vm3131 = vweird.f32 %v3125
        %vm3132 = vmor %vm3130, %vm3131
        %v3133 = vsel %vm3132, %v3125, %v3129
        %v3134 = vand.u32 2147483647, %v2997
        %vm3135 = vcmp.eq.f32.partialorder %v3134, 8.507059e+37
        %v3136 = vand.u32 %v2997, 2147483648
        %v3137 = vor.u32 1.1754944e-38, %v3136
        %v3138 = vsel %vm3135, %v3137, %v3133
        %v3139 = vmul.f32 1.0, %v3138
        %v3140 = vrcp.pop %v2998
        %v3141 = vmul.f32 %v2998, %v3140
        %v3142 = vsub.f32 1.0, %v3141
        %v3143 = vmul.f32 %v3140, %v3142
        %v3144 = vadd.f32 %v3140, %v3143
        %vm3145 = vweird.f32 %v2998
        %vm3146 = vweird.f32 %v3140
        %vm3147 = vmor %vm3145, %vm3146
        %v3148 = vsel %vm3147, %v3140, %v3144
        %v3149 = vand.u32 2147483647, %v2998
        %vm3150 = vcmp.eq.f32.partialorder %v3149, 8.507059e+37
        %v3151 = vand.u32 %v2998, 2147483648
        %v3152 = vor.u32 1.1754944e-38, %v3151
        %v3153 = vsel %vm3150, %v3152, %v3148
        %v3154 = vmul.f32 1.0, %v3153
        %v3155 = vrcp.pop %v2999
        %v3156 = vmul.f32 %v2999, %v3155
        %v3157 = vsub.f32 1.0, %v3156
        %v3158 = vmul.f32 %v3155, %v3157
        %v3159 = vadd.f32 %v3155, %v3158
        %vm3160 = vweird.f32 %v2999
        %vm3161 = vweird.f32 %v3155
        %vm3162 = vmor %vm3160, %vm3161
        %v3163 = vsel %vm3162, %v3155, %v3159
        %v3164 = vand.u32 2147483647, %v2999
        %vm3165 = vcmp.eq.f32.partialorder %v3164, 8.507059e+37
        %v3166 = vand.u32 %v2999, 2147483648
        %v3167 = vor.u32 1.1754944e-38, %v3166
        %v3168 = vsel %vm3165, %v3167, %v3163
        %v3169 = vmul.f32 1.0, %v3168
        %v3170 = vrcp.pop %v3000
        %v3171 = vmul.f32 %v3000, %v3170
        %v3172 = vsub.f32 1.0, %v3171
        %v3173 = vmul.f32 %v3170, %v3172
        %v3174 = vadd.f32 %v3170, %v3173
        %vm3175 = vweird.f32 %v3000
        %vm3176 = vweird.f32 %v3170
        %vm3177 = vmor %vm3175, %vm3176
        %v3178 = vsel %vm3177, %v3170, %v3174
        %v3179 = vand.u32 2147483647, %v3000
        %vm3180 = vcmp.eq.f32.partialorder %v3179, 8.507059e+37
        %v3181 = vand.u32 %v3000, 2147483648
        %v3182 = vor.u32 1.1754944e-38, %v3181
        %v3183 = vsel %vm3180, %v3182, %v3178
        %v3184 = vmul.f32 1.0, %v3183
        %v3185 = vrcp.pop %v3001
        %v3186 = vmul.f32 %v3001, %v3185
        %v3187 = vsub.f32 1.0, %v3186
        %v3188 = vmul.f32 %v3185, %v3187
        %v3189 = vadd.f32 %v3185, %v3188
        %vm3190 = vweird.f32 %v3001
        %vm3191 = vweird.f32 %v3185
        %vm3192 = vmor %vm3190, %vm3191
        %v3193 = vsel %vm3192, %v3185, %v3189
        %v3194 = vand.u32 2147483647, %v3001
        %vm3195 = vcmp.eq.f32.partialorder %v3194, 8.507059e+37
        %v3196 = vand.u32 %v3001, 2147483648
        %v3197 = vor.u32 1.1754944e-38, %v3196
        %v3198 = vsel %vm3195, %v3197, %v3193
        %v3199 = vmul.f32 1.0, %v3198
        %v3200 = vrcp.pop %v3002
        %v3201 = vmul.f32 %v3002, %v3200
        %v3202 = vsub.f32 1.0, %v3201
        %v3203 = vmul.f32 %v3200, %v3202
        %v3204 = vadd.f32 %v3200, %v3203
        %vm3205 = vweird.f32 %v3002
        %vm3206 = vweird.f32 %v3200
        %vm3207 = vmor %vm3205, %vm3206
        %v3208 = vsel %vm3207, %v3200, %v3204
        %v3209 = vand.u32 2147483647, %v3002
        %vm3210 = vcmp.eq.f32.partialorder %v3209, 8.507059e+37
        %v3211 = vand.u32 %v3002, 2147483648
        %v3212 = vor.u32 1.1754944e-38, %v3211
        %v3213 = vsel %vm3210, %v3212, %v3208
        %v3214 = vmul.f32 1.0, %v3213
        %v3215 = vrcp.pop %v3003
        %v3216 = vmul.f32 %v3003, %v3215
        %v3217 = vsub.f32 1.0, %v3216
        %v3218 = vmul.f32 %v3215, %v3217
        %v3219 = vadd.f32 %v3215, %v3218
        %vm3220 = vweird.f32 %v3003
        %vm3221 = vweird.f32 %v3215
        %vm3222 = vmor %vm3220, %vm3221
        %v3223 = vsel %vm3222, %v3215, %v3219
        %v3224 = vand.u32 2147483647, %v3003
        %vm3225 = vcmp.eq.f32.partialorder %v3224, 8.507059e+37
        %v3226 = vand.u32 %v3003, 2147483648
        %v3227 = vor.u32 1.1754944e-38, %v3226
        %v3228 = vsel %vm3225, %v3227, %v3223
        %v3229 = vmul.f32 1.0, %v3228
        %v3230 = vrcp.pop %v3004
        %v3231 = vmul.f32 %v3004, %v3230
        %v3232 = vsub.f32 1.0, %v3231
        %v3233 = vmul.f32 %v3230, %v3232
        %v3234 = vadd.f32 %v3230, %v3233
        %vm3235 = vweird.f32 %v3004
        %vm3236 = vweird.f32 %v3230
        %vm3237 = vmor %vm3235, %vm3236
        %v3238 = vsel %vm3237, %v3230, %v3234
        %v3239 = vand.u32 2147483647, %v3004
        %vm3240 = vcmp.eq.f32.partialorder %v3239, 8.507059e+37
        %v3241 = vand.u32 %v3004, 2147483648
        %v3242 = vor.u32 1.1754944e-38, %v3241
        %v3243 = vsel %vm3240, %v3242, %v3238
        %v3244 = vmul.f32 1.0, %v3243
        %v3245 = vtanh.pop %v2894
        %v3246 = vtanh.pop %v2897
        %v3247 = vtanh.pop %v2900
        %v3248 = vtanh.pop %v2903
        %v3249 = vtanh.pop %v2906
        %v3250 = vtanh.pop %v2909
        %v3251 = vtanh.pop %v2912
        %v3252 = vtanh.pop %v2915
        %v3253 = vtanh.pop %v2918
        %v3254 = vtanh.pop %v2921
        %v3255 = vtanh.pop %v2924
        %v3256 = vtanh.pop %v2927
        %v3257 = vtanh.pop %v2930
        %v3258 = vtanh.pop %v2933
        %v3259 = vtanh.pop %v2936
        %v3260 = vtanh.pop %v2939
        %3277 = vrot.lane.b32.xlu0 %v3245, 96
        %v3278 = vpop.permute.xlu0 %3277
        %3279 = vrot.lane.b32.xlu0 %v3246, 96
        %v3280 = vpop.permute.xlu0 %3279
        %3281 = vrot.lane.b32.xlu0 %v3247, 96
        %v3282 = vpop.permute.xlu0 %3281
        %3283 = vrot.lane.b32.xlu0 %v3248, 96
        %v3284 = vpop.permute.xlu0 %3283
        %3285 = vrot.lane.b32.xlu0 %v3249, 96
        %v3286 = vpop.permute.xlu0 %3285
        %3287 = vrot.lane.b32.xlu0 %v3250, 96
        %v3288 = vpop.permute.xlu0 %3287
        %3289 = vrot.lane.b32.xlu0 %v3251, 96
        %v3290 = vpop.permute.xlu0 %3289
        %3291 = vrot.lane.b32.xlu0 %v3252, 96
        %v3292 = vpop.permute.xlu0 %3291
        %3293 = vrot.lane.b32.xlu0 %v3253, 96
        %v3294 = vpop.permute.xlu0 %3293
        %3295 = vrot.lane.b32.xlu0 %v3254, 96
        %v3296 = vpop.permute.xlu0 %3295
        %3297 = vrot.lane.b32.xlu0 %v3255, 96
        %v3298 = vpop.permute.xlu0 %3297
        %3299 = vrot.lane.b32.xlu0 %v3256, 96
        %v3300 = vpop.permute.xlu0 %3299
        %3301 = vrot.lane.b32.xlu0 %v3257, 96
        %v3302 = vpop.permute.xlu0 %3301
        %3303 = vrot.lane.b32.xlu0 %v3258, 96
        %v3304 = vpop.permute.xlu0 %3303
        %3305 = vrot.lane.b32.xlu0 %v3259, 96
        %v3306 = vpop.permute.xlu0 %3305
        %3307 = vrot.lane.b32.xlu0 %v3260, 96
        %v3308 = vpop.permute.xlu0 %3307
        %v3325 = vmul.f32 %v3019, %v3278
        %v3326 = vmul.f32 %v3034, %v3280
        %v3327 = vmul.f32 %v3049, %v3282
        %v3328 = vmul.f32 %v3064, %v3284
        %v3329 = vmul.f32 %v3079, %v3286
        %v3330 = vmul.f32 %v3094, %v3288
        %v3331 = vmul.f32 %v3109, %v3290
        %v3332 = vmul.f32 %v3124, %v3292
        %v3333 = vmul.f32 %v3139, %v3294
        %v3334 = vmul.f32 %v3154, %v3296
        %v3335 = vmul.f32 %v3169, %v3298
        %v3336 = vmul.f32 %v3184, %v3300
        %v3337 = vmul.f32 %v3199, %v3302
        %v3338 = vmul.f32 %v3214, %v3304
        %v3339 = vmul.f32 %v3229, %v3306
        %v3340 = vmul.f32 %v3244, %v3308
        %s3341 = scalar_lea.vmem %s5, 64
        %v3342 = vld [vmem:[%s3341] sm:$0xff]
        %v3343 = vld [vmem:[%s3341 + $0x8] sm:$0xff]
        %v3344 = vld [vmem:[%s3341 + $0x10] sm:$0xff]
        %v3345 = vld [vmem:[%s3341 + $0x18] sm:$0xff]
        %s3346 = scalar_lea.vmem %s6, 2
        %v3347 = vld [vmem:[%s3346] sm:$0x1]
        %v3349 = vperm.slane %v3347, 0
        %v3352 = vsel %vm861, %v3325, 0
        %v3355 = vsel %vm861, %v3326, 0
        %v3358 = vsel %vm861, %v3327, 0
        %v3361 = vsel %vm861, %v3328, 0
        %v3364 = vsel %vm861, %v3329, 0
        %v3367 = vsel %vm861, %v3330, 0
        %v3370 = vsel %vm861, %v3331, 0
        %v3373 = vsel %vm861, %v3332, 0
        %v3376 = vsel %vm861, %v3333, 0
        %v3379 = vsel %vm861, %v3334, 0
        %v3382 = vsel %vm861, %v3335, 0
        %v3385 = vsel %vm861, %v3336, 0
        %v3388 = vsel %vm861, %v3337, 0
        %v3391 = vsel %vm861, %v3338, 0
        %v3394 = vsel %vm861, %v3339, 0
        %v3397 = vsel %vm861, %v3340, 0
        %3399 = vmatpush.msra.mxu0 0.0
        %3400 = vmatpush.msra.mxu0 0.0
        %3401 = vmatpush.msra.mxu0 0.0
        %3402 = vmatpush.msra.mxu0 0.0
        %3403 = vmatpush.msra.mxu0 0.0
        %3404 = vmatpush.msra.mxu0 0.0
        %3405 = vmatpush.msra.mxu0 0.0
        %3406 = vmatpush.msra.mxu0 0.0
        %3407 = vmatpush.msra.mxu0 0.0
        %3408 = vmatpush.msra.mxu0 0.0
        %3409 = vmatpush.msra.mxu0 0.0
        %3410 = vmatpush.msra.mxu0 0.0
        %3411 = vmatpush.msra.mxu0 %v3345
        %3412 = vmatpush.msra.mxu0 %v3344
        %3413 = vmatpush.msra.mxu0 %v3343
        %3414 = vmatpush.msra.mxu0 %v3342
        %3415 = vmatmul.f32.gmra.mxu0 %v3352
        %v3416 = vpop.f32.mrf.mxu0
        %v3417 = vadd.f32 %v3349, %v3416
        %3418 = vmatmul.f32.gmra.mxu0 %v3355
        %v3419 = vpop.f32.mrf.mxu0
        %v3420 = vadd.f32 %v3349, %v3419
        %3421 = vmatmul.f32.gmra.mxu0 %v3358
        %v3422 = vpop.f32.mrf.mxu0
        %v3423 = vadd.f32 %v3349, %v3422
        %3424 = vmatmul.f32.gmra.mxu0 %v3361
        %v3425 = vpop.f32.mrf.mxu0
        %v3426 = vadd.f32 %v3349, %v3425
        %3427 = vmatmul.f32.gmra.mxu0 %v3364
        %v3428 = vpop.f32.mrf.mxu0
        %v3429 = vadd.f32 %v3349, %v3428
        %3430 = vmatmul.f32.gmra.mxu0 %v3367
        %v3431 = vpop.f32.mrf.mxu0
        %v3432 = vadd.f32 %v3349, %v3431
        %3433 = vmatmul.f32.gmra.mxu0 %v3370
        %v3434 = vpop.f32.mrf.mxu0
        %v3435 = vadd.f32 %v3349, %v3434
        %3436 = vmatmul.f32.gmra.mxu0 %v3373
        %v3437 = vpop.f32.mrf.mxu0
        %v3438 = vadd.f32 %v3349, %v3437
        %3439 = vmatmul.f32.gmra.mxu0 %v3376
        %v3440 = vpop.f32.mrf.mxu0
        %v3441 = vadd.f32 %v3349, %v3440
        %3442 = vmatmul.f32.gmra.mxu0 %v3379
        %v3443 = vpop.f32.mrf.mxu0
        %v3444 = vadd.f32 %v3349, %v3443
        %3445 = vmatmul.f32.gmra.mxu0 %v3382
        %v3446 = vpop.f32.mrf.mxu0
        %v3447 = vadd.f32 %v3349, %v3446
        %3448 = vmatmul.f32.gmra.mxu0 %v3385
        %v3449 = vpop.f32.mrf.mxu0
        %v3450 = vadd.f32 %v3349, %v3449
        %3451 = vmatmul.f32.gmra.mxu0 %v3388
        %v3452 = vpop.f32.mrf.mxu0
        %v3453 = vadd.f32 %v3349, %v3452
        %3454 = vmatmul.f32.gmra.mxu0 %v3391
        %v3455 = vpop.f32.mrf.mxu0
        %v3456 = vadd.f32 %v3349, %v3455
        %3457 = vmatmul.f32.gmra.mxu0 %v3394
        %v3458 = vpop.f32.mrf.mxu0
        %v3459 = vadd.f32 %v3349, %v3458
        %3460 = vmatmul.f32.gmra.mxu0 %v3397
        %v3461 = vpop.f32.mrf.mxu0
        %v3462 = vadd.f32 %v3349, %v3461
        %3463 = vdwg.mxu0
        %v3464 = vadd.f32 %v2522, %v3417
        %v3465 = vadd.f32 %v2523, %v3420
        %v3466 = vadd.f32 %v2524, %v3423
        %v3467 = vadd.f32 %v2525, %v3426
        %v3468 = vadd.f32 %v2526, %v3429
        %v3469 = vadd.f32 %v2527, %v3432
        %v3470 = vadd.f32 %v2528, %v3435
        %v3471 = vadd.f32 %v2529, %v3438
        %v3472 = vadd.f32 %v2530, %v3441
        %v3473 = vadd.f32 %v2531, %v3444
        %v3474 = vadd.f32 %v2532, %v3447
        %v3475 = vadd.f32 %v2533, %v3450
        %v3476 = vadd.f32 %v2534, %v3453
        %v3477 = vadd.f32 %v2535, %v3456
        %v3478 = vadd.f32 %v2536, %v3459
        %v3479 = vadd.f32 %v2537, %v3462
        %v3480 = vmul.f32 %v3464, 0.70710677
        %v3481 = vmul.f32 %v3465, 0.70710677
        %v3482 = vmul.f32 %v3466, 0.70710677
        %v3483 = vmul.f32 %v3467, 0.70710677
        %v3484 = vmul.f32 %v3468, 0.70710677
        %v3485 = vmul.f32 %v3469, 0.70710677
        %v3486 = vmul.f32 %v3470, 0.70710677
        %v3487 = vmul.f32 %v3471, 0.70710677
        %v3488 = vmul.f32 %v3472, 0.70710677
        %v3489 = vmul.f32 %v3473, 0.70710677
        %v3490 = vmul.f32 %v3474, 0.70710677
        %v3491 = vmul.f32 %v3475, 0.70710677
        %v3492 = vmul.f32 %v3476, 0.70710677
        %v3493 = vmul.f32 %v3477, 0.70710677
        %v3494 = vmul.f32 %v3478, 0.70710677
        %v3495 = vmul.f32 %v3479, 0.70710677
        %v3496 = vadd.f32 %v2538, %v3417
        %v3497 = vadd.f32 %v2539, %v3420
        %v3498 = vadd.f32 %v2540, %v3423
        %v3499 = vadd.f32 %v2541, %v3426
        %v3500 = vadd.f32 %v2542, %v3429
        %v3501 = vadd.f32 %v2543, %v3432
        %v3502 = vadd.f32 %v2544, %v3435
        %v3503 = vadd.f32 %v2545, %v3438
        %v3504 = vadd.f32 %v2546, %v3441
        %v3505 = vadd.f32 %v2547, %v3444
        %v3506 = vadd.f32 %v2548, %v3447
        %v3507 = vadd.f32 %v2549, %v3450
        %v3508 = vadd.f32 %v2550, %v3453
        %v3509 = vadd.f32 %v2551, %v3456
        %v3510 = vadd.f32 %v2552, %v3459
        %v3511 = vadd.f32 %v2553, %v3462
        %v3512 = vrot.slane %v3480, 6
        %v3513 = vrot.slane %v3481, 6
        %v3514 = vrot.slane %v3482, 6
        %v3515 = vrot.slane %v3483, 6
        %v3516 = vrot.slane %v3484, 6
        %v3517 = vrot.slane %v3485, 6
        %v3518 = vrot.slane %v3486, 6
        %v3519 = vrot.slane %v3487, 6
        %v3520 = vrot.slane %v3488, 6
        %v3521 = vrot.slane %v3489, 6
        %v3522 = vrot.slane %v3490, 6
        %v3523 = vrot.slane %v3491, 6
        %v3524 = vrot.slane %v3492, 6
        %v3525 = vrot.slane %v3493, 6
        %v3526 = vrot.slane %v3494, 6
        %v3527 = vrot.slane %v3495, 6
        %v3528 = vsel %vm1610, %v3526, %v3527
        %v3529 = vsel %vm1610, %v3525, %v3526
        %v3530 = vsel %vm1610, %v3524, %v3525
        %v3531 = vsel %vm1610, %v3523, %v3524
        %v3532 = vsel %vm1610, %v3522, %v3523
        %v3533 = vsel %vm1610, %v3521, %v3522
        %v3534 = vsel %vm1610, %v3520, %v3521
        %v3535 = vsel %vm1610, %v3519, %v3520
        %v3536 = vsel %vm1610, %v3518, %v3519
        %v3537 = vsel %vm1610, %v3517, %v3518
        %v3538 = vsel %vm1610, %v3516, %v3517
        %v3539 = vsel %vm1610, %v3515, %v3516
        %v3540 = vsel %vm1610, %v3514, %v3515
        %v3541 = vsel %vm1610, %v3513, %v3514
        %v3542 = vsel %vm1610, %v3512, %v3513
        %v3543 = vsel %vm1610, %v3527, %v3512
        %v3544 = vsel %vm611, %v3543, 0.0
        %v3545 = vsel %vm612, %v3542, 0.0
        %v3546 = vsel %vm613, %v3541, 0.0
        %v3547 = vsel %vm614, %v3540, 0.0
        %v3548 = vsel %vm615, %v3539, 0.0
        %v3549 = vsel %vm616, %v3538, 0.0
        %v3550 = vsel %vm617, %v3537, 0.0
        %v3551 = vsel %vm618, %v3536, 0.0
        %v3552 = vsel %vm611, %v3535, 0.0
        %v3553 = vsel %vm612, %v3534, 0.0
        %v3554 = vsel %vm613, %v3533, 0.0
        %v3555 = vsel %vm614, %v3532, 0.0
        %v3556 = vsel %vm615, %v3531, 0.0
        %v3557 = vsel %vm616, %v3530, 0.0
        %v3558 = vsel %vm617, %v3529, 0.0
        %v3559 = vsel %vm618, %v3528, 0.0
        %v3560 = vrot.slane %v3480, 2
        %v3561 = vrot.slane %v3481, 2
        %v3562 = vrot.slane %v3482, 2
        %v3563 = vrot.slane %v3483, 2
        %v3564 = vrot.slane %v3484, 2
        %v3565 = vrot.slane %v3485, 2
        %v3566 = vrot.slane %v3486, 2
        %v3567 = vrot.slane %v3487, 2
        %v3568 = vrot.slane %v3488, 2
        %v3569 = vrot.slane %v3489, 2
        %v3570 = vrot.slane %v3490, 2
        %v3571 = vrot.slane %v3491, 2
        %v3572 = vrot.slane %v3492, 2
        %v3573 = vrot.slane %v3493, 2
        %v3574 = vrot.slane %v3494, 2
        %v3575 = vrot.slane %v3495, 2
        %v3576 = vsel %vm1659, %v3574, %v3575
        %v3577 = vsel %vm1659, %v3573, %v3574
        %v3578 = vsel %vm1659, %v3572, %v3573
        %v3579 = vsel %vm1659, %v3571, %v3572
        %v3580 = vsel %vm1659, %v3570, %v3571
        %v3581 = vsel %vm1659, %v3569, %v3570
        %v3582 = vsel %vm1659, %v3568, %v3569
        %v3583 = vsel %vm1659, %v3567, %v3568
        %v3584 = vsel %vm1659, %v3566, %v3567
        %v3585 = vsel %vm1659, %v3565, %v3566
        %v3586 = vsel %vm1659, %v3564, %v3565
        %v3587 = vsel %vm1659, %v3563, %v3564
        %v3588 = vsel %vm1659, %v3562, %v3563
        %v3589 = vsel %vm1659, %v3561, %v3562
        %v3590 = vsel %vm1659, %v3560, %v3561
        %v3591 = vsel %vm1659, %v3575, %v3560
        %v3592 = vsel %vm627, %v3590, 0.0
        %v3593 = vsel %vm628, %v3589, 0.0
        %v3594 = vsel %vm629, %v3588, 0.0
        %v3595 = vsel %vm630, %v3587, 0.0
        %v3596 = vsel %vm631, %v3586, 0.0
        %v3597 = vsel %vm632, %v3585, 0.0
        %v3598 = vsel %vm633, %v3584, 0.0
        %v3599 = vsel %vm634, %v3583, 0.0
        %v3600 = vsel %vm627, %v3582, 0.0
        %v3601 = vsel %vm628, %v3581, 0.0
        %v3602 = vsel %vm629, %v3580, 0.0
        %v3603 = vsel %vm630, %v3579, 0.0
        %v3604 = vsel %vm631, %v3578, 0.0
        %v3605 = vsel %vm632, %v3577, 0.0
        %v3606 = vsel %vm633, %v3576, 0.0
        %v3607 = vsel %vm634, %v3591, 0.0
        %3624 = vrot.lane.b32.xlu0 %v3480, 32
        %v3625 = vpop.permute.xlu0 %3624
        %3626 = vrot.lane.b32.xlu0 %v3481, 32
        %v3627 = vpop.permute.xlu0 %3626
        %3628 = vrot.lane.b32.xlu0 %v3482, 32
        %v3629 = vpop.permute.xlu0 %3628
        %3630 = vrot.lane.b32.xlu0 %v3483, 32
        %v3631 = vpop.permute.xlu0 %3630
        %3632 = vrot.lane.b32.xlu0 %v3484, 32
        %v3633 = vpop.permute.xlu0 %3632
        %3634 = vrot.lane.b32.xlu0 %v3485, 32
        %v3635 = vpop.permute.xlu0 %3634
        %3636 = vrot.lane.b32.xlu0 %v3486, 32
        %v3637 = vpop.permute.xlu0 %3636
        %3638 = vrot.lane.b32.xlu0 %v3487, 32
        %v3639 = vpop.permute.xlu0 %3638
        %3640 = vrot.lane.b32.xlu0 %v3488, 32
        %v3641 = vpop.permute.xlu0 %3640
        %3642 = vrot.lane.b32.xlu0 %v3489, 32
        %v3643 = vpop.permute.xlu0 %3642
        %3644 = vrot.lane.b32.xlu0 %v3490, 32
        %v3645 = vpop.permute.xlu0 %3644
        %3646 = vrot.lane.b32.xlu0 %v3491, 32
        %v3647 = vpop.permute.xlu0 %3646
        %3648 = vrot.lane.b32.xlu0 %v3492, 32
        %v3649 = vpop.permute.xlu0 %3648
        %3650 = vrot.lane.b32.xlu0 %v3493, 32
        %v3651 = vpop.permute.xlu0 %3650
        %3652 = vrot.lane.b32.xlu0 %v3494, 32
        %v3653 = vpop.permute.xlu0 %3652
        %3654 = vrot.lane.b32.xlu0 %v3495, 32
        %v3655 = vpop.permute.xlu0 %3654
        %3688 = vrot.lane.b32.xlu0 %v3592, 64
        %v3689 = vpop.permute.xlu0 %3688
        %3690 = vrot.lane.b32.xlu0 %v3593, 64
        %v3691 = vpop.permute.xlu0 %3690
        %3692 = vrot.lane.b32.xlu0 %v3594, 64
        %v3693 = vpop.permute.xlu0 %3692
        %3694 = vrot.lane.b32.xlu0 %v3595, 64
        %v3695 = vpop.permute.xlu0 %3694
        %3696 = vrot.lane.b32.xlu0 %v3596, 64
        %v3697 = vpop.permute.xlu0 %3696
        %3698 = vrot.lane.b32.xlu0 %v3597, 64
        %v3699 = vpop.permute.xlu0 %3698
        %3700 = vrot.lane.b32.xlu0 %v3598, 64
        %v3701 = vpop.permute.xlu0 %3700
        %3702 = vrot.lane.b32.xlu0 %v3599, 64
        %v3703 = vpop.permute.xlu0 %3702
        %3704 = vrot.lane.b32.xlu0 %v3600, 64
        %v3705 = vpop.permute.xlu0 %3704
        %3706 = vrot.lane.b32.xlu0 %v3601, 64
        %v3707 = vpop.permute.xlu0 %3706
        %3708 = vrot.lane.b32.xlu0 %v3602, 64
        %v3709 = vpop.permute.xlu0 %3708
        %3710 = vrot.lane.b32.xlu0 %v3603, 64
        %v3711 = vpop.permute.xlu0 %3710
        %3712 = vrot.lane.b32.xlu0 %v3604, 64
        %v3713 = vpop.permute.xlu0 %3712
        %3714 = vrot.lane.b32.xlu0 %v3605, 64
        %v3715 = vpop.permute.xlu0 %3714
        %3716 = vrot.lane.b32.xlu0 %v3606, 64
        %v3717 = vpop.permute.xlu0 %3716
        %3718 = vrot.lane.b32.xlu0 %v3607, 64
        %v3719 = vpop.permute.xlu0 %3718
        %v3736 = vsel %vm861, %v3544, %v3625
        %v3737 = vsel %vm861, %v3545, %v3627
        %v3738 = vsel %vm861, %v3546, %v3629
        %v3739 = vsel %vm861, %v3547, %v3631
        %v3740 = vsel %vm861, %v3548, %v3633
        %v3741 = vsel %vm861, %v3549, %v3635
        %v3742 = vsel %vm861, %v3550, %v3637
        %v3743 = vsel %vm861, %v3551, %v3639
        %v3744 = vsel %vm861, %v3552, %v3641
        %v3745 = vsel %vm861, %v3553, %v3643
        %v3746 = vsel %vm861, %v3554, %v3645
        %v3747 = vsel %vm861, %v3555, %v3647
        %v3748 = vsel %vm861, %v3556, %v3649
        %v3749 = vsel %vm861, %v3557, %v3651
        %v3750 = vsel %vm861, %v3558, %v3653
        %v3751 = vsel %vm861, %v3559, %v3655
        %v3752 = vsel %vm878, %v3736, %v3689
        %v3753 = vsel %vm878, %v3737, %v3691
        %v3754 = vsel %vm878, %v3738, %v3693
        %v3755 = vsel %vm878, %v3739, %v3695
        %v3756 = vsel %vm878, %v3740, %v3697
        %v3757 = vsel %vm878, %v3741, %v3699
        %v3758 = vsel %vm878, %v3742, %v3701
        %v3759 = vsel %vm878, %v3743, %v3703
        %v3760 = vsel %vm878, %v3744, %v3705
        %v3761 = vsel %vm878, %v3745, %v3707
        %v3762 = vsel %vm878, %v3746, %v3709
        %v3763 = vsel %vm878, %v3747, %v3711
        %v3764 = vsel %vm878, %v3748, %v3713
        %v3765 = vsel %vm878, %v3749, %v3715
        %v3766 = vsel %vm878, %v3750, %v3717
        %v3767 = vsel %vm878, %v3751, %v3719
        %s3768 = scalar_lea.vmem %s3, 288
        %v3769 = vld [vmem:[%s3768] sm:$0xff]
        %v3770 = vld [vmem:[%s3768 + $0x8] sm:$0xff]
        %v3771 = vld [vmem:[%s3768 + $0x10] sm:$0xff]
        %v3772 = vld [vmem:[%s3768 + $0x18] sm:$0xff]
        %v3773 = vld [vmem:[%s3768 + $0x20] sm:$0xff]
        %v3774 = vld [vmem:[%s3768 + $0x28] sm:$0xff]
        %v3775 = vld [vmem:[%s3768 + $0x30] sm:$0xff]
        %v3776 = vld [vmem:[%s3768 + $0x38] sm:$0xff]
        %v3777 = vld [vmem:[%s3768 + $0x40] sm:$0xff]
        %v3778 = vld [vmem:[%s3768 + $0x48] sm:$0xff]
        %v3779 = vld [vmem:[%s3768 + $0x50] sm:$0xff]
        %v3780 = vld [vmem:[%s3768 + $0x58] sm:$0xff]
        %s3781 = scalar_lea.vmem %s4, 3
        %v3782 = vld [vmem:[%s3781] sm:$0x1]
        %v3784 = vperm.slane %v3782, 0
        %v3787 = vsel %vm911, %v3752, 0
        %v3790 = vsel %vm911, %v3753, 0
        %v3793 = vsel %vm911, %v3754, 0
        %v3796 = vsel %vm911, %v3755, 0
        %v3799 = vsel %vm911, %v3756, 0
        %v3802 = vsel %vm911, %v3757, 0
        %v3805 = vsel %vm911, %v3758, 0
        %v3808 = vsel %vm911, %v3759, 0
        %v3811 = vsel %vm911, %v3760, 0
        %v3814 = vsel %vm911, %v3761, 0
        %v3817 = vsel %vm911, %v3762, 0
        %v3820 = vsel %vm911, %v3763, 0
        %v3823 = vsel %vm911, %v3764, 0
        %v3826 = vsel %vm911, %v3765, 0
        %v3829 = vsel %vm911, %v3766, 0
        %v3832 = vsel %vm911, %v3767, 0
        %3834 = vmatpush.msra.mxu0 0.0
        %3835 = vmatpush.msra.mxu0 0.0
        %3836 = vmatpush.msra.mxu0 0.0
        %3837 = vmatpush.msra.mxu0 0.0
        %3838 = vmatpush.msra.mxu0 %v3780
        %3839 = vmatpush.msra.mxu0 %v3779
        %3840 = vmatpush.msra.mxu0 %v3778
        %3841 = vmatpush.msra.mxu0 %v3777
        %3842 = vmatpush.msra.mxu0 %v3776
        %3843 = vmatpush.msra.mxu0 %v3775
        %3844 = vmatpush.msra.mxu0 %v3774
        %3845 = vmatpush.msra.mxu0 %v3773
        %3846 = vmatpush.msra.mxu0 %v3772
        %3847 = vmatpush.msra.mxu0 %v3771
        %3848 = vmatpush.msra.mxu0 %v3770
        %3849 = vmatpush.msra.mxu0 %v3769
        %3850 = vmatmul.f32.gmra.mxu0 %v3787
        %v3851 = vpop.f32.mrf.mxu0
        %v3852 = vadd.f32 %v3784, %v3851
        %3853 = vmatmul.f32.gmra.mxu0 %v3790
        %v3854 = vpop.f32.mrf.mxu0
        %v3855 = vadd.f32 %v3784, %v3854
        %3856 = vmatmul.f32.gmra.mxu0 %v3793
        %v3857 = vpop.f32.mrf.mxu0
        %v3858 = vadd.f32 %v3784, %v3857
        %3859 = vmatmul.f32.gmra.mxu0 %v3796
        %v3860 = vpop.f32.mrf.mxu0
        %v3861 = vadd.f32 %v3784, %v3860
        %3862 = vmatmul.f32.gmra.mxu0 %v3799
        %v3863 = vpop.f32.mrf.mxu0
        %v3864 = vadd.f32 %v3784, %v3863
        %3865 = vmatmul.f32.gmra.mxu0 %v3802
        %v3866 = vpop.f32.mrf.mxu0
        %v3867 = vadd.f32 %v3784, %v3866
        %3868 = vmatmul.f32.gmra.mxu0 %v3805
        %v3869 = vpop.f32.mrf.mxu0
        %v3870 = vadd.f32 %v3784, %v3869
        %3871 = vmatmul.f32.gmra.mxu0 %v3808
        %v3872 = vpop.f32.mrf.mxu0
        %v3873 = vadd.f32 %v3784, %v3872
        %3874 = vmatmul.f32.gmra.mxu0 %v3811
        %v3875 = vpop.f32.mrf.mxu0
        %v3876 = vadd.f32 %v3784, %v3875
        %3877 = vmatmul.f32.gmra.mxu0 %v3814
        %v3878 = vpop.f32.mrf.mxu0
        %v3879 = vadd.f32 %v3784, %v3878
        %3880 = vmatmul.f32.gmra.mxu0 %v3817
        %v3881 = vpop.f32.mrf.mxu0
        %v3882 = vadd.f32 %v3784, %v3881
        %3883 = vmatmul.f32.gmra.mxu0 %v3820
        %v3884 = vpop.f32.mrf.mxu0
        %v3885 = vadd.f32 %v3784, %v3884
        %3886 = vmatmul.f32.gmra.mxu0 %v3823
        %v3887 = vpop.f32.mrf.mxu0
        %v3888 = vadd.f32 %v3784, %v3887
        %3889 = vmatmul.f32.gmra.mxu0 %v3826
        %v3890 = vpop.f32.mrf.mxu0
        %v3891 = vadd.f32 %v3784, %v3890
        %3892 = vmatmul.f32.gmra.mxu0 %v3829
        %v3893 = vpop.f32.mrf.mxu0
        %v3894 = vadd.f32 %v3784, %v3893
        %3895 = vmatmul.f32.gmra.mxu0 %v3832
        %v3896 = vpop.f32.mrf.mxu0
        %v3897 = vadd.f32 %v3784, %v3896
        %3898 = vdwg.mxu0
        %v3899 = vxor.u32 %v3852, 2147483648
        %v3900 = vxor.u32 %v3855, 2147483648
        %v3901 = vxor.u32 %v3858, 2147483648
        %v3902 = vxor.u32 %v3861, 2147483648
        %v3903 = vxor.u32 %v3864, 2147483648
        %v3904 = vxor.u32 %v3867, 2147483648
        %v3905 = vxor.u32 %v3870, 2147483648
        %v3906 = vxor.u32 %v3873, 2147483648
        %v3907 = vxor.u32 %v3876, 2147483648
        %v3908 = vxor.u32 %v3879, 2147483648
        %v3909 = vxor.u32 %v3882, 2147483648
        %v3910 = vxor.u32 %v3885, 2147483648
        %v3911 = vxor.u32 %v3888, 2147483648
        %v3912 = vxor.u32 %v3891, 2147483648
        %v3913 = vxor.u32 %v3894, 2147483648
        %v3914 = vxor.u32 %v3897, 2147483648
        %v3915 = vmul.f32 %v3899, 1.442695
        %v3916 = vpow.pop %v3915
        %v3917 = vmul.f32 %v3900, 1.442695
        %v3918 = vpow.pop %v3917
        %v3919 = vmul.f32 %v3901, 1.442695
        %v3920 = vpow.pop %v3919
        %v3921 = vmul.f32 %v3902, 1.442695
        %v3922 = vpow.pop %v3921
        %v3923 = vmul.f32 %v3903, 1.442695
        %v3924 = vpow.pop %v3923
        %v3925 = vmul.f32 %v3904, 1.442695
        %v3926 = vpow.pop %v3925
        %v3927 = vmul.f32 %v3905, 1.442695
        %v3928 = vpow.pop %v3927
        %v3929 = vmul.f32 %v3906, 1.442695
        %v3930 = vpow.pop %v3929
        %v3931 = vmul.f32 %v3907, 1.442695
        %v3932 = vpow.pop %v3931
        %v3933 = vmul.f32 %v3908, 1.442695
        %v3934 = vpow.pop %v3933
        %v3935 = vmul.f32 %v3909, 1.442695
        %v3936 = vpow.pop %v3935
        %v3937 = vmul.f32 %v3910, 1.442695
        %v3938 = vpow.pop %v3937
        %v3939 = vmul.f32 %v3911, 1.442695
        %v3940 = vpow.pop %v3939
        %v3941 = vmul.f32 %v3912, 1.442695
        %v3942 = vpow.pop %v3941
        %v3943 = vmul.f32 %v3913, 1.442695
        %v3944 = vpow.pop %v3943
        %v3945 = vmul.f32 %v3914, 1.442695
        %v3946 = vpow.pop %v3945
        %v3947 = vadd.f32 %v3916, 1.0
        %v3948 = vadd.f32 %v3918, 1.0
        %v3949 = vadd.f32 %v3920, 1.0
        %v3950 = vadd.f32 %v3922, 1.0
        %v3951 = vadd.f32 %v3924, 1.0
        %v3952 = vadd.f32 %v3926, 1.0
        %v3953 = vadd.f32 %v3928, 1.0
        %v3954 = vadd.f32 %v3930, 1.0
        %v3955 = vadd.f32 %v3932, 1.0
        %v3956 = vadd.f32 %v3934, 1.0
        %v3957 = vadd.f32 %v3936, 1.0
        %v3958 = vadd.f32 %v3938, 1.0
        %v3959 = vadd.f32 %v3940, 1.0
        %v3960 = vadd.f32 %v3942, 1.0
        %v3961 = vadd.f32 %v3944, 1.0
        %v3962 = vadd.f32 %v3946, 1.0
        %v3963 = vrcp.pop %v3947
        %v3964 = vmul.f32 %v3947, %v3963
        %v3965 = vsub.f32 1.0, %v3964
        %v3966 = vmul.f32 %v3963, %v3965
        %v3967 = vadd.f32 %v3963, %v3966
        %vm3968 = vweird.f32 %v3947
        %vm3969 = vweird.f32 %v3963
        %vm3970 = vmor %vm3968, %vm3969
        %v3971 = vsel %vm3970, %v3963, %v3967
        %v3972 = vand.u32 2147483647, %v3947
        %vm3973 = vcmp.eq.f32.partialorder %v3972, 8.507059e+37
        %v3974 = vand.u32 %v3947, 2147483648
        %v3975 = vor.u32 1.1754944e-38, %v3974
        %v3976 = vsel %vm3973, %v3975, %v3971
        %v3977 = vmul.f32 1.0, %v3976
        %v3978 = vrcp.pop %v3948
        %v3979 = vmul.f32 %v3948, %v3978
        %v3980 = vsub.f32 1.0, %v3979
        %v3981 = vmul.f32 %v3978, %v3980
        %v3982 = vadd.f32 %v3978, %v3981
        %vm3983 = vweird.f32 %v3948
        %vm3984 = vweird.f32 %v3978
        %vm3985 = vmor %vm3983, %vm3984
        %v3986 = vsel %vm3985, %v3978, %v3982
        %v3987 = vand.u32 2147483647, %v3948
        %vm3988 = vcmp.eq.f32.partialorder %v3987, 8.507059e+37
        %v3989 = vand.u32 %v3948, 2147483648
        %v3990 = vor.u32 1.1754944e-38, %v3989
        %v3991 = vsel %vm3988, %v3990, %v3986
        %v3992 = vmul.f32 1.0, %v3991
        %v3993 = vrcp.pop %v3949
        %v3994 = vmul.f32 %v3949, %v3993
        %v3995 = vsub.f32 1.0, %v3994
        %v3996 = vmul.f32 %v3993, %v3995
        %v3997 = vadd.f32 %v3993, %v3996
        %vm3998 = vweird.f32 %v3949
        %vm3999 = vweird.f32 %v3993
        %vm4000 = vmor %vm3998, %vm3999
        %v4001 = vsel %vm4000, %v3993, %v3997
        %v4002 = vand.u32 2147483647, %v3949
        %vm4003 = vcmp.eq.f32.partialorder %v4002, 8.507059e+37
        %v4004 = vand.u32 %v3949, 2147483648
        %v4005 = vor.u32 1.1754944e-38, %v4004
        %v4006 = vsel %vm4003, %v4005, %v4001
        %v4007 = vmul.f32 1.0, %v4006
        %v4008 = vrcp.pop %v3950
        %v4009 = vmul.f32 %v3950, %v4008
        %v4010 = vsub.f32 1.0, %v4009
        %v4011 = vmul.f32 %v4008, %v4010
        %v4012 = vadd.f32 %v4008, %v4011
        %vm4013 = vweird.f32 %v3950
        %vm4014 = vweird.f32 %v4008
        %vm4015 = vmor %vm4013, %vm4014
        %v4016 = vsel %vm4015, %v4008, %v4012
        %v4017 = vand.u32 2147483647, %v3950
        %vm4018 = vcmp.eq.f32.partialorder %v4017, 8.507059e+37
        %v4019 = vand.u32 %v3950, 2147483648
        %v4020 = vor.u32 1.1754944e-38, %v4019
        %v4021 = vsel %vm4018, %v4020, %v4016
        %v4022 = vmul.f32 1.0, %v4021
        %v4023 = vrcp.pop %v3951
        %v4024 = vmul.f32 %v3951, %v4023
        %v4025 = vsub.f32 1.0, %v4024
        %v4026 = vmul.f32 %v4023, %v4025
        %v4027 = vadd.f32 %v4023, %v4026
        %vm4028 = vweird.f32 %v3951
        %vm4029 = vweird.f32 %v4023
        %vm4030 = vmor %vm4028, %vm4029
        %v4031 = vsel %vm4030, %v4023, %v4027
        %v4032 = vand.u32 2147483647, %v3951
        %vm4033 = vcmp.eq.f32.partialorder %v4032, 8.507059e+37
        %v4034 = vand.u32 %v3951, 2147483648
        %v4035 = vor.u32 1.1754944e-38, %v4034
        %v4036 = vsel %vm4033, %v4035, %v4031
        %v4037 = vmul.f32 1.0, %v4036
        %v4038 = vrcp.pop %v3952
        %v4039 = vmul.f32 %v3952, %v4038
        %v4040 = vsub.f32 1.0, %v4039
        %v4041 = vmul.f32 %v4038, %v4040
        %v4042 = vadd.f32 %v4038, %v4041
        %vm4043 = vweird.f32 %v3952
        %vm4044 = vweird.f32 %v4038
        %vm4045 = vmor %vm4043, %vm4044
        %v4046 = vsel %vm4045, %v4038, %v4042
        %v4047 = vand.u32 2147483647, %v3952
        %vm4048 = vcmp.eq.f32.partialorder %v4047, 8.507059e+37
        %v4049 = vand.u32 %v3952, 2147483648
        %v4050 = vor.u32 1.1754944e-38, %v4049
        %v4051 = vsel %vm4048, %v4050, %v4046
        %v4052 = vmul.f32 1.0, %v4051
        %v4053 = vrcp.pop %v3953
        %v4054 = vmul.f32 %v3953, %v4053
        %v4055 = vsub.f32 1.0, %v4054
        %v4056 = vmul.f32 %v4053, %v4055
        %v4057 = vadd.f32 %v4053, %v4056
        %vm4058 = vweird.f32 %v3953
        %vm4059 = vweird.f32 %v4053
        %vm4060 = vmor %vm4058, %vm4059
        %v4061 = vsel %vm4060, %v4053, %v4057
        %v4062 = vand.u32 2147483647, %v3953
        %vm4063 = vcmp.eq.f32.partialorder %v4062, 8.507059e+37
        %v4064 = vand.u32 %v3953, 2147483648
        %v4065 = vor.u32 1.1754944e-38, %v4064
        %v4066 = vsel %vm4063, %v4065, %v4061
        %v4067 = vmul.f32 1.0, %v4066
        %v4068 = vrcp.pop %v3954
        %v4069 = vmul.f32 %v3954, %v4068
        %v4070 = vsub.f32 1.0, %v4069
        %v4071 = vmul.f32 %v4068, %v4070
        %v4072 = vadd.f32 %v4068, %v4071
        %vm4073 = vweird.f32 %v3954
        %vm4074 = vweird.f32 %v4068
        %vm4075 = vmor %vm4073, %vm4074
        %v4076 = vsel %vm4075, %v4068, %v4072
        %v4077 = vand.u32 2147483647, %v3954
        %vm4078 = vcmp.eq.f32.partialorder %v4077, 8.507059e+37
        %v4079 = vand.u32 %v3954, 2147483648
        %v4080 = vor.u32 1.1754944e-38, %v4079
        %v4081 = vsel %vm4078, %v4080, %v4076
        %v4082 = vmul.f32 1.0, %v4081
        %v4083 = vrcp.pop %v3955
        %v4084 = vmul.f32 %v3955, %v4083
        %v4085 = vsub.f32 1.0, %v4084
        %v4086 = vmul.f32 %v4083, %v4085
        %v4087 = vadd.f32 %v4083, %v4086
        %vm4088 = vweird.f32 %v3955
        %vm4089 = vweird.f32 %v4083
        %vm4090 = vmor %vm4088, %vm4089
        %v4091 = vsel %vm4090, %v4083, %v4087
        %v4092 = vand.u32 2147483647, %v3955
        %vm4093 = vcmp.eq.f32.partialorder %v4092, 8.507059e+37
        %v4094 = vand.u32 %v3955, 2147483648
        %v4095 = vor.u32 1.1754944e-38, %v4094
        %v4096 = vsel %vm4093, %v4095, %v4091
        %v4097 = vmul.f32 1.0, %v4096
        %v4098 = vrcp.pop %v3956
        %v4099 = vmul.f32 %v3956, %v4098
        %v4100 = vsub.f32 1.0, %v4099
        %v4101 = vmul.f32 %v4098, %v4100
        %v4102 = vadd.f32 %v4098, %v4101
        %vm4103 = vweird.f32 %v3956
        %vm4104 = vweird.f32 %v4098
        %vm4105 = vmor %vm4103, %vm4104
        %v4106 = vsel %vm4105, %v4098, %v4102
        %v4107 = vand.u32 2147483647, %v3956
        %vm4108 = vcmp.eq.f32.partialorder %v4107, 8.507059e+37
        %v4109 = vand.u32 %v3956, 2147483648
        %v4110 = vor.u32 1.1754944e-38, %v4109
        %v4111 = vsel %vm4108, %v4110, %v4106
        %v4112 = vmul.f32 1.0, %v4111
        %v4113 = vrcp.pop %v3957
        %v4114 = vmul.f32 %v3957, %v4113
        %v4115 = vsub.f32 1.0, %v4114
        %v4116 = vmul.f32 %v4113, %v4115
        %v4117 = vadd.f32 %v4113, %v4116
        %vm4118 = vweird.f32 %v3957
        %vm4119 = vweird.f32 %v4113
        %vm4120 = vmor %vm4118, %vm4119
        %v4121 = vsel %vm4120, %v4113, %v4117
        %v4122 = vand.u32 2147483647, %v3957
        %vm4123 = vcmp.eq.f32.partialorder %v4122, 8.507059e+37
        %v4124 = vand.u32 %v3957, 2147483648
        %v4125 = vor.u32 1.1754944e-38, %v4124
        %v4126 = vsel %vm4123, %v4125, %v4121
        %v4127 = vmul.f32 1.0, %v4126
        %v4128 = vrcp.pop %v3958
        %v4129 = vmul.f32 %v3958, %v4128
        %v4130 = vsub.f32 1.0, %v4129
        %v4131 = vmul.f32 %v4128, %v4130
        %v4132 = vadd.f32 %v4128, %v4131
        %vm4133 = vweird.f32 %v3958
        %vm4134 = vweird.f32 %v4128
        %vm4135 = vmor %vm4133, %vm4134
        %v4136 = vsel %vm4135, %v4128, %v4132
        %v4137 = vand.u32 2147483647, %v3958
        %vm4138 = vcmp.eq.f32.partialorder %v4137, 8.507059e+37
        %v4139 = vand.u32 %v3958, 2147483648
        %v4140 = vor.u32 1.1754944e-38, %v4139
        %v4141 = vsel %vm4138, %v4140, %v4136
        %v4142 = vmul.f32 1.0, %v4141
        %v4143 = vrcp.pop %v3959
        %v4144 = vmul.f32 %v3959, %v4143
        %v4145 = vsub.f32 1.0, %v4144
        %v4146 = vmul.f32 %v4143, %v4145
        %v4147 = vadd.f32 %v4143, %v4146
        %vm4148 = vweird.f32 %v3959
        %vm4149 = vweird.f32 %v4143
        %vm4150 = vmor %vm4148, %vm4149
        %v4151 = vsel %vm4150, %v4143, %v4147
        %v4152 = vand.u32 2147483647, %v3959
        %vm4153 = vcmp.eq.f32.partialorder %v4152, 8.507059e+37
        %v4154 = vand.u32 %v3959, 2147483648
        %v4155 = vor.u32 1.1754944e-38, %v4154
        %v4156 = vsel %vm4153, %v4155, %v4151
        %v4157 = vmul.f32 1.0, %v4156
        %v4158 = vrcp.pop %v3960
        %v4159 = vmul.f32 %v3960, %v4158
        %v4160 = vsub.f32 1.0, %v4159
        %v4161 = vmul.f32 %v4158, %v4160
        %v4162 = vadd.f32 %v4158, %v4161
        %vm4163 = vweird.f32 %v3960
        %vm4164 = vweird.f32 %v4158
        %vm4165 = vmor %vm4163, %vm4164
        %v4166 = vsel %vm4165, %v4158, %v4162
        %v4167 = vand.u32 2147483647, %v3960
        %vm4168 = vcmp.eq.f32.partialorder %v4167, 8.507059e+37
        %v4169 = vand.u32 %v3960, 2147483648
        %v4170 = vor.u32 1.1754944e-38, %v4169
        %v4171 = vsel %vm4168, %v4170, %v4166
        %v4172 = vmul.f32 1.0, %v4171
        %v4173 = vrcp.pop %v3961
        %v4174 = vmul.f32 %v3961, %v4173
        %v4175 = vsub.f32 1.0, %v4174
        %v4176 = vmul.f32 %v4173, %v4175
        %v4177 = vadd.f32 %v4173, %v4176
        %vm4178 = vweird.f32 %v3961
        %vm4179 = vweird.f32 %v4173
        %vm4180 = vmor %vm4178, %vm4179
        %v4181 = vsel %vm4180, %v4173, %v4177
        %v4182 = vand.u32 2147483647, %v3961
        %vm4183 = vcmp.eq.f32.partialorder %v4182, 8.507059e+37
        %v4184 = vand.u32 %v3961, 2147483648
        %v4185 = vor.u32 1.1754944e-38, %v4184
        %v4186 = vsel %vm4183, %v4185, %v4181
        %v4187 = vmul.f32 1.0, %v4186
        %v4188 = vrcp.pop %v3962
        %v4189 = vmul.f32 %v3962, %v4188
        %v4190 = vsub.f32 1.0, %v4189
        %v4191 = vmul.f32 %v4188, %v4190
        %v4192 = vadd.f32 %v4188, %v4191
        %vm4193 = vweird.f32 %v3962
        %vm4194 = vweird.f32 %v4188
        %vm4195 = vmor %vm4193, %vm4194
        %v4196 = vsel %vm4195, %v4188, %v4192
        %v4197 = vand.u32 2147483647, %v3962
        %vm4198 = vcmp.eq.f32.partialorder %v4197, 8.507059e+37
        %v4199 = vand.u32 %v3962, 2147483648
        %v4200 = vor.u32 1.1754944e-38, %v4199
        %v4201 = vsel %vm4198, %v4200, %v4196
        %v4202 = vmul.f32 1.0, %v4201
        %v4203 = vtanh.pop %v3852
        %v4204 = vtanh.pop %v3855
        %v4205 = vtanh.pop %v3858
        %v4206 = vtanh.pop %v3861
        %v4207 = vtanh.pop %v3864
        %v4208 = vtanh.pop %v3867
        %v4209 = vtanh.pop %v3870
        %v4210 = vtanh.pop %v3873
        %v4211 = vtanh.pop %v3876
        %v4212 = vtanh.pop %v3879
        %v4213 = vtanh.pop %v3882
        %v4214 = vtanh.pop %v3885
        %v4215 = vtanh.pop %v3888
        %v4216 = vtanh.pop %v3891
        %v4217 = vtanh.pop %v3894
        %v4218 = vtanh.pop %v3897
        %4235 = vrot.lane.b32.xlu0 %v4203, 96
        %v4236 = vpop.permute.xlu0 %4235
        %4237 = vrot.lane.b32.xlu0 %v4204, 96
        %v4238 = vpop.permute.xlu0 %4237
        %4239 = vrot.lane.b32.xlu0 %v4205, 96
        %v4240 = vpop.permute.xlu0 %4239
        %4241 = vrot.lane.b32.xlu0 %v4206, 96
        %v4242 = vpop.permute.xlu0 %4241
        %4243 = vrot.lane.b32.xlu0 %v4207, 96
        %v4244 = vpop.permute.xlu0 %4243
        %4245 = vrot.lane.b32.xlu0 %v4208, 96
        %v4246 = vpop.permute.xlu0 %4245
        %4247 = vrot.lane.b32.xlu0 %v4209, 96
        %v4248 = vpop.permute.xlu0 %4247
        %4249 = vrot.lane.b32.xlu0 %v4210, 96
        %v4250 = vpop.permute.xlu0 %4249
        %4251 = vrot.lane.b32.xlu0 %v4211, 96
        %v4252 = vpop.permute.xlu0 %4251
        %4253 = vrot.lane.b32.xlu0 %v4212, 96
        %v4254 = vpop.permute.xlu0 %4253
        %4255 = vrot.lane.b32.xlu0 %v4213, 96
        %v4256 = vpop.permute.xlu0 %4255
        %4257 = vrot.lane.b32.xlu0 %v4214, 96
        %v4258 = vpop.permute.xlu0 %4257
        %4259 = vrot.lane.b32.xlu0 %v4215, 96
        %v4260 = vpop.permute.xlu0 %4259
        %4261 = vrot.lane.b32.xlu0 %v4216, 96
        %v4262 = vpop.permute.xlu0 %4261
        %4263 = vrot.lane.b32.xlu0 %v4217, 96
        %v4264 = vpop.permute.xlu0 %4263
        %4265 = vrot.lane.b32.xlu0 %v4218, 96
        %v4266 = vpop.permute.xlu0 %4265
        %v4283 = vmul.f32 %v3977, %v4236
        %v4284 = vmul.f32 %v3992, %v4238
        %v4285 = vmul.f32 %v4007, %v4240
        %v4286 = vmul.f32 %v4022, %v4242
        %v4287 = vmul.f32 %v4037, %v4244
        %v4288 = vmul.f32 %v4052, %v4246
        %v4289 = vmul.f32 %v4067, %v4248
        %v4290 = vmul.f32 %v4082, %v4250
        %v4291 = vmul.f32 %v4097, %v4252
        %v4292 = vmul.f32 %v4112, %v4254
        %v4293 = vmul.f32 %v4127, %v4256
        %v4294 = vmul.f32 %v4142, %v4258
        %v4295 = vmul.f32 %v4157, %v4260
        %v4296 = vmul.f32 %v4172, %v4262
        %v4297 = vmul.f32 %v4187, %v4264
        %v4298 = vmul.f32 %v4202, %v4266
        %s4299 = scalar_lea.vmem %s5, 96
        %v4300 = vld [vmem:[%s4299] sm:$0xff]
        %v4301 = vld [vmem:[%s4299 + $0x8] sm:$0xff]
        %v4302 = vld [vmem:[%s4299 + $0x10] sm:$0xff]
        %v4303 = vld [vmem:[%s4299 + $0x18] sm:$0xff]
        %s4304 = scalar_lea.vmem %s6, 3
        %v4305 = vld [vmem:[%s4304] sm:$0x1]
        %v4307 = vperm.slane %v4305, 0
        %v4310 = vsel %vm861, %v4283, 0
        %v4313 = vsel %vm861, %v4284, 0
        %v4316 = vsel %vm861, %v4285, 0
        %v4319 = vsel %vm861, %v4286, 0
        %v4322 = vsel %vm861, %v4287, 0
        %v4325 = vsel %vm861, %v4288, 0
        %v4328 = vsel %vm861, %v4289, 0
        %v4331 = vsel %vm861, %v4290, 0
        %v4334 = vsel %vm861, %v4291, 0
        %v4337 = vsel %vm861, %v4292, 0
        %v4340 = vsel %vm861, %v4293, 0
        %v4343 = vsel %vm861, %v4294, 0
        %v4346 = vsel %vm861, %v4295, 0
        %v4349 = vsel %vm861, %v4296, 0
        %v4352 = vsel %vm861, %v4297, 0
        %v4355 = vsel %vm861, %v4298, 0
        %4357 = vmatpush.msra.mxu0 0.0
        %4358 = vmatpush.msra.mxu0 0.0
        %4359 = vmatpush.msra.mxu0 0.0
        %4360 = vmatpush.msra.mxu0 0.0
        %4361 = vmatpush.msra.mxu0 0.0
        %4362 = vmatpush.msra.mxu0 0.0
        %4363 = vmatpush.msra.mxu0 0.0
        %4364 = vmatpush.msra.mxu0 0.0
        %4365 = vmatpush.msra.mxu0 0.0
        %4366 = vmatpush.msra.mxu0 0.0
        %4367 = vmatpush.msra.mxu0 0.0
        %4368 = vmatpush.msra.mxu0 0.0
        %4369 = vmatpush.msra.mxu0 %v4303
        %4370 = vmatpush.msra.mxu0 %v4302
        %4371 = vmatpush.msra.mxu0 %v4301
        %4372 = vmatpush.msra.mxu0 %v4300
        %4373 = vmatmul.f32.gmra.mxu0 %v4310
        %v4374 = vpop.f32.mrf.mxu0
        %v4375 = vadd.f32 %v4307, %v4374
        %4376 = vmatmul.f32.gmra.mxu0 %v4313
        %v4377 = vpop.f32.mrf.mxu0
        %v4378 = vadd.f32 %v4307, %v4377
        %4379 = vmatmul.f32.gmra.mxu0 %v4316
        %v4380 = vpop.f32.mrf.mxu0
        %v4381 = vadd.f32 %v4307, %v4380
        %4382 = vmatmul.f32.gmra.mxu0 %v4319
        %v4383 = vpop.f32.mrf.mxu0
        %v4384 = vadd.f32 %v4307, %v4383
        %4385 = vmatmul.f32.gmra.mxu0 %v4322
        %v4386 = vpop.f32.mrf.mxu0
        %v4387 = vadd.f32 %v4307, %v4386
        %4388 = vmatmul.f32.gmra.mxu0 %v4325
        %v4389 = vpop.f32.mrf.mxu0
        %v4390 = vadd.f32 %v4307, %v4389
        %4391 = vmatmul.f32.gmra.mxu0 %v4328
        %v4392 = vpop.f32.mrf.mxu0
        %v4393 = vadd.f32 %v4307, %v4392
        %4394 = vmatmul.f32.gmra.mxu0 %v4331
        %v4395 = vpop.f32.mrf.mxu0
        %v4396 = vadd.f32 %v4307, %v4395
        %4397 = vmatmul.f32.gmra.mxu0 %v4334
        %v4398 = vpop.f32.mrf.mxu0
        %v4399 = vadd.f32 %v4307, %v4398
        %4400 = vmatmul.f32.gmra.mxu0 %v4337
        %v4401 = vpop.f32.mrf.mxu0
        %v4402 = vadd.f32 %v4307, %v4401
        %4403 = vmatmul.f32.gmra.mxu0 %v4340
        %v4404 = vpop.f32.mrf.mxu0
        %v4405 = vadd.f32 %v4307, %v4404
        %4406 = vmatmul.f32.gmra.mxu0 %v4343
        %v4407 = vpop.f32.mrf.mxu0
        %v4408 = vadd.f32 %v4307, %v4407
        %4409 = vmatmul.f32.gmra.mxu0 %v4346
        %v4410 = vpop.f32.mrf.mxu0
        %v4411 = vadd.f32 %v4307, %v4410
        %4412 = vmatmul.f32.gmra.mxu0 %v4349
        %v4413 = vpop.f32.mrf.mxu0
        %v4414 = vadd.f32 %v4307, %v4413
        %4415 = vmatmul.f32.gmra.mxu0 %v4352
        %v4416 = vpop.f32.mrf.mxu0
        %v4417 = vadd.f32 %v4307, %v4416
        %4418 = vmatmul.f32.gmra.mxu0 %v4355
        %v4419 = vpop.f32.mrf.mxu0
        %v4420 = vadd.f32 %v4307, %v4419
        %4421 = vdwg.mxu0
        %v4422 = vadd.f32 %v3496, %v4375
        %v4423 = vadd.f32 %v3497, %v4378
        %v4424 = vadd.f32 %v3498, %v4381
        %v4425 = vadd.f32 %v3499, %v4384
        %v4426 = vadd.f32 %v3500, %v4387
        %v4427 = vadd.f32 %v3501, %v4390
        %v4428 = vadd.f32 %v3502, %v4393
        %v4429 = vadd.f32 %v3503, %v4396
        %v4430 = vadd.f32 %v3504, %v4399
        %v4431 = vadd.f32 %v3505, %v4402
        %v4432 = vadd.f32 %v3506, %v4405
        %v4433 = vadd.f32 %v3507, %v4408
        %v4434 = vadd.f32 %v3508, %v4411
        %v4435 = vadd.f32 %v3509, %v4414
        %v4436 = vadd.f32 %v3510, %v4417
        %v4437 = vadd.f32 %v3511, %v4420
        %v4438 = vmul.f32 %v4422, 0.5
        %v4439 = vmul.f32 %v4423, 0.5
        %v4440 = vmul.f32 %v4424, 0.5
        %v4441 = vmul.f32 %v4425, 0.5
        %v4442 = vmul.f32 %v4426, 0.5
        %v4443 = vmul.f32 %v4427, 0.5
        %v4444 = vmul.f32 %v4428, 0.5
        %v4445 = vmul.f32 %v4429, 0.5
        %v4446 = vmul.f32 %v4430, 0.5
        %v4447 = vmul.f32 %v4431, 0.5
        %v4448 = vmul.f32 %v4432, 0.5
        %v4449 = vmul.f32 %v4433, 0.5
        %v4450 = vmul.f32 %v4434, 0.5
        %v4451 = vmul.f32 %v4435, 0.5
        %v4452 = vmul.f32 %v4436, 0.5
        %v4453 = vmul.f32 %v4437, 0.5
        %v4454 = vld [vmem:[%s7] sm:$0xff]
        %v4455 = vld [vmem:[%s7 + $0x8] sm:$0xff]
        %v4456 = vld [vmem:[%s7 + $0x10] sm:$0xff]
        %v4457 = vld [vmem:[%s7 + $0x18] sm:$0xff]
        %v4458 = vld [vmem:[%s8] sm:$0x1]
        %v4460 = vperm.slane %v4458, 0
        %4478 = vrot.lane.b32.xlu0 %v4438, 96
        %v4479 = vpop.permute.xlu0 %4478
        %4480 = vrot.lane.b32.xlu0 %v4439, 96
        %v4481 = vpop.permute.xlu0 %4480
        %4482 = vrot.lane.b32.xlu0 %v4440, 96
        %v4483 = vpop.permute.xlu0 %4482
        %4484 = vrot.lane.b32.xlu0 %v4441, 96
        %v4485 = vpop.permute.xlu0 %4484
        %4486 = vrot.lane.b32.xlu0 %v4442, 96
        %v4487 = vpop.permute.xlu0 %4486
        %4488 = vrot.lane.b32.xlu0 %v4443, 96
        %v4489 = vpop.permute.xlu0 %4488
        %4490 = vrot.lane.b32.xlu0 %v4444, 96
        %v4491 = vpop.permute.xlu0 %4490
        %4492 = vrot.lane.b32.xlu0 %v4445, 96
        %v4493 = vpop.permute.xlu0 %4492
        %4494 = vrot.lane.b32.xlu0 %v4446, 96
        %v4495 = vpop.permute.xlu0 %4494
        %4496 = vrot.lane.b32.xlu0 %v4447, 96
        %v4497 = vpop.permute.xlu0 %4496
        %4498 = vrot.lane.b32.xlu0 %v4448, 96
        %v4499 = vpop.permute.xlu0 %4498
        %4500 = vrot.lane.b32.xlu0 %v4449, 96
        %v4501 = vpop.permute.xlu0 %4500
        %4502 = vrot.lane.b32.xlu0 %v4450, 96
        %v4503 = vpop.permute.xlu0 %4502
        %4504 = vrot.lane.b32.xlu0 %v4451, 96
        %v4505 = vpop.permute.xlu0 %4504
        %4506 = vrot.lane.b32.xlu0 %v4452, 96
        %v4507 = vpop.permute.xlu0 %4506
        %4508 = vrot.lane.b32.xlu0 %v4453, 96
        %v4509 = vpop.permute.xlu0 %4508
        %v4510 = vsel %vm861, %v4479, 0
        %v4512 = vsel %vm861, %v4481, 0
        %v4514 = vsel %vm861, %v4483, 0
        %v4516 = vsel %vm861, %v4485, 0
        %v4518 = vsel %vm861, %v4487, 0
        %v4520 = vsel %vm861, %v4489, 0
        %v4522 = vsel %vm861, %v4491, 0
        %v4524 = vsel %vm861, %v4493, 0
        %v4526 = vsel %vm861, %v4495, 0
        %v4528 = vsel %vm861, %v4497, 0
        %v4530 = vsel %vm861, %v4499, 0
        %v4532 = vsel %vm861, %v4501, 0
        %v4534 = vsel %vm861, %v4503, 0
        %v4536 = vsel %vm861, %v4505, 0
        %v4538 = vsel %vm861, %v4507, 0
        %v4540 = vsel %vm861, %v4509, 0
        %4542 = vmatpush.msra.mxu0 0.0
        %4543 = vmatpush.msra.mxu0 0.0
        %4544 = vmatpush.msra.mxu0 0.0
        %4545 = vmatpush.msra.mxu0 0.0
        %4546 = vmatpush.msra.mxu0 0.0
        %4547 = vmatpush.msra.mxu0 0.0
        %4548 = vmatpush.msra.mxu0 0.0
        %4549 = vmatpush.msra.mxu0 0.0
        %4550 = vmatpush.msra.mxu0 0.0
        %4551 = vmatpush.msra.mxu0 0.0
        %4552 = vmatpush.msra.mxu0 0.0
        %4553 = vmatpush.msra.mxu0 0.0
        %4554 = vmatpush.msra.mxu0 %v4457
        %4555 = vmatpush.msra.mxu0 %v4456
        %4556 = vmatpush.msra.mxu0 %v4455
        %4557 = vmatpush.msra.mxu0 %v4454
        %4558 = vmatmul.f32.gmra.mxu0 %v4510
        %v4559 = vpop.f32.mrf.mxu0
        %v4560 = vadd.f32 %v4460, %v4559
        %4561 = vmatmul.f32.gmra.mxu0 %v4512
        %v4562 = vpop.f32.mrf.mxu0
        %v4563 = vadd.f32 %v4460, %v4562
        %4564 = vmatmul.f32.gmra.mxu0 %v4514
        %v4565 = vpop.f32.mrf.mxu0
        %v4566 = vadd.f32 %v4460, %v4565
        %4567 = vmatmul.f32.gmra.mxu0 %v4516
        %v4568 = vpop.f32.mrf.mxu0
        %v4569 = vadd.f32 %v4460, %v4568
        %4570 = vmatmul.f32.gmra.mxu0 %v4518
        %v4571 = vpop.f32.mrf.mxu0
        %v4572 = vadd.f32 %v4460, %v4571
        %4573 = vmatmul.f32.gmra.mxu0 %v4520
        %v4574 = vpop.f32.mrf.mxu0
        %v4575 = vadd.f32 %v4460, %v4574
        %4576 = vmatmul.f32.gmra.mxu0 %v4522
        %v4577 = vpop.f32.mrf.mxu0
        %v4578 = vadd.f32 %v4460, %v4577
        %4579 = vmatmul.f32.gmra.mxu0 %v4524
        %v4580 = vpop.f32.mrf.mxu0
        %v4581 = vadd.f32 %v4460, %v4580
        %4582 = vmatmul.f32.gmra.mxu0 %v4526
        %v4583 = vpop.f32.mrf.mxu0
        %v4584 = vadd.f32 %v4460, %v4583
        %4585 = vmatmul.f32.gmra.mxu0 %v4528
        %v4586 = vpop.f32.mrf.mxu0
        %v4587 = vadd.f32 %v4460, %v4586
        %4588 = vmatmul.f32.gmra.mxu0 %v4530
        %v4589 = vpop.f32.mrf.mxu0
        %v4590 = vadd.f32 %v4460, %v4589
        %4591 = vmatmul.f32.gmra.mxu0 %v4532
        %v4592 = vpop.f32.mrf.mxu0
        %v4593 = vadd.f32 %v4460, %v4592
        %4594 = vmatmul.f32.gmra.mxu0 %v4534
        %v4595 = vpop.f32.mrf.mxu0
        %v4596 = vadd.f32 %v4460, %v4595
        %4597 = vmatmul.f32.gmra.mxu0 %v4536
        %v4598 = vpop.f32.mrf.mxu0
        %v4599 = vadd.f32 %v4460, %v4598
        %4600 = vmatmul.f32.gmra.mxu0 %v4538
        %v4601 = vpop.f32.mrf.mxu0
        %v4602 = vadd.f32 %v4460, %v4601
        %4603 = vmatmul.f32.gmra.mxu0 %v4540
        %v4604 = vpop.f32.mrf.mxu0
        %v4605 = vadd.f32 %v4460, %v4604
        %4606 = vdwg.mxu0
        %v4607 = vmax.f32 %v4560, 0.0
        %v4608 = vmax.f32 %v4563, 0.0
        %v4609 = vmax.f32 %v4566, 0.0
        %v4610 = vmax.f32 %v4569, 0.0
        %v4611 = vmax.f32 %v4572, 0.0
        %v4612 = vmax.f32 %v4575, 0.0
        %v4613 = vmax.f32 %v4578, 0.0
        %v4614 = vmax.f32 %v4581, 0.0
        %v4615 = vmax.f32 %v4584, 0.0
        %v4616 = vmax.f32 %v4587, 0.0
        %v4617 = vmax.f32 %v4590, 0.0
        %v4618 = vmax.f32 %v4593, 0.0
        %v4619 = vmax.f32 %v4596, 0.0
        %v4620 = vmax.f32 %v4599, 0.0
        %v4621 = vmax.f32 %v4602, 0.0
        %v4622 = vmax.f32 %v4605, 0.0
        %v4623 = vld [vmem:[%s9] sm:$0xff]
        %v4624 = vld [vmem:[%s9 + $0x8] sm:$0xff]
        %v4625 = vld [vmem:[%s9 + $0x10] sm:$0xff]
        %v4626 = vld [vmem:[%s9 + $0x18] sm:$0xff]
        %v4627 = vld [vmem:[%s10] sm:$0x1]
        %v4629 = vperm.slane %v4627, 0
        %v4632 = vsel %vm861, %v4607, 0
        %v4635 = vsel %vm861, %v4608, 0
        %v4638 = vsel %vm861, %v4609, 0
        %v4641 = vsel %vm861, %v4610, 0
        %v4644 = vsel %vm861, %v4611, 0
        %v4647 = vsel %vm861, %v4612, 0
        %v4650 = vsel %vm861, %v4613, 0
        %v4653 = vsel %vm861, %v4614, 0
        %v4656 = vsel %vm861, %v4615, 0
        %v4659 = vsel %vm861, %v4616, 0
        %v4662 = vsel %vm861, %v4617, 0
        %v4665 = vsel %vm861, %v4618, 0
        %v4668 = vsel %vm861, %v4619, 0
        %v4671 = vsel %vm861, %v4620, 0
        %v4674 = vsel %vm861, %v4621, 0
        %v4677 = vsel %vm861, %v4622, 0
        %4679 = vmatpush.msra.mxu0 0.0
        %4680 = vmatpush.msra.mxu0 0.0
        %4681 = vmatpush.msra.mxu0 0.0
        %4682 = vmatpush.msra.mxu0 0.0
        %4683 = vmatpush.msra.mxu0 0.0
        %4684 = vmatpush.msra.mxu0 0.0
        %4685 = vmatpush.msra.mxu0 0.0
        %4686 = vmatpush.msra.mxu0 0.0
        %4687 = vmatpush.msra.mxu0 0.0
        %4688 = vmatpush.msra.mxu0 0.0
        %4689 = vmatpush.msra.mxu0 0.0
        %4690 = vmatpush.msra.mxu0 0.0
        %4691 = vmatpush.msra.mxu0 %v4626
        %4692 = vmatpush.msra.mxu0 %v4625
        %4693 = vmatpush.msra.mxu0 %v4624
        %4694 = vmatpush.msra.mxu0 %v4623
        %4695 = vmatmul.f32.gmra.mxu0 %v4632
        %v4696 = vpop.f32.mrf.mxu0
        %v4697 = vadd.f32 %v4629, %v4696
        %4698 = vmatmul.f32.gmra.mxu0 %v4635
        %v4699 = vpop.f32.mrf.mxu0
        %v4700 = vadd.f32 %v4629, %v4699
        %4701 = vmatmul.f32.gmra.mxu0 %v4638
        %v4702 = vpop.f32.mrf.mxu0
        %v4703 = vadd.f32 %v4629, %v4702
        %4704 = vmatmul.f32.gmra.mxu0 %v4641
        %v4705 = vpop.f32.mrf.mxu0
        %v4706 = vadd.f32 %v4629, %v4705
        %4707 = vmatmul.f32.gmra.mxu0 %v4644
        %v4708 = vpop.f32.mrf.mxu0
        %v4709 = vadd.f32 %v4629, %v4708
        %4710 = vmatmul.f32.gmra.mxu0 %v4647
        %v4711 = vpop.f32.mrf.mxu0
        %v4712 = vadd.f32 %v4629, %v4711
        %4713 = vmatmul.f32.gmra.mxu0 %v4650
        %v4714 = vpop.f32.mrf.mxu0
        %v4715 = vadd.f32 %v4629, %v4714
        %4716 = vmatmul.f32.gmra.mxu0 %v4653
        %v4717 = vpop.f32.mrf.mxu0
        %v4718 = vadd.f32 %v4629, %v4717
        %4719 = vmatmul.f32.gmra.mxu0 %v4656
        %v4720 = vpop.f32.mrf.mxu0
        %v4721 = vadd.f32 %v4629, %v4720
        %4722 = vmatmul.f32.gmra.mxu0 %v4659
        %v4723 = vpop.f32.mrf.mxu0
        %v4724 = vadd.f32 %v4629, %v4723
        %4725 = vmatmul.f32.gmra.mxu0 %v4662
        %v4726 = vpop.f32.mrf.mxu0
        %v4727 = vadd.f32 %v4629, %v4726
        %4728 = vmatmul.f32.gmra.mxu0 %v4665
        %v4729 = vpop.f32.mrf.mxu0
        %v4730 = vadd.f32 %v4629, %v4729
        %4731 = vmatmul.f32.gmra.mxu0 %v4668
        %v4732 = vpop.f32.mrf.mxu0
        %v4733 = vadd.f32 %v4629, %v4732
        %4734 = vmatmul.f32.gmra.mxu0 %v4671
        %v4735 = vpop.f32.mrf.mxu0
        %v4736 = vadd.f32 %v4629, %v4735
        %4737 = vmatmul.f32.gmra.mxu0 %v4674
        %v4738 = vpop.f32.mrf.mxu0
        %v4739 = vadd.f32 %v4629, %v4738
        %4740 = vmatmul.f32.gmra.mxu0 %v4677
        %v4741 = vpop.f32.mrf.mxu0
        %v4742 = vadd.f32 %v4629, %v4741
        %4743 = vdwg.mxu0
        %4744 = vxpose.xlu0.b32.start [1/16] %v4697, 128
        %4745 = vxpose.xlu0.b32.cont [2/16] %v4700, 128
        %4746 = vxpose.xlu0.b32.cont [3/16] %v4703, 128
        %4747 = vxpose.xlu0.b32.cont [4/16] %v4706, 128
        %4748 = vxpose.xlu0.b32.cont [5/16] %v4709, 128
        %4749 = vxpose.xlu0.b32.cont [6/16] %v4712, 128
        %4750 = vxpose.xlu0.b32.cont [7/16] %v4715, 128
        %4751 = vxpose.xlu0.b32.cont [8/16] %v4718, 128
        %4752 = vxpose.xlu0.b32.cont [9/16] 0.0, 128
        %4753 = vxpose.xlu0.b32.cont [10/16] 0.0, 128
        %4754 = vxpose.xlu0.b32.cont [11/16] 0.0, 128
        %4755 = vxpose.xlu0.b32.cont [12/16] 0.0, 128
        %4756 = vxpose.xlu0.b32.cont [13/16] 0.0, 128
        %4757 = vxpose.xlu0.b32.cont [14/16] 0.0, 128
        %4758 = vxpose.xlu0.b32.cont [15/16] 0.0, 128
        %4759 = vxpose.xlu0.b32.end [16/16] 0.0, 128
        %v4760 = vpop.trf.xlu0
        %v4761 = vpop.trf.xlu0
        %v4762 = vpop.trf.xlu0
        %v4763 = vpop.trf.xlu0
        %v4764 = vpop.trf.xlu0
        %v4765 = vpop.trf.xlu0
        %v4766 = vpop.trf.xlu0
        %v4767 = vpop.trf.xlu0
        %v4768 = vpop.trf.xlu0
        %v4769 = vpop.trf.xlu0
        %v4770 = vpop.trf.xlu0
        %v4771 = vpop.trf.xlu0
        %v4772 = vpop.trf.xlu0
        %v4773 = vpop.trf.xlu0
        %v4774 = vpop.trf.xlu0
        %v4775 = vpop.trf.xlu0
        %vm4776 = vcmask 519168
        %4777 = vst.msk [vmem:[%s380] sm:$0xf] %vm4776, %v4760
        %4778 = vxpose.xlu0.b32.start [1/16] %v4721, 128
        %4779 = vxpose.xlu0.b32.cont [2/16] %v4724, 128
        %4780 = vxpose.xlu0.b32.cont [3/16] %v4727, 128
        %4781 = vxpose.xlu0.b32.cont [4/16] %v4730, 128
        %4782 = vxpose.xlu0.b32.cont [5/16] %v4733, 128
        %4783 = vxpose.xlu0.b32.cont [6/16] %v4736, 128
        %4784 = vxpose.xlu0.b32.cont [7/16] %v4739, 128
        %4785 = vxpose.xlu0.b32.cont [8/16] %v4742, 128
        %4786 = vxpose.xlu0.b32.cont [9/16] 0.0, 128
        %4787 = vxpose.xlu0.b32.cont [10/16] 0.0, 128
        %4788 = vxpose.xlu0.b32.cont [11/16] 0.0, 128
        %4789 = vxpose.xlu0.b32.cont [12/16] 0.0, 128
        %4790 = vxpose.xlu0.b32.cont [13/16] 0.0, 128
        %4791 = vxpose.xlu0.b32.cont [14/16] 0.0, 128
        %4792 = vxpose.xlu0.b32.cont [15/16] 0.0, 128
        %4793 = vxpose.xlu0.b32.end [16/16] 0.0, 128
        %v4794 = vpop.trf.xlu0
        %v4795 = vpop.trf.xlu0
        %v4796 = vpop.trf.xlu0
        %v4797 = vpop.trf.xlu0
        %v4798 = vpop.trf.xlu0
        %v4799 = vpop.trf.xlu0
        %v4800 = vpop.trf.xlu0
        %v4801 = vpop.trf.xlu0
        %v4802 = vpop.trf.xlu0
        %v4803 = vpop.trf.xlu0
        %v4804 = vpop.trf.xlu0
        %v4805 = vpop.trf.xlu0
        %v4806 = vpop.trf.xlu0
        %v4807 = vpop.trf.xlu0
        %v4808 = vpop.trf.xlu0
        %v4809 = vpop.trf.xlu0
        %s4810 = scalar_lea.vmem %s380, 4 [#allocation2]
        %4811 = vst.msk [vmem:[%s4810] sm:$0xf] %vm4776, %v4794
        %s4812 = sand.u32 %s269, 1
        %s4813 = scalar_lea.sflag [#allocation3], %s4812
        %s4814 = sand.u32 %s269, 1
        %s4815 = smul.addr %s4814, 8
        %s4816 = scalar_lea.vmem [#allocation2], %s4815
        // Predicated region
        $region65: #{tpu_custom_call.1} parent=63 // pred_check
          %p4817 = pneg %p279
        $region66: #{tpu_custom_call.1} parent=63 // pred_check_branch
          %4819 = sbr.rel (%p4817) target = $region68
        $region67: #{tpu_custom_call.1} parent=63 // pred_region
          %s4820 = smul.u32 2, %s25
          %4822 = vsyncadd %s4813, 0
          %s4823 = smul.addr %s4820, 4
          %s4824 = scalar_lea.hbm %s11, %s4823
          %s4825 = sshll.u32 %s4816, 4
          %s4826 = int_to_ptr.vmem [resolvable:$true] %s4825
          %s4827 = sshll.u32 %s4824, 4
          %s4828 = int_to_ptr.hbm [resolvable:$true] %s4827
          %4833 = dma.vmem_to_hbm [thread:$0]  %s4826, 128, %s4828, %s4813, 64, 64, 4
        $region68: #{tpu_custom_call.1} parent=63 // pred_fallthru
          _
      $region64: #{tpu_custom_call.1} parent=5 // pred_fallthru
        _
      %p4834 = scmp.le.s32.totalorder 2, %s20
      // Predicated region
      $region69: #{tpu_custom_call.1} parent=5 // pred_check
        %p4835 = pneg %p4834
      $region70: #{tpu_custom_call.1} parent=5 // pred_check_branch
        %4837 = sbr.rel (%p4835) target = $region72
      $region71: #{tpu_custom_call.1} parent=5 // pred_region
        %s4838 = ssub.s32 %s20, 2
        // Predicated region
        $region73: #{tpu_custom_call.1} parent=71 // pred_check
          %p4839 = pneg %p285
        $region74: #{tpu_custom_call.1} parent=71 // pred_check_branch
          %4841 = sbr.rel (%p4839) target = $region76
        $region75: #{tpu_custom_call.1} parent=71 // pred_region
          %s4842 = sand.u32 %s270, 1
          %s4843 = scalar_lea.sflag [#allocation3], %s4842
          %s4844 = sand.u32 %s270, 1
          %s4845 = smul.addr %s4844, 8
          %s4846 = scalar_lea.vmem [#allocation2], %s4845
          %4848 = dma.done %s4843, 128
        $region76: #{tpu_custom_call.1} parent=71 // pred_fallthru
          _
      $region72: #{tpu_custom_call.1} parent=5 // pred_fallthru
        _
    $region6: #{tpu_custom_call.1} parent=1 // loop_footer
      %s24 = sadd.s32 1, %s20
    $region7: #{tpu_custom_call.1} parent=1 // loop_footer_branch
      %19 = sbr.rel target = $region3
    $region8: #{tpu_custom_call.1} parent=1 // loop_exit
      _
    %4849 = vsyncpa [#allocation3], 1
    %s4850 = scalar_lea.sflag [#allocation3], 1
    %4851 = vsyncpa %s4850, 1

</llo_original>
